<compile_context>
chip_gen: v5e
topology: v5e:2x2
jax: 0.10.0
libtpu: 0.0.40
codegen_flags: <defaults>
</compile_context>

<pallas_src>
import functools

import numpy as np
import jax
import jax.numpy as jnp
from jax import lax
from jax.experimental import pallas as pl
from jax.experimental.pallas import tpu as pltpu

KSIZE = 7
PAD = KSIZE // 2
CLAMP = 2.0
LEAKY_SLOPE = 0.01           # nn.LeakyReLU() default negative_slope


def _round_up(x, m):
    return (x + m - 1) // m * m


def _recip(x):
    """Reciprocal on the (otherwise idle) EUP + one Newton step (~f32 exact)."""
    r = pl.reciprocal(x, approx=True)
    return r + r * (1.0 - x * r)


def _atan_f32(x):
    """Cephes-style float32 arctan (~1e-7 abs error) from Mosaic-friendly ops."""
    sgn = jnp.where(x < 0, -1.0, 1.0)
    ax = jnp.abs(x)
    big = ax > 2.414213562373095            # tan(3*pi/8)
    mid = ax > 0.4142135623730950           # tan(pi/8)
    y0 = jnp.where(big, 0.5 * jnp.pi, jnp.where(mid, 0.25 * jnp.pi, 0.0))
    safe_ax = jnp.maximum(ax, 1e-30)
    inv_ax = _recip(safe_ax)
    inv_ax1 = _recip(ax + 1.0)
    xr = jnp.where(big, -inv_ax, jnp.where(mid, (ax - 1.0) * inv_ax1, ax))
    z = xr * xr
    p = ((8.05374449538e-2 * z - 1.38776856032e-1) * z
         + 1.99777106478e-1) * z - 3.33329491539e-1
    return sgn * (y0 + p * z * xr + xr)


def _fused_conv_kernel(x_ref, w1_ref, w2_ref, mask_ref, out_ref,
                       hpad_ref, e1_ref, e2_ref, *, Wp, clamp):
    """conv1 -> LeakyReLU -> conv2 -> chunk -> atan-clamp for one batch image.

      x_ref   : (Cin, plen)     pre-zero-padded flat image, row stride Wp = W+6
      w1_ref  : (hidden, K1p)   conv1 weight; column t*Cin+ci  <-> tap t, chan ci
      w2_ref  : (out_c,  K2p)   conv2 weight; column t*hid+hc  <-> tap t, chan hc
      mask_ref: (1, Gp)         1.0 on valid output columns, 0.0 on junk/tail
      out_ref : (out_c, Gp)     rows [0,half) = clamped dlogdet, rest = bias
      hpad_ref: (hidden, plen)  zero-padded conv1 activation (scratch)
      e1_ref  : (K1p, Gp)       conv1 im2col matrix (scratch)
      e2_ref  : (K2p, Gp)       conv2 im2col matrix (scratch)

    Padded-row-stride trick: with row stride Wp, the slab for tap (kh, kw) is
    one contiguous lane slice [kh*Wp+kw : kh*Wp+kw+Gp]; the 49 slabs are stacked
    into an im2col matrix so each conv is one MXU contraction.  Columns with
    (g % Wp) >= W or g >= H*Wp are junk; they are masked (so they double as the
    zero padding between rows for conv2) and dropped by the wrapper at the end.
    """
    f32 = jnp.float32
    cin = x_ref.shape[0]
    hidden = hpad_ref.shape[0]
    out_c, Gp = out_ref.shape
    half = out_c // 2
    plen = hpad_ref.shape[1]
    base = PAD * Wp + PAD
    k1 = KSIZE * KSIZE * cin
    k2 = KSIZE * KSIZE * hidden
    mask = mask_ref[...]

    # -- conv1: im2col gather of the 49 shifted slabs, then one dot (K=49*Cin) --
    for kh in range(KSIZE):
        for kw in range(KSIZE):
            t = kh * KSIZE + kw
            off = kh * Wp + kw
            e1_ref[t * cin:(t + 1) * cin, :] = x_ref[:, off:off + Gp]
    if e1_ref.shape[0] > k1:                      # zero K-padding rows (static)
        e1_ref[k1:, :] = jnp.zeros((e1_ref.shape[0] - k1, Gp), f32)
    h = jnp.dot(w1_ref[...], e1_ref[...], preferred_element_type=f32)
    h = jnp.where(h >= 0.0, h, LEAKY_SLOPE * h) * mask   # LeakyReLU + zero junk

    # -- re-pad conv1 output for conv2 (halo only; interior is fully rewritten) --
    hpad_ref[:, :base] = jnp.zeros((hidden, base), f32)
    hpad_ref[:, base + Gp:] = jnp.zeros((hidden, plen - base - Gp), f32)
    hpad_ref[:, base:base + Gp] = h

    # -- conv2: same im2col trick, single dot (K = 49*hidden) --------------------
    for kh in range(KSIZE):
        for kw in range(KSIZE):
            t = kh * KSIZE + kw
            off = kh * Wp + kw
            e2_ref[t * hidden:(t + 1) * hidden, :] = hpad_ref[:, off:off + Gp]
    if e2_ref.shape[0] > k2:
        e2_ref[k2:, :] = jnp.zeros((e2_ref.shape[0] - k2, Gp), f32)
    o = jnp.dot(w2_ref[...], e2_ref[...], preferred_element_type=f32)

    # -- torch.chunk(2, 1) + atan soft clamp on the first half channels only -----
    row = lax.broadcasted_iota(jnp.int32, (out_c, Gp), 0)
    d = (clamp * 0.636) * _atan_f32(o * (1.0 / clamp))
    out_ref[...] = jnp.where(row < half, d, o) * mask


def _volume_norm_kernel(x_ref, scale_ref, dlog_ref, *, reduce_axes, inv_count):
    """VolumeNorm training path (subtract sample mean) + exp on a
    (B, out_c, tile) block; only the first `half` channels (dlogdet) are used.
    Junk columns are zero, so sums are exact; inv_count uses the VALID size."""
    half = scale_ref.shape[1]
    d = x_ref[:, :half, :]
    s = d
    for ax in reduce_axes:
        s = jnp.sum(s, axis=ax, keepdims=True)
    d = d - s * inv_count
    dlog_ref[...] = d
    scale_ref[...] = jnp.exp(d)


def _pick_spatial_tile(Gp, max_tile=8192):
    """Largest multiple-of-128 tile dividing Gp (Gp itself if small enough)."""
    if Gp <= max_tile:
        return Gp
    n = Gp // 128
    for d in range(max_tile // 128, 0, -1):
        if n % d == 0:
            return 128 * d
    return 128


def _batch_dim_semantics(batch):
    """v7x has 2 TensorCores/chip and plain 'parallel' does not shard the grid
    across them; CORE_PARALLEL does.  Everywhere else use portable 'parallel'."""
    try:
        kind = jax.devices()[0].device_kind.lower()
    except Exception:
        return "parallel"
    if "v7" in kind and batch >= 2 and batch % 2 == 0:
        return pltpu.CORE_PARALLEL
    return "parallel"


def affine_param_block(x_nchw, w1_hwio, w2_hwio, forward_mode=True,
                       clamp=CLAMP, vn_dims=(0, 1)):
    """Pallas forward of AffineParamBlock. Returns ((scale, bias), dlogdet), NCHW.

    x_nchw : (B, Cin, H, W)
    w1_hwio: (7, 7, Cin, hidden)  conv1 weight, HWIO (= torch OIHW .permute(2,3,1,0))
    w2_hwio: (7, 7, hidden, out)  conv2 weight, HWIO
    """
    del forward_mode   # the PyTorch forward ignores it as well
    # TODO(synk): VolumeNorm's running_mean EMA update (training buffer side
    # effect) and the eval-mode path (subtract running_mean) are not modeled.
    if (2 in vn_dims) != (3 in vn_dims):
        raise NotImplementedError("H and W are merged on the lane axis; "
                                  "vn_dims must contain both or neither of (2, 3).")

    B, Cin, H, W = x_nchw.shape
    hidden = w1_hwio.shape[-1]
    out_c = w2_hwio.shape[-1]
    half = out_c // 2
    nt = KSIZE * KSIZE
    S = H * W
    Wp = W + 2 * PAD                                   # padded row stride
    G = H * Wp                                         # valid span in padded coords
    Gp = _round_up(G, 128)                             # lane-dense working width
    plen = _round_up((KSIZE - 1) * (Wp + 1) + Gp, 128)  # flat padded-image length
    K1, K1p = nt * Cin, _round_up(nt * Cin, 8)
    K2, K2p = nt * hidden, _round_up(nt * hidden, 8)
    f32 = jnp.float32

    # Pre-padded flat image (row stride Wp) -> the kernel needs no copy loop.
    xpad = jnp.pad(x_nchw.astype(f32), ((0, 0), (0, 0), (PAD, PAD), (PAD, PAD)))
    xpad = xpad.reshape(B, Cin, (H + 2 * PAD) * Wp)
    xpad = jnp.pad(xpad, ((0, 0), (0, 0), (0, plen - (H + 2 * PAD) * Wp)))
    # (7,7,I,O) -> (O, 49*I): column t*I+i is tap t = kh*7+kw, input channel i.
    w1m = jnp.transpose(w1_hwio, (3, 0, 1, 2)).reshape(hidden, K1).astype(f32)
    w1m = jnp.pad(w1m, ((0, 0), (0, K1p - K1)))
    w2m = jnp.transpose(w2_hwio, (3, 0, 1, 2)).reshape(out_c, K2).astype(f32)
    w2m = jnp.pad(w2m, ((0, 0), (0, K2p - K2)))
    # Valid-column mask in padded-stride coordinates (trace-time constant).
    g = np.arange(Gp)
    mask = jnp.asarray(((g % Wp < W) & (g < G)).astype(np.float32)).reshape(1, Gp)

    conv_vmem = 4 * (2 * Cin * plen + 2 * hidden * K1p + 2 * out_c * K2p + 2 * Gp
                     + 2 * out_c * Gp + hidden * plen + K1p * Gp + K2p * Gp)
    conv_cost = pl.CostEstimate(
        flops=2 * B * Gp * (hidden * K1 + out_c * K2),
        transcendentals=3 * B * out_c * Gp,
        bytes_accessed=4 * (B * Cin * plen + hidden * K1p + out_c * K2p
                            + B * out_c * Gp))
    kernel = functools.partial(_fused_conv_kernel, Wp=Wp, clamp=float(clamp))
    conv_out = pl.pallas_call(
        kernel,
        grid=(B,),
        in_specs=[
            pl.BlockSpec((None, Cin, plen), lambda b: (b, 0, 0)),
            pl.BlockSpec((hidden, K1p), lambda b: (0, 0)),
            pl.BlockSpec((out_c, K2p), lambda b: (0, 0)),
            pl.BlockSpec((1, Gp), lambda b: (0, 0)),
        ],
        out_specs=pl.BlockSpec((None, out_c, Gp), lambda b: (b, 0, 0)),
        out_shape=jax.ShapeDtypeStruct((B, out_c, Gp), f32),
        scratch_shapes=[
            pltpu.VMEM((hidden, plen), f32),   # zero-padded leaky(conv1)
            pltpu.VMEM((K1p, Gp), f32),        # conv1 im2col matrix
            pltpu.VMEM((K2p, Gp), f32),        # conv2 im2col matrix
        ],
        compiler_params=pltpu.CompilerParams(
            dimension_semantics=(_batch_dim_semantics(B),),
            vmem_limit_bytes=min(max(2 * conv_vmem + (4 << 20), 32 << 20),
                                 100 << 20)),
        cost_estimate=conv_cost,
    )(xpad, w1m, w2m, mask)
    # TODO(synk): very large images need spatial (Gp) tiling of the im2col
    # scratch; at that point add a spatial grid axis to the conv call as well.

    # --- VolumeNorm (training: subtract sample mean over vn_dims) + exp --------
    # vn_dims are NCHW dims; H and W are merged on the lane axis -> map 2,3 -> 2.
    axis_map = {0: 0, 1: 1, 2: 2, 3: 2}
    reduce_axes = tuple(sorted({axis_map[a] for a in vn_dims}))
    count = 1
    if 0 in reduce_axes:
        count *= B
    if 1 in reduce_axes:
        count *= half
    if 2 in reduce_axes:
        count *= S        # junk columns are zero -> divide by the VALID size
    ts = Gp if 2 in reduce_axes else _pick_spatial_tile(Gp)
    norm_vmem = 4 * (2 * B * out_c * ts + 4 * B * half * ts)
    norm_cost = pl.CostEstimate(
        flops=6 * B * half * Gp,
        transcendentals=B * half * Gp,
        bytes_accessed=4 * (B * out_c * Gp + 2 * B * half * Gp))
    norm = functools.partial(_volume_norm_kernel, reduce_axes=reduce_axes,
                             inv_count=1.0 / count)
    scale_p, dlog_p = pl.pallas_call(
        norm,
        grid=(Gp // ts,),
        in_specs=[pl.BlockSpec((B, out_c, ts), lambda i: (0, 0, i))],
        out_specs=(pl.BlockSpec((B, half, ts), lambda i: (0, 0, i)),
                   pl.BlockSpec((B, half, ts), lambda i: (0, 0, i))),
        out_shape=(jax.ShapeDtypeStruct((B, half, Gp), f32),
                   jax.ShapeDtypeStruct((B, half, Gp), f32)),
        compiler_params=pltpu.CompilerParams(
            dimension_semantics=("parallel",),
            vmem_limit_bytes=min(max(2 * norm_vmem + (4 << 20), 32 << 20),
                                 100 << 20)),
        cost_estimate=norm_cost,
    )(conv_out)
    # TODO(synk): when vn_dims include the spatial dims at large B*C*H*W, switch
    # to a two-pass (partial sums, then subtract+exp) reduction to stay inside
    # v7x's 64 MiB VMEM instead of one whole-spatial block.

    # --- drop padded-stride junk columns once, at the very end (NCHW outputs) --
    bias = conv_out[:, half:, :G].reshape(B, half, H, Wp)[..., :W]
    scale = scale_p[:, :, :G].reshape(B, half, H, Wp)[..., :W]
    dlogdet = dlog_p[:, :, :G].reshape(B, half, H, Wp)[..., :W]
    return (scale, bias), dlogdet


# ------------------------------ pure-JAX reference ---------------------------
def _reference(x_nchw, w1_hwio, w2_hwio, clamp=CLAMP, vn_dims=(0, 1)):
    conv = lambda a, w: lax.conv_general_dilated(
        a, w, (1, 1), [(PAD, PAD), (PAD, PAD)],
        dimension_numbers=("NCHW", "HWIO", "NCHW"))
    h = conv(x_nchw, w1_hwio)
    h = jnp.where(h >= 0, h, LEAKY_SLOPE * h)
    out = conv(h, w2_hwio)
    c = out.shape[1]
    d_raw, bias = out[:, :c // 2], out[:, c // 2:]
    d = clamp * 0.636 * jnp.arctan(d_raw / clamp)
    d = d - jnp.mean(d, axis=vn_dims, keepdims=True)
    return (jnp.exp(d), bias), d


if __name__ == "__main__":
    key = jax.random.PRNGKey(0)
    kx, k1, k2 = jax.random.split(key, 3)

    B, in_ch, H, W = 2, 4, 16, 16
    out_ch = 2 * in_ch          # module default: out_ch = 2 * in_ch
    hidden_ch = out_ch          # module default: hidden_ch = out_ch

    x = jax.random.normal(kx, (B, in_ch, H, W), jnp.float32)          # NCHW
    # Conv weights in HWIO (== PyTorch OIHW weight transposed (2, 3, 1, 0)).
    # NOTE: PyTorch zero-inits conv[-1]; small nonzero weights are used so the
    # kernel exercises a nontrivial path.
    w1 = 0.1 * jax.random.normal(k1, (KSIZE, KSIZE, in_ch, hidden_ch), jnp.float32)
    w2 = 0.1 * jax.random.normal(k2, (KSIZE, KSIZE, hidden_ch, out_ch), jnp.float32)

    (scale, bias), dlogdet = affine_param_block(x, w1, w2, forward_mode=True)
    jax.block_until_ready(scale)
    jax.block_until_ready(bias)
    jax.block_until_ready(dlogdet)

    (scale_r, bias_r), dlog_r = _reference(x, w1, w2)
    assert scale.shape == (B, in_ch, H, W)
    assert bias.shape == (B, in_ch, H, W)
    assert dlogdet.shape == (B, in_ch, H, W)
    for got, ref in ((scale, scale_r), (bias, bias_r), (dlogdet, dlog_r)):
        err = float(jnp.max(jnp.abs(got - ref)))
        assert jnp.allclose(got, ref, atol=1e-4, rtol=1e-4), err
    print("KERNEL_OK")
</pallas_src>

<mosaic_0001>
module attributes {stable_mosaic.version = 11 : i64} {
  func.func @_fused_conv_kernel(%arg0: i32, %arg1: memref<1x4x640xf32, #tpu.memory_space<vmem>>, %arg2: memref<8x200xf32, #tpu.memory_space<vmem>>, %arg3: memref<8x392xf32, #tpu.memory_space<vmem>>, %arg4: memref<1x384xf32, #tpu.memory_space<vmem>>, %arg5: memref<1x8x384xf32, #tpu.memory_space<vmem>>, %arg6: memref<8x640xf32, #tpu.memory_space<vmem>>, %arg7: memref<200x384xf32, #tpu.memory_space<vmem>>, %arg8: memref<392x384xf32, #tpu.memory_space<vmem>>) attributes {dimension_semantics = [#tpu.dimension_semantics<parallel>], iteration_bounds = array<i64: 2>, scalar_prefetch = 0 : i64, scratch_operands = 3 : i64, tpu.core_type = #tpu.core_type<tc>, window_params = [{transform_indices = @transform_0, window_bounds = array<i64: 1, 4, 640>}, {pipeline_mode = #tpu.pipeline_mode<synchronous>, transform_indices = @transform_1, window_bounds = array<i64: 8, 200>}, {pipeline_mode = #tpu.pipeline_mode<synchronous>, transform_indices = @transform_2, window_bounds = array<i64: 8, 392>}, {pipeline_mode = #tpu.pipeline_mode<synchronous>, transform_indices = @transform_3, window_bounds = array<i64: 1, 384>}, {transform_indices = @transform_4, window_bounds = array<i64: 1, 8, 384>}]} {
    %c0 = arith.constant 0 : index
    %c0_0 = arith.constant 0 : index
    %0 = vector.load %arg4[%c0, %c0_0] : memref<1x384xf32, #tpu.memory_space<vmem>>, vector<1x384xf32>
    %c0_1 = arith.constant 0 : index
    %c0_2 = arith.constant 0 : index
    %c0_3 = arith.constant 0 : index
    %1 = vector.load %arg1[%c0_1, %c0_2, %c0_3] : memref<1x4x640xf32, #tpu.memory_space<vmem>>, vector<1x4x384xf32>
    %2 = vector.shape_cast %1 : vector<1x4x384xf32> to vector<4x384xf32>
    %c0_4 = arith.constant 0 : index
    %c0_5 = arith.constant 0 : index
    %3 = vector.load %arg7[%c0_4, %c0_5] : memref<200x384xf32, #tpu.memory_space<vmem>>, vector<4x384xf32>
    tpu.vector_store %arg7[%c0_4, %c0_5], %2 {strides = array<i32>} : memref<200x384xf32, #tpu.memory_space<vmem>>, vector<4x384xf32>,
    %c0_6 = arith.constant 0 : index
    %c0_7 = arith.constant 0 : index
    %c1 = arith.constant 1 : index
    %4 = vector.load %arg1[%c0_6, %c0_7, %c1] : memref<1x4x640xf32, #tpu.memory_space<vmem>>, vector<1x4x384xf32>
    %5 = vector.shape_cast %4 : vector<1x4x384xf32> to vector<4x384xf32>
    %c4 = arith.constant 4 : index
    %c0_8 = arith.constant 0 : index
    %6 = vector.load %arg7[%c4, %c0_8] : memref<200x384xf32, #tpu.memory_space<vmem>>, vector<4x384xf32>
    tpu.vector_store %arg7[%c4, %c0_8], %5 {strides = array<i32>} : memref<200x384xf32, #tpu.memory_space<vmem>>, vector<4x384xf32>,
    %c0_9 = arith.constant 0 : index
    %c0_10 = arith.constant 0 : index
    %c2 = arith.constant 2 : index
    %7 = vector.load %arg1[%c0_9, %c0_10, %c2] : memref<1x4x640xf32, #tpu.memory_space<vmem>>, vector<1x4x384xf32>
    %8 = vector.shape_cast %7 : vector<1x4x384xf32> to vector<4x384xf32>
    %c8 = arith.constant 8 : index
    %c0_11 = arith.constant 0 : index
    %9 = vector.load %arg7[%c8, %c0_11] : memref<200x384xf32, #tpu.memory_space<vmem>>, vector<4x384xf32>
    tpu.vector_store %arg7[%c8, %c0_11], %8 {strides = array<i32>} : memref<200x384xf32, #tpu.memory_space<vmem>>, vector<4x384xf32>,
    %c0_12 = arith.constant 0 : index
    %c0_13 = arith.constant 0 : index
    %c3 = arith.constant 3 : index
    %10 = vector.load %arg1[%c0_12, %c0_13, %c3] : memref<1x4x640xf32, #tpu.memory_space<vmem>>, vector<1x4x384xf32>
    %11 = vector.shape_cast %10 : vector<1x4x384xf32> to vector<4x384xf32>
    %c12 = arith.constant 12 : index
    %c0_14 = arith.constant 0 : index
    %12 = vector.load %arg7[%c12, %c0_14] : memref<200x384xf32, #tpu.memory_space<vmem>>, vector<4x384xf32>
    tpu.vector_store %arg7[%c12, %c0_14], %11 {strides = array<i32>} : memref<200x384xf32, #tpu.memory_space<vmem>>, vector<4x384xf32>,
    %c0_15 = arith.constant 0 : index
    %c0_16 = arith.constant 0 : index
    %c4_17 = arith.constant 4 : index
    %13 = vector.load %arg1[%c0_15, %c0_16, %c4_17] : memref<1x4x640xf32, #tpu.memory_space<vmem>>, vector<1x4x384xf32>
    %14 = vector.shape_cast %13 : vector<1x4x384xf32> to vector<4x384xf32>
    %c16 = arith.constant 16 : index
    %c0_18 = arith.constant 0 : index
    %15 = vector.load %arg7[%c16, %c0_18] : memref<200x384xf32, #tpu.memory_space<vmem>>, vector<4x384xf32>
    tpu.vector_store %arg7[%c16, %c0_18], %14 {strides = array<i32>} : memref<200x384xf32, #tpu.memory_space<vmem>>, vector<4x384xf32>,
    %c0_19 = arith.constant 0 : index
    %c0_20 = arith.constant 0 : index
    %c5 = arith.constant 5 : index
    %16 = vector.load %arg1[%c0_19, %c0_20, %c5] : memref<1x4x640xf32, #tpu.memory_space<vmem>>, vector<1x4x384xf32>
    %17 = vector.shape_cast %16 : vector<1x4x384xf32> to vector<4x384xf32>
    %c20 = arith.constant 20 : index
    %c0_21 = arith.constant 0 : index
    %18 = vector.load %arg7[%c20, %c0_21] : memref<200x384xf32, #tpu.memory_space<vmem>>, vector<4x384xf32>
    tpu.vector_store %arg7[%c20, %c0_21], %17 {strides = array<i32>} : memref<200x384xf32, #tpu.memory_space<vmem>>, vector<4x384xf32>,
    %c0_22 = arith.constant 0 : index
    %c0_23 = arith.constant 0 : index
    %c6 = arith.constant 6 : index
    %19 = vector.load %arg1[%c0_22, %c0_23, %c6] : memref<1x4x640xf32, #tpu.memory_space<vmem>>, vector<1x4x384xf32>
    %20 = vector.shape_cast %19 : vector<1x4x384xf32> to vector<4x384xf32>
    %c24 = arith.constant 24 : index
    %c0_24 = arith.constant 0 : index
    %21 = vector.load %arg7[%c24, %c0_24] : memref<200x384xf32, #tpu.memory_space<vmem>>, vector<4x384xf32>
    tpu.vector_store %arg7[%c24, %c0_24], %20 {strides = array<i32>} : memref<200x384xf32, #tpu.memory_space<vmem>>, vector<4x384xf32>,
    %c0_25 = arith.constant 0 : index
    %c0_26 = arith.constant 0 : index
    %c22 = arith.constant 22 : index
    %22 = vector.load %arg1[%c0_25, %c0_26, %c22] : memref<1x4x640xf32, #tpu.memory_space<vmem>>, vector<1x4x384xf32>
    %23 = vector.shape_cast %22 : vector<1x4x384xf32> to vector<4x384xf32>
    %c28 = arith.constant 28 : index
    %c0_27 = arith.constant 0 : index
    %24 = vector.load %arg7[%c28, %c0_27] : memref<200x384xf32, #tpu.memory_space<vmem>>, vector<4x384xf32>
    tpu.vector_store %arg7[%c28, %c0_27], %23 {strides = array<i32>} : memref<200x384xf32, #tpu.memory_space<vmem>>, vector<4x384xf32>,
    %c0_28 = arith.constant 0 : index
    %c0_29 = arith.constant 0 : index
    %c23 = arith.constant 23 : index
    %25 = vector.load %arg1[%c0_28, %c0_29, %c23] : memref<1x4x640xf32, #tpu.memory_space<vmem>>, vector<1x4x384xf32>
    %26 = vector.shape_cast %25 : vector<1x4x384xf32> to vector<4x384xf32>
    %c32 = arith.constant 32 : index
    %c0_30 = arith.constant 0 : index
    %27 = vector.load %arg7[%c32, %c0_30] : memref<200x384xf32, #tpu.memory_space<vmem>>, vector<4x384xf32>
    tpu.vector_store %arg7[%c32, %c0_30], %26 {strides = array<i32>} : memref<200x384xf32, #tpu.memory_space<vmem>>, vector<4x384xf32>,
    %c0_31 = arith.constant 0 : index
    %c0_32 = arith.constant 0 : index
    %c24_33 = arith.constant 24 : index
    %28 = vector.load %arg1[%c0_31, %c0_32, %c24_33] : memref<1x4x640xf32, #tpu.memory_space<vmem>>, vector<1x4x384xf32>
    %29 = vector.shape_cast %28 : vector<1x4x384xf32> to vector<4x384xf32>
    %c36 = arith.constant 36 : index
    %c0_34 = arith.constant 0 : index
    %30 = vector.load %arg7[%c36, %c0_34] : memref<200x384xf32, #tpu.memory_space<vmem>>, vector<4x384xf32>
    tpu.vector_store %arg7[%c36, %c0_34], %29 {strides = array<i32>} : memref<200x384xf32, #tpu.memory_space<vmem>>, vector<4x384xf32>,
    %c0_35 = arith.constant 0 : index
    %c0_36 = arith.constant 0 : index
    %c25 = arith.constant 25 : index
    %31 = vector.load %arg1[%c0_35, %c0_36, %c25] : memref<1x4x640xf32, #tpu.memory_space<vmem>>, vector<1x4x384xf32>
    %32 = vector.shape_cast %31 : vector<1x4x384xf32> to vector<4x384xf32>
    %c40 = arith.constant 40 : index
    %c0_37 = arith.constant 0 : index
    %33 = vector.load %arg7[%c40, %c0_37] : memref<200x384xf32, #tpu.memory_space<vmem>>, vector<4x384xf32>
    tpu.vector_store %arg7[%c40, %c0_37], %32 {strides = array<i32>} : memref<200x384xf32, #tpu.memory_space<vmem>>, vector<4x384xf32>,
    %c0_38 = arith.constant 0 : index
    %c0_39 = arith.constant 0 : index
    %c26 = arith.constant 26 : index
    %34 = vector.load %arg1[%c0_38, %c0_39, %c26] : memref<1x4x640xf32, #tpu.memory_space<vmem>>, vector<1x4x384xf32>
    %35 = vector.shape_cast %34 : vector<1x4x384xf32> to vector<4x384xf32>
    %c44 = arith.constant 44 : index
    %c0_40 = arith.constant 0 : index
    %36 = vector.load %arg7[%c44, %c0_40] : memref<200x384xf32, #tpu.memory_space<vmem>>, vector<4x384xf32>
    tpu.vector_store %arg7[%c44, %c0_40], %35 {strides = array<i32>} : memref<200x384xf32, #tpu.memory_space<vmem>>, vector<4x384xf32>,
    %c0_41 = arith.constant 0 : index
    %c0_42 = arith.constant 0 : index
    %c27 = arith.constant 27 : index
    %37 = vector.load %arg1[%c0_41, %c0_42, %c27] : memref<1x4x640xf32, #tpu.memory_space<vmem>>, vector<1x4x384xf32>
    %38 = vector.shape_cast %37 : vector<1x4x384xf32> to vector<4x384xf32>
    %c48 = arith.constant 48 : index
    %c0_43 = arith.constant 0 : index
    %39 = vector.load %arg7[%c48, %c0_43] : memref<200x384xf32, #tpu.memory_space<vmem>>, vector<4x384xf32>
    tpu.vector_store %arg7[%c48, %c0_43], %38 {strides = array<i32>} : memref<200x384xf32, #tpu.memory_space<vmem>>, vector<4x384xf32>,
    %c0_44 = arith.constant 0 : index
    %c0_45 = arith.constant 0 : index
    %c28_46 = arith.constant 28 : index
    %40 = vector.load %arg1[%c0_44, %c0_45, %c28_46] : memref<1x4x640xf32, #tpu.memory_space<vmem>>, vector<1x4x384xf32>
    %41 = vector.shape_cast %40 : vector<1x4x384xf32> to vector<4x384xf32>
    %c52 = arith.constant 52 : index
    %c0_47 = arith.constant 0 : index
    %42 = vector.load %arg7[%c52, %c0_47] : memref<200x384xf32, #tpu.memory_space<vmem>>, vector<4x384xf32>
    tpu.vector_store %arg7[%c52, %c0_47], %41 {strides = array<i32>} : memref<200x384xf32, #tpu.memory_space<vmem>>, vector<4x384xf32>,
    %c0_48 = arith.constant 0 : index
    %c0_49 = arith.constant 0 : index
    %c44_50 = arith.constant 44 : index
    %43 = vector.load %arg1[%c0_48, %c0_49, %c44_50] : memref<1x4x640xf32, #tpu.memory_space<vmem>>, vector<1x4x384xf32>
    %44 = vector.shape_cast %43 : vector<1x4x384xf32> to vector<4x384xf32>
    %c56 = arith.constant 56 : index
    %c0_51 = arith.constant 0 : index
    %45 = vector.load %arg7[%c56, %c0_51] : memref<200x384xf32, #tpu.memory_space<vmem>>, vector<4x384xf32>
    tpu.vector_store %arg7[%c56, %c0_51], %44 {strides = array<i32>} : memref<200x384xf32, #tpu.memory_space<vmem>>, vector<4x384xf32>,
    %c0_52 = arith.constant 0 : index
    %c0_53 = arith.constant 0 : index
    %c45 = arith.constant 45 : index
    %46 = vector.load %arg1[%c0_52, %c0_53, %c45] : memref<1x4x640xf32, #tpu.memory_space<vmem>>, vector<1x4x384xf32>
    %47 = vector.shape_cast %46 : vector<1x4x384xf32> to vector<4x384xf32>
    %c60 = arith.constant 60 : index
    %c0_54 = arith.constant 0 : index
    %48 = vector.load %arg7[%c60, %c0_54] : memref<200x384xf32, #tpu.memory_space<vmem>>, vector<4x384xf32>
    tpu.vector_store %arg7[%c60, %c0_54], %47 {strides = array<i32>} : memref<200x384xf32, #tpu.memory_space<vmem>>, vector<4x384xf32>,
    %c0_55 = arith.constant 0 : index
    %c0_56 = arith.constant 0 : index
    %c46 = arith.constant 46 : index
    %49 = vector.load %arg1[%c0_55, %c0_56, %c46] : memref<1x4x640xf32, #tpu.memory_space<vmem>>, vector<1x4x384xf32>
    %50 = vector.shape_cast %49 : vector<1x4x384xf32> to vector<4x384xf32>
    %c64 = arith.constant 64 : index
    %c0_57 = arith.constant 0 : index
    %51 = vector.load %arg7[%c64, %c0_57] : memref<200x384xf32, #tpu.memory_space<vmem>>, vector<4x384xf32>
    tpu.vector_store %arg7[%c64, %c0_57], %50 {strides = array<i32>} : memref<200x384xf32, #tpu.memory_space<vmem>>, vector<4x384xf32>,
    %c0_58 = arith.constant 0 : index
    %c0_59 = arith.constant 0 : index
    %c47 = arith.constant 47 : index
    %52 = vector.load %arg1[%c0_58, %c0_59, %c47] : memref<1x4x640xf32, #tpu.memory_space<vmem>>, vector<1x4x384xf32>
    %53 = vector.shape_cast %52 : vector<1x4x384xf32> to vector<4x384xf32>
    %c68 = arith.constant 68 : index
    %c0_60 = arith.constant 0 : index
    %54 = vector.load %arg7[%c68, %c0_60] : memref<200x384xf32, #tpu.memory_space<vmem>>, vector<4x384xf32>
    tpu.vector_store %arg7[%c68, %c0_60], %53 {strides = array<i32>} : memref<200x384xf32, #tpu.memory_space<vmem>>, vector<4x384xf32>,
    %c0_61 = arith.constant 0 : index
    %c0_62 = arith.constant 0 : index
    %c48_63 = arith.constant 48 : index
    %55 = vector.load %arg1[%c0_61, %c0_62, %c48_63] : memref<1x4x640xf32, #tpu.memory_space<vmem>>, vector<1x4x384xf32>
    %56 = vector.shape_cast %55 : vector<1x4x384xf32> to vector<4x384xf32>
    %c72 = arith.constant 72 : index
    %c0_64 = arith.constant 0 : index
    %57 = vector.load %arg7[%c72, %c0_64] : memref<200x384xf32, #tpu.memory_space<vmem>>, vector<4x384xf32>
    tpu.vector_store %arg7[%c72, %c0_64], %56 {strides = array<i32>} : memref<200x384xf32, #tpu.memory_space<vmem>>, vector<4x384xf32>,
    %c0_65 = arith.constant 0 : index
    %c0_66 = arith.constant 0 : index
    %c49 = arith.constant 49 : index
    %58 = vector.load %arg1[%c0_65, %c0_66, %c49] : memref<1x4x640xf32, #tpu.memory_space<vmem>>, vector<1x4x384xf32>
    %59 = vector.shape_cast %58 : vector<1x4x384xf32> to vector<4x384xf32>
    %c76 = arith.constant 76 : index
    %c0_67 = arith.constant 0 : index
    %60 = vector.load %arg7[%c76, %c0_67] : memref<200x384xf32, #tpu.memory_space<vmem>>, vector<4x384xf32>
    tpu.vector_store %arg7[%c76, %c0_67], %59 {strides = array<i32>} : memref<200x384xf32, #tpu.memory_space<vmem>>, vector<4x384xf32>,
    %c0_68 = arith.constant 0 : index
    %c0_69 = arith.constant 0 : index
    %c50 = arith.constant 50 : index
    %61 = vector.load %arg1[%c0_68, %c0_69, %c50] : memref<1x4x640xf32, #tpu.memory_space<vmem>>, vector<1x4x384xf32>
    %62 = vector.shape_cast %61 : vector<1x4x384xf32> to vector<4x384xf32>
    %c80 = arith.constant 80 : index
    %c0_70 = arith.constant 0 : index
    %63 = vector.load %arg7[%c80, %c0_70] : memref<200x384xf32, #tpu.memory_space<vmem>>, vector<4x384xf32>
    tpu.vector_store %arg7[%c80, %c0_70], %62 {strides = array<i32>} : memref<200x384xf32, #tpu.memory_space<vmem>>, vector<4x384xf32>,
    %c0_71 = arith.constant 0 : index
    %c0_72 = arith.constant 0 : index
    %c66 = arith.constant 66 : index
    %64 = vector.load %arg1[%c0_71, %c0_72, %c66] : memref<1x4x640xf32, #tpu.memory_space<vmem>>, vector<1x4x384xf32>
    %65 = vector.shape_cast %64 : vector<1x4x384xf32> to vector<4x384xf32>
    %c84 = arith.constant 84 : index
    %c0_73 = arith.constant 0 : index
    %66 = vector.load %arg7[%c84, %c0_73] : memref<200x384xf32, #tpu.memory_space<vmem>>, vector<4x384xf32>
    tpu.vector_store %arg7[%c84, %c0_73], %65 {strides = array<i32>} : memref<200x384xf32, #tpu.memory_space<vmem>>, vector<4x384xf32>,
    %c0_74 = arith.constant 0 : index
    %c0_75 = arith.constant 0 : index
    %c67 = arith.constant 67 : index
    %67 = vector.load %arg1[%c0_74, %c0_75, %c67] : memref<1x4x640xf32, #tpu.memory_space<vmem>>, vector<1x4x384xf32>
    %68 = vector.shape_cast %67 : vector<1x4x384xf32> to vector<4x384xf32>
    %c88 = arith.constant 88 : index
    %c0_76 = arith.constant 0 : index
    %69 = vector.load %arg7[%c88, %c0_76] : memref<200x384xf32, #tpu.memory_space<vmem>>, vector<4x384xf32>
    tpu.vector_store %arg7[%c88, %c0_76], %68 {strides = array<i32>} : memref<200x384xf32, #tpu.memory_space<vmem>>, vector<4x384xf32>,
    %c0_77 = arith.constant 0 : index
    %c0_78 = arith.constant 0 : index
    %c68_79 = arith.constant 68 : index
    %70 = vector.load %arg1[%c0_77, %c0_78, %c68_79] : memref<1x4x640xf32, #tpu.memory_space<vmem>>, vector<1x4x384xf32>
    %71 = vector.shape_cast %70 : vector<1x4x384xf32> to vector<4x384xf32>
    %c92 = arith.constant 92 : index
    %c0_80 = arith.constant 0 : index
    %72 = vector.load %arg7[%c92, %c0_80] : memref<200x384xf32, #tpu.memory_space<vmem>>, vector<4x384xf32>
    tpu.vector_store %arg7[%c92, %c0_80], %71 {strides = array<i32>} : memref<200x384xf32, #tpu.memory_space<vmem>>, vector<4x384xf32>,
    %c0_81 = arith.constant 0 : index
    %c0_82 = arith.constant 0 : index
    %c69 = arith.constant 69 : index
    %73 = vector.load %arg1[%c0_81, %c0_82, %c69] : memref<1x4x640xf32, #tpu.memory_space<vmem>>, vector<1x4x384xf32>
    %74 = vector.shape_cast %73 : vector<1x4x384xf32> to vector<4x384xf32>
    %c96 = arith.constant 96 : index
    %c0_83 = arith.constant 0 : index
    %75 = vector.load %arg7[%c96, %c0_83] : memref<200x384xf32, #tpu.memory_space<vmem>>, vector<4x384xf32>
    tpu.vector_store %arg7[%c96, %c0_83], %74 {strides = array<i32>} : memref<200x384xf32, #tpu.memory_space<vmem>>, vector<4x384xf32>,
    %c0_84 = arith.constant 0 : index
    %c0_85 = arith.constant 0 : index
    %c70 = arith.constant 70 : index
    %76 = vector.load %arg1[%c0_84, %c0_85, %c70] : memref<1x4x640xf32, #tpu.memory_space<vmem>>, vector<1x4x384xf32>
    %77 = vector.shape_cast %76 : vector<1x4x384xf32> to vector<4x384xf32>
    %c100 = arith.constant 100 : index
    %c0_86 = arith.constant 0 : index
    %78 = vector.load %arg7[%c100, %c0_86] : memref<200x384xf32, #tpu.memory_space<vmem>>, vector<4x384xf32>
    tpu.vector_store %arg7[%c100, %c0_86], %77 {strides = array<i32>} : memref<200x384xf32, #tpu.memory_space<vmem>>, vector<4x384xf32>,
    %c0_87 = arith.constant 0 : index
    %c0_88 = arith.constant 0 : index
    %c71 = arith.constant 71 : index
    %79 = vector.load %arg1[%c0_87, %c0_88, %c71] : memref<1x4x640xf32, #tpu.memory_space<vmem>>, vector<1x4x384xf32>
    %80 = vector.shape_cast %79 : vector<1x4x384xf32> to vector<4x384xf32>
    %c104 = arith.constant 104 : index
    %c0_89 = arith.constant 0 : index
    %81 = vector.load %arg7[%c104, %c0_89] : memref<200x384xf32, #tpu.memory_space<vmem>>, vector<4x384xf32>
    tpu.vector_store %arg7[%c104, %c0_89], %80 {strides = array<i32>} : memref<200x384xf32, #tpu.memory_space<vmem>>, vector<4x384xf32>,
    %c0_90 = arith.constant 0 : index
    %c0_91 = arith.constant 0 : index
    %c72_92 = arith.constant 72 : index
    %82 = vector.load %arg1[%c0_90, %c0_91, %c72_92] : memref<1x4x640xf32, #tpu.memory_space<vmem>>, vector<1x4x384xf32>
    %83 = vector.shape_cast %82 : vector<1x4x384xf32> to vector<4x384xf32>
    %c108 = arith.constant 108 : index
    %c0_93 = arith.constant 0 : index
    %84 = vector.load %arg7[%c108, %c0_93] : memref<200x384xf32, #tpu.memory_space<vmem>>, vector<4x384xf32>
    tpu.vector_store %arg7[%c108, %c0_93], %83 {strides = array<i32>} : memref<200x384xf32, #tpu.memory_space<vmem>>, vector<4x384xf32>,
    %c0_94 = arith.constant 0 : index
    %c0_95 = arith.constant 0 : index
    %c88_96 = arith.constant 88 : index
    %85 = vector.load %arg1[%c0_94, %c0_95, %c88_96] : memref<1x4x640xf32, #tpu.memory_space<vmem>>, vector<1x4x384xf32>
    %86 = vector.shape_cast %85 : vector<1x4x384xf32> to vector<4x384xf32>
    %c112 = arith.constant 112 : index
    %c0_97 = arith.constant 0 : index
    %87 = vector.load %arg7[%c112, %c0_97] : memref<200x384xf32, #tpu.memory_space<vmem>>, vector<4x384xf32>
    tpu.vector_store %arg7[%c112, %c0_97], %86 {strides = array<i32>} : memref<200x384xf32, #tpu.memory_space<vmem>>, vector<4x384xf32>,
    %c0_98 = arith.constant 0 : index
    %c0_99 = arith.constant 0 : index
    %c89 = arith.constant 89 : index
    %88 = vector.load %arg1[%c0_98, %c0_99, %c89] : memref<1x4x640xf32, #tpu.memory_space<vmem>>, vector<1x4x384xf32>
    %89 = vector.shape_cast %88 : vector<1x4x384xf32> to vector<4x384xf32>
    %c116 = arith.constant 116 : index
    %c0_100 = arith.constant 0 : index
    %90 = vector.load %arg7[%c116, %c0_100] : memref<200x384xf32, #tpu.memory_space<vmem>>, vector<4x384xf32>
    tpu.vector_store %arg7[%c116, %c0_100], %89 {strides = array<i32>} : memref<200x384xf32, #tpu.memory_space<vmem>>, vector<4x384xf32>,
    %c0_101 = arith.constant 0 : index
    %c0_102 = arith.constant 0 : index
    %c90 = arith.constant 90 : index
    %91 = vector.load %arg1[%c0_101, %c0_102, %c90] : memref<1x4x640xf32, #tpu.memory_space<vmem>>, vector<1x4x384xf32>
    %92 = vector.shape_cast %91 : vector<1x4x384xf32> to vector<4x384xf32>
    %c120 = arith.constant 120 : index
    %c0_103 = arith.constant 0 : index
    %93 = vector.load %arg7[%c120, %c0_103] : memref<200x384xf32, #tpu.memory_space<vmem>>, vector<4x384xf32>
    tpu.vector_store %arg7[%c120, %c0_103], %92 {strides = array<i32>} : memref<200x384xf32, #tpu.memory_space<vmem>>, vector<4x384xf32>,
    %c0_104 = arith.constant 0 : index
    %c0_105 = arith.constant 0 : index
    %c91 = arith.constant 91 : index
    %94 = vector.load %arg1[%c0_104, %c0_105, %c91] : memref<1x4x640xf32, #tpu.memory_space<vmem>>, vector<1x4x384xf32>
    %95 = vector.shape_cast %94 : vector<1x4x384xf32> to vector<4x384xf32>
    %c124 = arith.constant 124 : index
    %c0_106 = arith.constant 0 : index
    %96 = vector.load %arg7[%c124, %c0_106] : memref<200x384xf32, #tpu.memory_space<vmem>>, vector<4x384xf32>
    tpu.vector_store %arg7[%c124, %c0_106], %95 {strides = array<i32>} : memref<200x384xf32, #tpu.memory_space<vmem>>, vector<4x384xf32>,
    %c0_107 = arith.constant 0 : index
    %c0_108 = arith.constant 0 : index
    %c92_109 = arith.constant 92 : index
    %97 = vector.load %arg1[%c0_107, %c0_108, %c92_109] : memref<1x4x640xf32, #tpu.memory_space<vmem>>, vector<1x4x384xf32>
    %98 = vector.shape_cast %97 : vector<1x4x384xf32> to vector<4x384xf32>
    %c128 = arith.constant 128 : index
    %c0_110 = arith.constant 0 : index
    %99 = vector.load %arg7[%c128, %c0_110] : memref<200x384xf32, #tpu.memory_space<vmem>>, vector<4x384xf32>
    tpu.vector_store %arg7[%c128, %c0_110], %98 {strides = array<i32>} : memref<200x384xf32, #tpu.memory_space<vmem>>, vector<4x384xf32>,
    %c0_111 = arith.constant 0 : index
    %c0_112 = arith.constant 0 : index
    %c93 = arith.constant 93 : index
    %100 = vector.load %arg1[%c0_111, %c0_112, %c93] : memref<1x4x640xf32, #tpu.memory_space<vmem>>, vector<1x4x384xf32>
    %101 = vector.shape_cast %100 : vector<1x4x384xf32> to vector<4x384xf32>
    %c132 = arith.constant 132 : index
    %c0_113 = arith.constant 0 : index
    %102 = vector.load %arg7[%c132, %c0_113] : memref<200x384xf32, #tpu.memory_space<vmem>>, vector<4x384xf32>
    tpu.vector_store %arg7[%c132, %c0_113], %101 {strides = array<i32>} : memref<200x384xf32, #tpu.memory_space<vmem>>, vector<4x384xf32>,
    %c0_114 = arith.constant 0 : index
    %c0_115 = arith.constant 0 : index
    %c94 = arith.constant 94 : index
    %103 = vector.load %arg1[%c0_114, %c0_115, %c94] : memref<1x4x640xf32, #tpu.memory_space<vmem>>, vector<1x4x384xf32>
    %104 = vector.shape_cast %103 : vector<1x4x384xf32> to vector<4x384xf32>
    %c136 = arith.constant 136 : index
    %c0_116 = arith.constant 0 : index
    %105 = vector.load %arg7[%c136, %c0_116] : memref<200x384xf32, #tpu.memory_space<vmem>>, vector<4x384xf32>
    tpu.vector_store %arg7[%c136, %c0_116], %104 {strides = array<i32>} : memref<200x384xf32, #tpu.memory_space<vmem>>, vector<4x384xf32>,
    %c0_117 = arith.constant 0 : index
    %c0_118 = arith.constant 0 : index
    %c110 = arith.constant 110 : index
    %106 = vector.load %arg1[%c0_117, %c0_118, %c110] : memref<1x4x640xf32, #tpu.memory_space<vmem>>, vector<1x4x384xf32>
    %107 = vector.shape_cast %106 : vector<1x4x384xf32> to vector<4x384xf32>
    %c140 = arith.constant 140 : index
    %c0_119 = arith.constant 0 : index
    %108 = vector.load %arg7[%c140, %c0_119] : memref<200x384xf32, #tpu.memory_space<vmem>>, vector<4x384xf32>
    tpu.vector_store %arg7[%c140, %c0_119], %107 {strides = array<i32>} : memref<200x384xf32, #tpu.memory_space<vmem>>, vector<4x384xf32>,
    %c0_120 = arith.constant 0 : index
    %c0_121 = arith.constant 0 : index
    %c111 = arith.constant 111 : index
    %109 = vector.load %arg1[%c0_120, %c0_121, %c111] : memref<1x4x640xf32, #tpu.memory_space<vmem>>, vector<1x4x384xf32>
    %110 = vector.shape_cast %109 : vector<1x4x384xf32> to vector<4x384xf32>
    %c144 = arith.constant 144 : index
    %c0_122 = arith.constant 0 : index
    %111 = vector.load %arg7[%c144, %c0_122] : memref<200x384xf32, #tpu.memory_space<vmem>>, vector<4x384xf32>
    tpu.vector_store %arg7[%c144, %c0_122], %110 {strides = array<i32>} : memref<200x384xf32, #tpu.memory_space<vmem>>, vector<4x384xf32>,
    %c0_123 = arith.constant 0 : index
    %c0_124 = arith.constant 0 : index
    %c112_125 = arith.constant 112 : index
    %112 = vector.load %arg1[%c0_123, %c0_124, %c112_125] : memref<1x4x640xf32, #tpu.memory_space<vmem>>, vector<1x4x384xf32>
    %113 = vector.shape_cast %112 : vector<1x4x384xf32> to vector<4x384xf32>
    %c148 = arith.constant 148 : index
    %c0_126 = arith.constant 0 : index
    %114 = vector.load %arg7[%c148, %c0_126] : memref<200x384xf32, #tpu.memory_space<vmem>>, vector<4x384xf32>
    tpu.vector_store %arg7[%c148, %c0_126], %113 {strides = array<i32>} : memref<200x384xf32, #tpu.memory_space<vmem>>, vector<4x384xf32>,
    %c0_127 = arith.constant 0 : index
    %c0_128 = arith.constant 0 : index
    %c113 = arith.constant 113 : index
    %115 = vector.load %arg1[%c0_127, %c0_128, %c113] : memref<1x4x640xf32, #tpu.memory_space<vmem>>, vector<1x4x384xf32>
    %116 = vector.shape_cast %115 : vector<1x4x384xf32> to vector<4x384xf32>
    %c152 = arith.constant 152 : index
    %c0_129 = arith.constant 0 : index
    %117 = vector.load %arg7[%c152, %c0_129] : memref<200x384xf32, #tpu.memory_space<vmem>>, vector<4x384xf32>
    tpu.vector_store %arg7[%c152, %c0_129], %116 {strides = array<i32>} : memref<200x384xf32, #tpu.memory_space<vmem>>, vector<4x384xf32>,
    %c0_130 = arith.constant 0 : index
    %c0_131 = arith.constant 0 : index
    %c114 = arith.constant 114 : index
    %118 = vector.load %arg1[%c0_130, %c0_131, %c114] : memref<1x4x640xf32, #tpu.memory_space<vmem>>, vector<1x4x384xf32>
    %119 = vector.shape_cast %118 : vector<1x4x384xf32> to vector<4x384xf32>
    %c156 = arith.constant 156 : index
    %c0_132 = arith.constant 0 : index
    %120 = vector.load %arg7[%c156, %c0_132] : memref<200x384xf32, #tpu.memory_space<vmem>>, vector<4x384xf32>
    tpu.vector_store %arg7[%c156, %c0_132], %119 {strides = array<i32>} : memref<200x384xf32, #tpu.memory_space<vmem>>, vector<4x384xf32>,
    %c0_133 = arith.constant 0 : index
    %c0_134 = arith.constant 0 : index
    %c115 = arith.constant 115 : index
    %121 = vector.load %arg1[%c0_133, %c0_134, %c115] : memref<1x4x640xf32, #tpu.memory_space<vmem>>, vector<1x4x384xf32>
    %122 = vector.shape_cast %121 : vector<1x4x384xf32> to vector<4x384xf32>
    %c160 = arith.constant 160 : index
    %c0_135 = arith.constant 0 : index
    %123 = vector.load %arg7[%c160, %c0_135] : memref<200x384xf32, #tpu.memory_space<vmem>>, vector<4x384xf32>
    tpu.vector_store %arg7[%c160, %c0_135], %122 {strides = array<i32>} : memref<200x384xf32, #tpu.memory_space<vmem>>, vector<4x384xf32>,
    %c0_136 = arith.constant 0 : index
    %c0_137 = arith.constant 0 : index
    %c116_138 = arith.constant 116 : index
    %124 = vector.load %arg1[%c0_136, %c0_137, %c116_138] : memref<1x4x640xf32, #tpu.memory_space<vmem>>, vector<1x4x384xf32>
    %125 = vector.shape_cast %124 : vector<1x4x384xf32> to vector<4x384xf32>
    %c164 = arith.constant 164 : index
    %c0_139 = arith.constant 0 : index
    %126 = vector.load %arg7[%c164, %c0_139] : memref<200x384xf32, #tpu.memory_space<vmem>>, vector<4x384xf32>
    tpu.vector_store %arg7[%c164, %c0_139], %125 {strides = array<i32>} : memref<200x384xf32, #tpu.memory_space<vmem>>, vector<4x384xf32>,
    %c0_140 = arith.constant 0 : index
    %c0_141 = arith.constant 0 : index
    %c132_142 = arith.constant 132 : index
    %127 = vector.load %arg1[%c0_140, %c0_141, %c132_142] : memref<1x4x640xf32, #tpu.memory_space<vmem>>, vector<1x4x384xf32>
    %128 = vector.shape_cast %127 : vector<1x4x384xf32> to vector<4x384xf32>
    %c168 = arith.constant 168 : index
    %c0_143 = arith.constant 0 : index
    %129 = vector.load %arg7[%c168, %c0_143] : memref<200x384xf32, #tpu.memory_space<vmem>>, vector<4x384xf32>
    tpu.vector_store %arg7[%c168, %c0_143], %128 {strides = array<i32>} : memref<200x384xf32, #tpu.memory_space<vmem>>, vector<4x384xf32>,
    %c0_144 = arith.constant 0 : index
    %c0_145 = arith.constant 0 : index
    %c133 = arith.constant 133 : index
    %130 = vector.load %arg1[%c0_144, %c0_145, %c133] : memref<1x4x640xf32, #tpu.memory_space<vmem>>, vector<1x4x384xf32>
    %131 = vector.shape_cast %130 : vector<1x4x384xf32> to vector<4x384xf32>
    %c172 = arith.constant 172 : index
    %c0_146 = arith.constant 0 : index
    %132 = vector.load %arg7[%c172, %c0_146] : memref<200x384xf32, #tpu.memory_space<vmem>>, vector<4x384xf32>
    tpu.vector_store %arg7[%c172, %c0_146], %131 {strides = array<i32>} : memref<200x384xf32, #tpu.memory_space<vmem>>, vector<4x384xf32>,
    %c0_147 = arith.constant 0 : index
    %c0_148 = arith.constant 0 : index
    %c134 = arith.constant 134 : index
    %133 = vector.load %arg1[%c0_147, %c0_148, %c134] : memref<1x4x640xf32, #tpu.memory_space<vmem>>, vector<1x4x384xf32>
    %134 = vector.shape_cast %133 : vector<1x4x384xf32> to vector<4x384xf32>
    %c176 = arith.constant 176 : index
    %c0_149 = arith.constant 0 : index
    %135 = vector.load %arg7[%c176, %c0_149] : memref<200x384xf32, #tpu.memory_space<vmem>>, vector<4x384xf32>
    tpu.vector_store %arg7[%c176, %c0_149], %134 {strides = array<i32>} : memref<200x384xf32, #tpu.memory_space<vmem>>, vector<4x384xf32>,
    %c0_150 = arith.constant 0 : index
    %c0_151 = arith.constant 0 : index
    %c135 = arith.constant 135 : index
    %136 = vector.load %arg1[%c0_150, %c0_151, %c135] : memref<1x4x640xf32, #tpu.memory_space<vmem>>, vector<1x4x384xf32>
    %137 = vector.shape_cast %136 : vector<1x4x384xf32> to vector<4x384xf32>
    %c180 = arith.constant 180 : index
    %c0_152 = arith.constant 0 : index
    %138 = vector.load %arg7[%c180, %c0_152] : memref<200x384xf32, #tpu.memory_space<vmem>>, vector<4x384xf32>
    tpu.vector_store %arg7[%c180, %c0_152], %137 {strides = array<i32>} : memref<200x384xf32, #tpu.memory_space<vmem>>, vector<4x384xf32>,
    %c0_153 = arith.constant 0 : index
    %c0_154 = arith.constant 0 : index
    %c136_155 = arith.constant 136 : index
    %139 = vector.load %arg1[%c0_153, %c0_154, %c136_155] : memref<1x4x640xf32, #tpu.memory_space<vmem>>, vector<1x4x384xf32>
    %140 = vector.shape_cast %139 : vector<1x4x384xf32> to vector<4x384xf32>
    %c184 = arith.constant 184 : index
    %c0_156 = arith.constant 0 : index
    %141 = vector.load %arg7[%c184, %c0_156] : memref<200x384xf32, #tpu.memory_space<vmem>>, vector<4x384xf32>
    tpu.vector_store %arg7[%c184, %c0_156], %140 {strides = array<i32>} : memref<200x384xf32, #tpu.memory_space<vmem>>, vector<4x384xf32>,
    %c0_157 = arith.constant 0 : index
    %c0_158 = arith.constant 0 : index
    %c137 = arith.constant 137 : index
    %142 = vector.load %arg1[%c0_157, %c0_158, %c137] : memref<1x4x640xf32, #tpu.memory_space<vmem>>, vector<1x4x384xf32>
    %143 = vector.shape_cast %142 : vector<1x4x384xf32> to vector<4x384xf32>
    %c188 = arith.constant 188 : index
    %c0_159 = arith.constant 0 : index
    %144 = vector.load %arg7[%c188, %c0_159] : memref<200x384xf32, #tpu.memory_space<vmem>>, vector<4x384xf32>
    tpu.vector_store %arg7[%c188, %c0_159], %143 {strides = array<i32>} : memref<200x384xf32, #tpu.memory_space<vmem>>, vector<4x384xf32>,
    %c0_160 = arith.constant 0 : index
    %c0_161 = arith.constant 0 : index
    %c138 = arith.constant 138 : index
    %145 = vector.load %arg1[%c0_160, %c0_161, %c138] : memref<1x4x640xf32, #tpu.memory_space<vmem>>, vector<1x4x384xf32>
    %146 = vector.shape_cast %145 : vector<1x4x384xf32> to vector<4x384xf32>
    %c192 = arith.constant 192 : index
    %c0_162 = arith.constant 0 : index
    %147 = vector.load %arg7[%c192, %c0_162] : memref<200x384xf32, #tpu.memory_space<vmem>>, vector<4x384xf32>
    tpu.vector_store %arg7[%c192, %c0_162], %146 {strides = array<i32>} : memref<200x384xf32, #tpu.memory_space<vmem>>, vector<4x384xf32>,
    %cst = arith.constant 0.000000e+00 : f32
    %148 = vector.broadcast %cst : f32 to vector<4x384xf32>
    %c196 = arith.constant 196 : index
    %c0_163 = arith.constant 0 : index
    %149 = vector.load %arg7[%c196, %c0_163] : memref<200x384xf32, #tpu.memory_space<vmem>>, vector<4x384xf32>
    tpu.vector_store %arg7[%c196, %c0_163], %148 {strides = array<i32>} : memref<200x384xf32, #tpu.memory_space<vmem>>, vector<4x384xf32>,
    %c0_164 = arith.constant 0 : index
    %c0_165 = arith.constant 0 : index
    %150 = vector.load %arg2[%c0_164, %c0_165] : memref<8x200xf32, #tpu.memory_space<vmem>>, vector<8x200xf32>
    %c0_166 = arith.constant 0 : index
    %c0_167 = arith.constant 0 : index
    %151 = vector.load %arg7[%c0_166, %c0_167] : memref<200x384xf32, #tpu.memory_space<vmem>>, vector<200x384xf32>
    %cst_168 = arith.constant dense<0.000000e+00> : vector<8x384xf32>
    %152 = tpu.matmul %150, %151, %cst_168 {dimension_numbers = #tpu.dot_dimension_numbers<[1], [0], [0], [1], [0, 0, 1, 1], [], []>} : vector<8x200xf32>, vector<200x384xf32>, vector<8x384xf32> -> vector<8x384xf32>
    %cst_169 = arith.constant 0.000000e+00 : f32
    %153 = vector.broadcast %cst_169 : f32 to vector<8x384xf32>
    %154 = arith.cmpf oge, %152, %153 : vector<8x384xf32>
    %cst_170 = arith.constant 0.00999999977 : f32
    %155 = vector.broadcast %cst_170 : f32 to vector<8x384xf32>
    %156 = arith.mulf %155, %152 : vector<8x384xf32>
    %157 = arith.select %154, %152, %156 : vector<8x384xi1>, vector<8x384xf32>
    %158 = vector.broadcast %0 : vector<1x384xf32> to vector<8x384xf32>
    %159 = arith.mulf %157, %158 : vector<8x384xf32>
    %cst_171 = arith.constant 0.000000e+00 : f32
    %160 = vector.broadcast %cst_171 : f32 to vector<8x69xf32>
    %c0_172 = arith.constant 0 : index
    %c0_173 = arith.constant 0 : index
    %161 = vector.load %arg6[%c0_172, %c0_173] : memref<8x640xf32, #tpu.memory_space<vmem>>, vector<8x69xf32>
    tpu.vector_store %arg6[%c0_172, %c0_173], %160 {strides = array<i32>} : memref<8x640xf32, #tpu.memory_space<vmem>>, vector<8x69xf32>,
    %cst_174 = arith.constant 0.000000e+00 : f32
    %162 = vector.broadcast %cst_174 : f32 to vector<8x187xf32>
    %c0_175 = arith.constant 0 : index
    %c453 = arith.constant 453 : index
    %163 = vector.load %arg6[%c0_175, %c453] : memref<8x640xf32, #tpu.memory_space<vmem>>, vector<8x187xf32>
    tpu.vector_store %arg6[%c0_175, %c453], %162 {strides = array<i32>} : memref<8x640xf32, #tpu.memory_space<vmem>>, vector<8x187xf32>,
    %c0_176 = arith.constant 0 : index
    %c69_177 = arith.constant 69 : index
    %164 = vector.load %arg6[%c0_176, %c69_177] : memref<8x640xf32, #tpu.memory_space<vmem>>, vector<8x384xf32>
    tpu.vector_store %arg6[%c0_176, %c69_177], %159 {strides = array<i32>} : memref<8x640xf32, #tpu.memory_space<vmem>>, vector<8x384xf32>,
    %c0_178 = arith.constant 0 : index
    %c0_179 = arith.constant 0 : index
    %165 = vector.load %arg6[%c0_178, %c0_179] : memref<8x640xf32, #tpu.memory_space<vmem>>, vector<8x384xf32>
    %c0_180 = arith.constant 0 : index
    %c0_181 = arith.constant 0 : index
    %166 = vector.load %arg8[%c0_180, %c0_181] : memref<392x384xf32, #tpu.memory_space<vmem>>, vector<8x384xf32>
    tpu.vector_store %arg8[%c0_180, %c0_181], %165 {strides = array<i32>} : memref<392x384xf32, #tpu.memory_space<vmem>>, vector<8x384xf32>,
    %c0_182 = arith.constant 0 : index
    %c1_183 = arith.constant 1 : index
    %167 = vector.load %arg6[%c0_182, %c1_183] : memref<8x640xf32, #tpu.memory_space<vmem>>, vector<8x384xf32>
    %c8_184 = arith.constant 8 : index
    %c0_185 = arith.constant 0 : index
    %168 = vector.load %arg8[%c8_184, %c0_185] : memref<392x384xf32, #tpu.memory_space<vmem>>, vector<8x384xf32>
    tpu.vector_store %arg8[%c8_184, %c0_185], %167 {strides = array<i32>} : memref<392x384xf32, #tpu.memory_space<vmem>>, vector<8x384xf32>,
    %c0_186 = arith.constant 0 : index
    %c2_187 = arith.constant 2 : index
    %169 = vector.load %arg6[%c0_186, %c2_187] : memref<8x640xf32, #tpu.memory_space<vmem>>, vector<8x384xf32>
    %c16_188 = arith.constant 16 : index
    %c0_189 = arith.constant 0 : index
    %170 = vector.load %arg8[%c16_188, %c0_189] : memref<392x384xf32, #tpu.memory_space<vmem>>, vector<8x384xf32>
    tpu.vector_store %arg8[%c16_188, %c0_189], %169 {strides = array<i32>} : memref<392x384xf32, #tpu.memory_space<vmem>>, vector<8x384xf32>,
    %c0_190 = arith.constant 0 : index
    %c3_191 = arith.constant 3 : index
    %171 = vector.load %arg6[%c0_190, %c3_191] : memref<8x640xf32, #tpu.memory_space<vmem>>, vector<8x384xf32>
    %c24_192 = arith.constant 24 : index
    %c0_193 = arith.constant 0 : index
    %172 = vector.load %arg8[%c24_192, %c0_193] : memref<392x384xf32, #tpu.memory_space<vmem>>, vector<8x384xf32>
    tpu.vector_store %arg8[%c24_192, %c0_193], %171 {strides = array<i32>} : memref<392x384xf32, #tpu.memory_space<vmem>>, vector<8x384xf32>,
    %c0_194 = arith.constant 0 : index
    %c4_195 = arith.constant 4 : index
    %173 = vector.load %arg6[%c0_194, %c4_195] : memref<8x640xf32, #tpu.memory_space<vmem>>, vector<8x384xf32>
    %c32_196 = arith.constant 32 : index
    %c0_197 = arith.constant 0 : index
    %174 = vector.load %arg8[%c32_196, %c0_197] : memref<392x384xf32, #tpu.memory_space<vmem>>, vector<8x384xf32>
    tpu.vector_store %arg8[%c32_196, %c0_197], %173 {strides = array<i32>} : memref<392x384xf32, #tpu.memory_space<vmem>>, vector<8x384xf32>,
    %c0_198 = arith.constant 0 : index
    %c5_199 = arith.constant 5 : index
    %175 = vector.load %arg6[%c0_198, %c5_199] : memref<8x640xf32, #tpu.memory_space<vmem>>, vector<8x384xf32>
    %c40_200 = arith.constant 40 : index
    %c0_201 = arith.constant 0 : index
    %176 = vector.load %arg8[%c40_200, %c0_201] : memref<392x384xf32, #tpu.memory_space<vmem>>, vector<8x384xf32>
    tpu.vector_store %arg8[%c40_200, %c0_201], %175 {strides = array<i32>} : memref<392x384xf32, #tpu.memory_space<vmem>>, vector<8x384xf32>,
    %c0_202 = arith.constant 0 : index
    %c6_203 = arith.constant 6 : index
    %177 = vector.load %arg6[%c0_202, %c6_203] : memref<8x640xf32, #tpu.memory_space<vmem>>, vector<8x384xf32>
    %c48_204 = arith.constant 48 : index
    %c0_205 = arith.constant 0 : index
    %178 = vector.load %arg8[%c48_204, %c0_205] : memref<392x384xf32, #tpu.memory_space<vmem>>, vector<8x384xf32>
    tpu.vector_store %arg8[%c48_204, %c0_205], %177 {strides = array<i32>} : memref<392x384xf32, #tpu.memory_space<vmem>>, vector<8x384xf32>,
    %c0_206 = arith.constant 0 : index
    %c22_207 = arith.constant 22 : index
    %179 = vector.load %arg6[%c0_206, %c22_207] : memref<8x640xf32, #tpu.memory_space<vmem>>, vector<8x384xf32>
    %c56_208 = arith.constant 56 : index
    %c0_209 = arith.constant 0 : index
    %180 = vector.load %arg8[%c56_208, %c0_209] : memref<392x384xf32, #tpu.memory_space<vmem>>, vector<8x384xf32>
    tpu.vector_store %arg8[%c56_208, %c0_209], %179 {strides = array<i32>} : memref<392x384xf32, #tpu.memory_space<vmem>>, vector<8x384xf32>,
    %c0_210 = arith.constant 0 : index
    %c23_211 = arith.constant 23 : index
    %181 = vector.load %arg6[%c0_210, %c23_211] : memref<8x640xf32, #tpu.memory_space<vmem>>, vector<8x384xf32>
    %c64_212 = arith.constant 64 : index
    %c0_213 = arith.constant 0 : index
    %182 = vector.load %arg8[%c64_212, %c0_213] : memref<392x384xf32, #tpu.memory_space<vmem>>, vector<8x384xf32>
    tpu.vector_store %arg8[%c64_212, %c0_213], %181 {strides = array<i32>} : memref<392x384xf32, #tpu.memory_space<vmem>>, vector<8x384xf32>,
    %c0_214 = arith.constant 0 : index
    %c24_215 = arith.constant 24 : index
    %183 = vector.load %arg6[%c0_214, %c24_215] : memref<8x640xf32, #tpu.memory_space<vmem>>, vector<8x384xf32>
    %c72_216 = arith.constant 72 : index
    %c0_217 = arith.constant 0 : index
    %184 = vector.load %arg8[%c72_216, %c0_217] : memref<392x384xf32, #tpu.memory_space<vmem>>, vector<8x384xf32>
    tpu.vector_store %arg8[%c72_216, %c0_217], %183 {strides = array<i32>} : memref<392x384xf32, #tpu.memory_space<vmem>>, vector<8x384xf32>,
    %c0_218 = arith.constant 0 : index
    %c25_219 = arith.constant 25 : index
    %185 = vector.load %arg6[%c0_218, %c25_219] : memref<8x640xf32, #tpu.memory_space<vmem>>, vector<8x384xf32>
    %c80_220 = arith.constant 80 : index
    %c0_221 = arith.constant 0 : index
    %186 = vector.load %arg8[%c80_220, %c0_221] : memref<392x384xf32, #tpu.memory_space<vmem>>, vector<8x384xf32>
    tpu.vector_store %arg8[%c80_220, %c0_221], %185 {strides = array<i32>} : memref<392x384xf32, #tpu.memory_space<vmem>>, vector<8x384xf32>,
    %c0_222 = arith.constant 0 : index
    %c26_223 = arith.constant 26 : index
    %187 = vector.load %arg6[%c0_222, %c26_223] : memref<8x640xf32, #tpu.memory_space<vmem>>, vector<8x384xf32>
    %c88_224 = arith.constant 88 : index
    %c0_225 = arith.constant 0 : index
    %188 = vector.load %arg8[%c88_224, %c0_225] : memref<392x384xf32, #tpu.memory_space<vmem>>, vector<8x384xf32>
    tpu.vector_store %arg8[%c88_224, %c0_225], %187 {strides = array<i32>} : memref<392x384xf32, #tpu.memory_space<vmem>>, vector<8x384xf32>,
    %c0_226 = arith.constant 0 : index
    %c27_227 = arith.constant 27 : index
    %189 = vector.load %arg6[%c0_226, %c27_227] : memref<8x640xf32, #tpu.memory_space<vmem>>, vector<8x384xf32>
    %c96_228 = arith.constant 96 : index
    %c0_229 = arith.constant 0 : index
    %190 = vector.load %arg8[%c96_228, %c0_229] : memref<392x384xf32, #tpu.memory_space<vmem>>, vector<8x384xf32>
    tpu.vector_store %arg8[%c96_228, %c0_229], %189 {strides = array<i32>} : memref<392x384xf32, #tpu.memory_space<vmem>>, vector<8x384xf32>,
    %c0_230 = arith.constant 0 : index
    %c28_231 = arith.constant 28 : index
    %191 = vector.load %arg6[%c0_230, %c28_231] : memref<8x640xf32, #tpu.memory_space<vmem>>, vector<8x384xf32>
    %c104_232 = arith.constant 104 : index
    %c0_233 = arith.constant 0 : index
    %192 = vector.load %arg8[%c104_232, %c0_233] : memref<392x384xf32, #tpu.memory_space<vmem>>, vector<8x384xf32>
    tpu.vector_store %arg8[%c104_232, %c0_233], %191 {strides = array<i32>} : memref<392x384xf32, #tpu.memory_space<vmem>>, vector<8x384xf32>,
    %c0_234 = arith.constant 0 : index
    %c44_235 = arith.constant 44 : index
    %193 = vector.load %arg6[%c0_234, %c44_235] : memref<8x640xf32, #tpu.memory_space<vmem>>, vector<8x384xf32>
    %c112_236 = arith.constant 112 : index
    %c0_237 = arith.constant 0 : index
    %194 = vector.load %arg8[%c112_236, %c0_237] : memref<392x384xf32, #tpu.memory_space<vmem>>, vector<8x384xf32>
    tpu.vector_store %arg8[%c112_236, %c0_237], %193 {strides = array<i32>} : memref<392x384xf32, #tpu.memory_space<vmem>>, vector<8x384xf32>,
    %c0_238 = arith.constant 0 : index
    %c45_239 = arith.constant 45 : index
    %195 = vector.load %arg6[%c0_238, %c45_239] : memref<8x640xf32, #tpu.memory_space<vmem>>, vector<8x384xf32>
    %c120_240 = arith.constant 120 : index
    %c0_241 = arith.constant 0 : index
    %196 = vector.load %arg8[%c120_240, %c0_241] : memref<392x384xf32, #tpu.memory_space<vmem>>, vector<8x384xf32>
    tpu.vector_store %arg8[%c120_240, %c0_241], %195 {strides = array<i32>} : memref<392x384xf32, #tpu.memory_space<vmem>>, vector<8x384xf32>,
    %c0_242 = arith.constant 0 : index
    %c46_243 = arith.constant 46 : index
    %197 = vector.load %arg6[%c0_242, %c46_243] : memref<8x640xf32, #tpu.memory_space<vmem>>, vector<8x384xf32>
    %c128_244 = arith.constant 128 : index
    %c0_245 = arith.constant 0 : index
    %198 = vector.load %arg8[%c128_244, %c0_245] : memref<392x384xf32, #tpu.memory_space<vmem>>, vector<8x384xf32>
    tpu.vector_store %arg8[%c128_244, %c0_245], %197 {strides = array<i32>} : memref<392x384xf32, #tpu.memory_space<vmem>>, vector<8x384xf32>,
    %c0_246 = arith.constant 0 : index
    %c47_247 = arith.constant 47 : index
    %199 = vector.load %arg6[%c0_246, %c47_247] : memref<8x640xf32, #tpu.memory_space<vmem>>, vector<8x384xf32>
    %c136_248 = arith.constant 136 : index
    %c0_249 = arith.constant 0 : index
    %200 = vector.load %arg8[%c136_248, %c0_249] : memref<392x384xf32, #tpu.memory_space<vmem>>, vector<8x384xf32>
    tpu.vector_store %arg8[%c136_248, %c0_249], %199 {strides = array<i32>} : memref<392x384xf32, #tpu.memory_space<vmem>>, vector<8x384xf32>,
    %c0_250 = arith.constant 0 : index
    %c48_251 = arith.constant 48 : index
    %201 = vector.load %arg6[%c0_250, %c48_251] : memref<8x640xf32, #tpu.memory_space<vmem>>, vector<8x384xf32>
    %c144_252 = arith.constant 144 : index
    %c0_253 = arith.constant 0 : index
    %202 = vector.load %arg8[%c144_252, %c0_253] : memref<392x384xf32, #tpu.memory_space<vmem>>, vector<8x384xf32>
    tpu.vector_store %arg8[%c144_252, %c0_253], %201 {strides = array<i32>} : memref<392x384xf32, #tpu.memory_space<vmem>>, vector<8x384xf32>,
    %c0_254 = arith.constant 0 : index
    %c49_255 = arith.constant 49 : index
    %203 = vector.load %arg6[%c0_254, %c49_255] : memref<8x640xf32, #tpu.memory_space<vmem>>, vector<8x384xf32>
    %c152_256 = arith.constant 152 : index
    %c0_257 = arith.constant 0 : index
    %204 = vector.load %arg8[%c152_256, %c0_257] : memref<392x384xf32, #tpu.memory_space<vmem>>, vector<8x384xf32>
    tpu.vector_store %arg8[%c152_256, %c0_257], %203 {strides = array<i32>} : memref<392x384xf32, #tpu.memory_space<vmem>>, vector<8x384xf32>,
    %c0_258 = arith.constant 0 : index
    %c50_259 = arith.constant 50 : index
    %205 = vector.load %arg6[%c0_258, %c50_259] : memref<8x640xf32, #tpu.memory_space<vmem>>, vector<8x384xf32>
    %c160_260 = arith.constant 160 : index
    %c0_261 = arith.constant 0 : index
    %206 = vector.load %arg8[%c160_260, %c0_261] : memref<392x384xf32, #tpu.memory_space<vmem>>, vector<8x384xf32>
    tpu.vector_store %arg8[%c160_260, %c0_261], %205 {strides = array<i32>} : memref<392x384xf32, #tpu.memory_space<vmem>>, vector<8x384xf32>,
    %c0_262 = arith.constant 0 : index
    %c66_263 = arith.constant 66 : index
    %207 = vector.load %arg6[%c0_262, %c66_263] : memref<8x640xf32, #tpu.memory_space<vmem>>, vector<8x384xf32>
    %c168_264 = arith.constant 168 : index
    %c0_265 = arith.constant 0 : index
    %208 = vector.load %arg8[%c168_264, %c0_265] : memref<392x384xf32, #tpu.memory_space<vmem>>, vector<8x384xf32>
    tpu.vector_store %arg8[%c168_264, %c0_265], %207 {strides = array<i32>} : memref<392x384xf32, #tpu.memory_space<vmem>>, vector<8x384xf32>,
    %c0_266 = arith.constant 0 : index
    %c67_267 = arith.constant 67 : index
    %209 = vector.load %arg6[%c0_266, %c67_267] : memref<8x640xf32, #tpu.memory_space<vmem>>, vector<8x384xf32>
    %c176_268 = arith.constant 176 : index
    %c0_269 = arith.constant 0 : index
    %210 = vector.load %arg8[%c176_268, %c0_269] : memref<392x384xf32, #tpu.memory_space<vmem>>, vector<8x384xf32>
    tpu.vector_store %arg8[%c176_268, %c0_269], %209 {strides = array<i32>} : memref<392x384xf32, #tpu.memory_space<vmem>>, vector<8x384xf32>,
    %c0_270 = arith.constant 0 : index
    %c68_271 = arith.constant 68 : index
    %211 = vector.load %arg6[%c0_270, %c68_271] : memref<8x640xf32, #tpu.memory_space<vmem>>, vector<8x384xf32>
    %c184_272 = arith.constant 184 : index
    %c0_273 = arith.constant 0 : index
    %212 = vector.load %arg8[%c184_272, %c0_273] : memref<392x384xf32, #tpu.memory_space<vmem>>, vector<8x384xf32>
    tpu.vector_store %arg8[%c184_272, %c0_273], %211 {strides = array<i32>} : memref<392x384xf32, #tpu.memory_space<vmem>>, vector<8x384xf32>,
    %c0_274 = arith.constant 0 : index
    %c69_275 = arith.constant 69 : index
    %213 = vector.load %arg6[%c0_274, %c69_275] : memref<8x640xf32, #tpu.memory_space<vmem>>, vector<8x384xf32>
    %c192_276 = arith.constant 192 : index
    %c0_277 = arith.constant 0 : index
    %214 = vector.load %arg8[%c192_276, %c0_277] : memref<392x384xf32, #tpu.memory_space<vmem>>, vector<8x384xf32>
    tpu.vector_store %arg8[%c192_276, %c0_277], %213 {strides = array<i32>} : memref<392x384xf32, #tpu.memory_space<vmem>>, vector<8x384xf32>,
    %c0_278 = arith.constant 0 : index
    %c70_279 = arith.constant 70 : index
    %215 = vector.load %arg6[%c0_278, %c70_279] : memref<8x640xf32, #tpu.memory_space<vmem>>, vector<8x384xf32>
    %c200 = arith.constant 200 : index
    %c0_280 = arith.constant 0 : index
    %216 = vector.load %arg8[%c200, %c0_280] : memref<392x384xf32, #tpu.memory_space<vmem>>, vector<8x384xf32>
    tpu.vector_store %arg8[%c200, %c0_280], %215 {strides = array<i32>} : memref<392x384xf32, #tpu.memory_space<vmem>>, vector<8x384xf32>,
    %c0_281 = arith.constant 0 : index
    %c71_282 = arith.constant 71 : index
    %217 = vector.load %arg6[%c0_281, %c71_282] : memref<8x640xf32, #tpu.memory_space<vmem>>, vector<8x384xf32>
    %c208 = arith.constant 208 : index
    %c0_283 = arith.constant 0 : index
    %218 = vector.load %arg8[%c208, %c0_283] : memref<392x384xf32, #tpu.memory_space<vmem>>, vector<8x384xf32>
    tpu.vector_store %arg8[%c208, %c0_283], %217 {strides = array<i32>} : memref<392x384xf32, #tpu.memory_space<vmem>>, vector<8x384xf32>,
    %c0_284 = arith.constant 0 : index
    %c72_285 = arith.constant 72 : index
    %219 = vector.load %arg6[%c0_284, %c72_285] : memref<8x640xf32, #tpu.memory_space<vmem>>, vector<8x384xf32>
    %c216 = arith.constant 216 : index
    %c0_286 = arith.constant 0 : index
    %220 = vector.load %arg8[%c216, %c0_286] : memref<392x384xf32, #tpu.memory_space<vmem>>, vector<8x384xf32>
    tpu.vector_store %arg8[%c216, %c0_286], %219 {strides = array<i32>} : memref<392x384xf32, #tpu.memory_space<vmem>>, vector<8x384xf32>,
    %c0_287 = arith.constant 0 : index
    %c88_288 = arith.constant 88 : index
    %221 = vector.load %arg6[%c0_287, %c88_288] : memref<8x640xf32, #tpu.memory_space<vmem>>, vector<8x384xf32>
    %c224 = arith.constant 224 : index
    %c0_289 = arith.constant 0 : index
    %222 = vector.load %arg8[%c224, %c0_289] : memref<392x384xf32, #tpu.memory_space<vmem>>, vector<8x384xf32>
    tpu.vector_store %arg8[%c224, %c0_289], %221 {strides = array<i32>} : memref<392x384xf32, #tpu.memory_space<vmem>>, vector<8x384xf32>,
    %c0_290 = arith.constant 0 : index
    %c89_291 = arith.constant 89 : index
    %223 = vector.load %arg6[%c0_290, %c89_291] : memref<8x640xf32, #tpu.memory_space<vmem>>, vector<8x384xf32>
    %c232 = arith.constant 232 : index
    %c0_292 = arith.constant 0 : index
    %224 = vector.load %arg8[%c232, %c0_292] : memref<392x384xf32, #tpu.memory_space<vmem>>, vector<8x384xf32>
    tpu.vector_store %arg8[%c232, %c0_292], %223 {strides = array<i32>} : memref<392x384xf32, #tpu.memory_space<vmem>>, vector<8x384xf32>,
    %c0_293 = arith.constant 0 : index
    %c90_294 = arith.constant 90 : index
    %225 = vector.load %arg6[%c0_293, %c90_294] : memref<8x640xf32, #tpu.memory_space<vmem>>, vector<8x384xf32>
    %c240 = arith.constant 240 : index
    %c0_295 = arith.constant 0 : index
    %226 = vector.load %arg8[%c240, %c0_295] : memref<392x384xf32, #tpu.memory_space<vmem>>, vector<8x384xf32>
    tpu.vector_store %arg8[%c240, %c0_295], %225 {strides = array<i32>} : memref<392x384xf32, #tpu.memory_space<vmem>>, vector<8x384xf32>,
    %c0_296 = arith.constant 0 : index
    %c91_297 = arith.constant 91 : index
    %227 = vector.load %arg6[%c0_296, %c91_297] : memref<8x640xf32, #tpu.memory_space<vmem>>, vector<8x384xf32>
    %c248 = arith.constant 248 : index
    %c0_298 = arith.constant 0 : index
    %228 = vector.load %arg8[%c248, %c0_298] : memref<392x384xf32, #tpu.memory_space<vmem>>, vector<8x384xf32>
    tpu.vector_store %arg8[%c248, %c0_298], %227 {strides = array<i32>} : memref<392x384xf32, #tpu.memory_space<vmem>>, vector<8x384xf32>,
    %c0_299 = arith.constant 0 : index
    %c92_300 = arith.constant 92 : index
    %229 = vector.load %arg6[%c0_299, %c92_300] : memref<8x640xf32, #tpu.memory_space<vmem>>, vector<8x384xf32>
    %c256 = arith.constant 256 : index
    %c0_301 = arith.constant 0 : index
    %230 = vector.load %arg8[%c256, %c0_301] : memref<392x384xf32, #tpu.memory_space<vmem>>, vector<8x384xf32>
    tpu.vector_store %arg8[%c256, %c0_301], %229 {strides = array<i32>} : memref<392x384xf32, #tpu.memory_space<vmem>>, vector<8x384xf32>,
    %c0_302 = arith.constant 0 : index
    %c93_303 = arith.constant 93 : index
    %231 = vector.load %arg6[%c0_302, %c93_303] : memref<8x640xf32, #tpu.memory_space<vmem>>, vector<8x384xf32>
    %c264 = arith.constant 264 : index
    %c0_304 = arith.constant 0 : index
    %232 = vector.load %arg8[%c264, %c0_304] : memref<392x384xf32, #tpu.memory_space<vmem>>, vector<8x384xf32>
    tpu.vector_store %arg8[%c264, %c0_304], %231 {strides = array<i32>} : memref<392x384xf32, #tpu.memory_space<vmem>>, vector<8x384xf32>,
    %c0_305 = arith.constant 0 : index
    %c94_306 = arith.constant 94 : index
    %233 = vector.load %arg6[%c0_305, %c94_306] : memref<8x640xf32, #tpu.memory_space<vmem>>, vector<8x384xf32>
    %c272 = arith.constant 272 : index
    %c0_307 = arith.constant 0 : index
    %234 = vector.load %arg8[%c272, %c0_307] : memref<392x384xf32, #tpu.memory_space<vmem>>, vector<8x384xf32>
    tpu.vector_store %arg8[%c272, %c0_307], %233 {strides = array<i32>} : memref<392x384xf32, #tpu.memory_space<vmem>>, vector<8x384xf32>,
    %c0_308 = arith.constant 0 : index
    %c110_309 = arith.constant 110 : index
    %235 = vector.load %arg6[%c0_308, %c110_309] : memref<8x640xf32, #tpu.memory_space<vmem>>, vector<8x384xf32>
    %c280 = arith.constant 280 : index
    %c0_310 = arith.constant 0 : index
    %236 = vector.load %arg8[%c280, %c0_310] : memref<392x384xf32, #tpu.memory_space<vmem>>, vector<8x384xf32>
    tpu.vector_store %arg8[%c280, %c0_310], %235 {strides = array<i32>} : memref<392x384xf32, #tpu.memory_space<vmem>>, vector<8x384xf32>,
    %c0_311 = arith.constant 0 : index
    %c111_312 = arith.constant 111 : index
    %237 = vector.load %arg6[%c0_311, %c111_312] : memref<8x640xf32, #tpu.memory_space<vmem>>, vector<8x384xf32>
    %c288 = arith.constant 288 : index
    %c0_313 = arith.constant 0 : index
    %238 = vector.load %arg8[%c288, %c0_313] : memref<392x384xf32, #tpu.memory_space<vmem>>, vector<8x384xf32>
    tpu.vector_store %arg8[%c288, %c0_313], %237 {strides = array<i32>} : memref<392x384xf32, #tpu.memory_space<vmem>>, vector<8x384xf32>,
    %c0_314 = arith.constant 0 : index
    %c112_315 = arith.constant 112 : index
    %239 = vector.load %arg6[%c0_314, %c112_315] : memref<8x640xf32, #tpu.memory_space<vmem>>, vector<8x384xf32>
    %c296 = arith.constant 296 : index
    %c0_316 = arith.constant 0 : index
    %240 = vector.load %arg8[%c296, %c0_316] : memref<392x384xf32, #tpu.memory_space<vmem>>, vector<8x384xf32>
    tpu.vector_store %arg8[%c296, %c0_316], %239 {strides = array<i32>} : memref<392x384xf32, #tpu.memory_space<vmem>>, vector<8x384xf32>,
    %c0_317 = arith.constant 0 : index
    %c113_318 = arith.constant 113 : index
    %241 = vector.load %arg6[%c0_317, %c113_318] : memref<8x640xf32, #tpu.memory_space<vmem>>, vector<8x384xf32>
    %c304 = arith.constant 304 : index
    %c0_319 = arith.constant 0 : index
    %242 = vector.load %arg8[%c304, %c0_319] : memref<392x384xf32, #tpu.memory_space<vmem>>, vector<8x384xf32>
    tpu.vector_store %arg8[%c304, %c0_319], %241 {strides = array<i32>} : memref<392x384xf32, #tpu.memory_space<vmem>>, vector<8x384xf32>,
    %c0_320 = arith.constant 0 : index
    %c114_321 = arith.constant 114 : index
    %243 = vector.load %arg6[%c0_320, %c114_321] : memref<8x640xf32, #tpu.memory_space<vmem>>, vector<8x384xf32>
    %c312 = arith.constant 312 : index
    %c0_322 = arith.constant 0 : index
    %244 = vector.load %arg8[%c312, %c0_322] : memref<392x384xf32, #tpu.memory_space<vmem>>, vector<8x384xf32>
    tpu.vector_store %arg8[%c312, %c0_322], %243 {strides = array<i32>} : memref<392x384xf32, #tpu.memory_space<vmem>>, vector<8x384xf32>,
    %c0_323 = arith.constant 0 : index
    %c115_324 = arith.constant 115 : index
    %245 = vector.load %arg6[%c0_323, %c115_324] : memref<8x640xf32, #tpu.memory_space<vmem>>, vector<8x384xf32>
    %c320 = arith.constant 320 : index
    %c0_325 = arith.constant 0 : index
    %246 = vector.load %arg8[%c320, %c0_325] : memref<392x384xf32, #tpu.memory_space<vmem>>, vector<8x384xf32>
    tpu.vector_store %arg8[%c320, %c0_325], %245 {strides = array<i32>} : memref<392x384xf32, #tpu.memory_space<vmem>>, vector<8x384xf32>,
    %c0_326 = arith.constant 0 : index
    %c116_327 = arith.constant 116 : index
    %247 = vector.load %arg6[%c0_326, %c116_327] : memref<8x640xf32, #tpu.memory_space<vmem>>, vector<8x384xf32>
    %c328 = arith.constant 328 : index
    %c0_328 = arith.constant 0 : index
    %248 = vector.load %arg8[%c328, %c0_328] : memref<392x384xf32, #tpu.memory_space<vmem>>, vector<8x384xf32>
    tpu.vector_store %arg8[%c328, %c0_328], %247 {strides = array<i32>} : memref<392x384xf32, #tpu.memory_space<vmem>>, vector<8x384xf32>,
    %c0_329 = arith.constant 0 : index
    %c132_330 = arith.constant 132 : index
    %249 = vector.load %arg6[%c0_329, %c132_330] : memref<8x640xf32, #tpu.memory_space<vmem>>, vector<8x384xf32>
    %c336 = arith.constant 336 : index
    %c0_331 = arith.constant 0 : index
    %250 = vector.load %arg8[%c336, %c0_331] : memref<392x384xf32, #tpu.memory_space<vmem>>, vector<8x384xf32>
    tpu.vector_store %arg8[%c336, %c0_331], %249 {strides = array<i32>} : memref<392x384xf32, #tpu.memory_space<vmem>>, vector<8x384xf32>,
    %c0_332 = arith.constant 0 : index
    %c133_333 = arith.constant 133 : index
    %251 = vector.load %arg6[%c0_332, %c133_333] : memref<8x640xf32, #tpu.memory_space<vmem>>, vector<8x384xf32>
    %c344 = arith.constant 344 : index
    %c0_334 = arith.constant 0 : index
    %252 = vector.load %arg8[%c344, %c0_334] : memref<392x384xf32, #tpu.memory_space<vmem>>, vector<8x384xf32>
    tpu.vector_store %arg8[%c344, %c0_334], %251 {strides = array<i32>} : memref<392x384xf32, #tpu.memory_space<vmem>>, vector<8x384xf32>,
    %c0_335 = arith.constant 0 : index
    %c134_336 = arith.constant 134 : index
    %253 = vector.load %arg6[%c0_335, %c134_336] : memref<8x640xf32, #tpu.memory_space<vmem>>, vector<8x384xf32>
    %c352 = arith.constant 352 : index
    %c0_337 = arith.constant 0 : index
    %254 = vector.load %arg8[%c352, %c0_337] : memref<392x384xf32, #tpu.memory_space<vmem>>, vector<8x384xf32>
    tpu.vector_store %arg8[%c352, %c0_337], %253 {strides = array<i32>} : memref<392x384xf32, #tpu.memory_space<vmem>>, vector<8x384xf32>,
    %c0_338 = arith.constant 0 : index
    %c135_339 = arith.constant 135 : index
    %255 = vector.load %arg6[%c0_338, %c135_339] : memref<8x640xf32, #tpu.memory_space<vmem>>, vector<8x384xf32>
    %c360 = arith.constant 360 : index
    %c0_340 = arith.constant 0 : index
    %256 = vector.load %arg8[%c360, %c0_340] : memref<392x384xf32, #tpu.memory_space<vmem>>, vector<8x384xf32>
    tpu.vector_store %arg8[%c360, %c0_340], %255 {strides = array<i32>} : memref<392x384xf32, #tpu.memory_space<vmem>>, vector<8x384xf32>,
    %c0_341 = arith.constant 0 : index
    %c136_342 = arith.constant 136 : index
    %257 = vector.load %arg6[%c0_341, %c136_342] : memref<8x640xf32, #tpu.memory_space<vmem>>, vector<8x384xf32>
    %c368 = arith.constant 368 : index
    %c0_343 = arith.constant 0 : index
    %258 = vector.load %arg8[%c368, %c0_343] : memref<392x384xf32, #tpu.memory_space<vmem>>, vector<8x384xf32>
    tpu.vector_store %arg8[%c368, %c0_343], %257 {strides = array<i32>} : memref<392x384xf32, #tpu.memory_space<vmem>>, vector<8x384xf32>,
    %c0_344 = arith.constant 0 : index
    %c137_345 = arith.constant 137 : index
    %259 = vector.load %arg6[%c0_344, %c137_345] : memref<8x640xf32, #tpu.memory_space<vmem>>, vector<8x384xf32>
    %c376 = arith.constant 376 : index
    %c0_346 = arith.constant 0 : index
    %260 = vector.load %arg8[%c376, %c0_346] : memref<392x384xf32, #tpu.memory_space<vmem>>, vector<8x384xf32>
    tpu.vector_store %arg8[%c376, %c0_346], %259 {strides = array<i32>} : memref<392x384xf32, #tpu.memory_space<vmem>>, vector<8x384xf32>,
    %c0_347 = arith.constant 0 : index
    %c138_348 = arith.constant 138 : index
    %261 = vector.load %arg6[%c0_347, %c138_348] : memref<8x640xf32, #tpu.memory_space<vmem>>, vector<8x384xf32>
    %c384 = arith.constant 384 : index
    %c0_349 = arith.constant 0 : index
    %262 = vector.load %arg8[%c384, %c0_349] : memref<392x384xf32, #tpu.memory_space<vmem>>, vector<8x384xf32>
    tpu.vector_store %arg8[%c384, %c0_349], %261 {strides = array<i32>} : memref<392x384xf32, #tpu.memory_space<vmem>>, vector<8x384xf32>,
    %c0_350 = arith.constant 0 : index
    %c0_351 = arith.constant 0 : index
    %263 = vector.load %arg3[%c0_350, %c0_351] : memref<8x392xf32, #tpu.memory_space<vmem>>, vector<8x392xf32>
    %c0_352 = arith.constant 0 : index
    %c0_353 = arith.constant 0 : index
    %264 = vector.load %arg8[%c0_352, %c0_353] : memref<392x384xf32, #tpu.memory_space<vmem>>, vector<392x384xf32>
    %cst_354 = arith.constant dense<0.000000e+00> : vector<8x384xf32>
    %265 = tpu.matmul %263, %264, %cst_354 {dimension_numbers = #tpu.dot_dimension_numbers<[1], [0], [0], [1], [0, 0, 1, 1], [], []>} : vector<8x392xf32>, vector<392x384xf32>, vector<8x384xf32> -> vector<8x384xf32>
    %266 = tpu.iota {dimensions = array<i32: 0>} : vector<8x384xi32>
    %cst_355 = arith.constant 5.000000e-01 : f32
    %267 = vector.broadcast %cst_355 : f32 to vector<8x384xf32>
    %268 = arith.mulf %265, %267 : vector<8x384xf32>
    %cst_356 = arith.constant 0.000000e+00 : f32
    %269 = vector.broadcast %cst_356 : f32 to vector<8x384xf32>
    %270 = arith.cmpf olt, %268, %269 : vector<8x384xf32>
    %cst_357 = arith.constant -1.000000e+00 : f32
    %cst_358 = arith.constant 1.000000e+00 : f32
    %271 = vector.broadcast %cst_357 : f32 to vector<8x384xf32>
    %272 = vector.broadcast %cst_358 : f32 to vector<8x384xf32>
    %273 = arith.select %270, %271, %272 : vector<8x384xi1>, vector<8x384xf32>
    %274 = math.absf %268 : vector<8x384xf32>
    %cst_359 = arith.constant 2.41421366 : f32
    %275 = vector.broadcast %cst_359 : f32 to vector<8x384xf32>
    %276 = arith.cmpf ogt, %274, %275 : vector<8x384xf32>
    %cst_360 = arith.constant 0.414213568 : f32
    %277 = vector.broadcast %cst_360 : f32 to vector<8x384xf32>
    %278 = arith.cmpf ogt, %274, %277 : vector<8x384xf32>
    %cst_361 = arith.constant 0.785398185 : f32
    %cst_362 = arith.constant 0.000000e+00 : f32
    %279 = vector.broadcast %cst_361 : f32 to vector<8x384xf32>
    %280 = vector.broadcast %cst_362 : f32 to vector<8x384xf32>
    %281 = arith.select %278, %279, %280 : vector<8x384xi1>, vector<8x384xf32>
    %cst_363 = arith.constant 1.57079637 : f32
    %282 = vector.broadcast %cst_363 : f32 to vector<8x384xf32>
    %283 = arith.select %276, %282, %281 : vector<8x384xi1>, vector<8x384xf32>
    %cst_364 = arith.constant 1.000000e-30 : f32
    %284 = vector.broadcast %cst_364 : f32 to vector<8x384xf32>
    %285 = arith.maximumf %274, %284 : vector<8x384xf32>
    %286 = tpu.reciprocal %285 {approx = true} : vector<8x384xf32> -> vector<8x384xf32>
    %287 = arith.mulf %285, %286 : vector<8x384xf32>
    %cst_365 = arith.constant 1.000000e+00 : f32
    %288 = vector.broadcast %cst_365 : f32 to vector<8x384xf32>
    %289 = arith.subf %288, %287 : vector<8x384xf32>
    %290 = arith.mulf %286, %289 : vector<8x384xf32>
    %291 = arith.addf %286, %290 : vector<8x384xf32>
    %cst_366 = arith.constant 1.000000e+00 : f32
    %292 = vector.broadcast %cst_366 : f32 to vector<8x384xf32>
    %293 = arith.addf %274, %292 : vector<8x384xf32>
    %294 = tpu.reciprocal %293 {approx = true} : vector<8x384xf32> -> vector<8x384xf32>
    %295 = arith.mulf %293, %294 : vector<8x384xf32>
    %cst_367 = arith.constant 1.000000e+00 : f32
    %296 = vector.broadcast %cst_367 : f32 to vector<8x384xf32>
    %297 = arith.subf %296, %295 : vector<8x384xf32>
    %298 = arith.mulf %294, %297 : vector<8x384xf32>
    %299 = arith.addf %294, %298 : vector<8x384xf32>
    %cst_368 = arith.constant 0.000000e+00 : f32
    %300 = vector.broadcast %cst_368 : f32 to vector<8x384xf32>
    %301 = arith.subf %300, %291 : vector<8x384xf32>
    %cst_369 = arith.constant 1.000000e+00 : f32
    %302 = vector.broadcast %cst_369 : f32 to vector<8x384xf32>
    %303 = arith.subf %274, %302 : vector<8x384xf32>
    %304 = arith.mulf %303, %299 : vector<8x384xf32>
    %305 = arith.select %278, %304, %274 : vector<8x384xi1>, vector<8x384xf32>
    %306 = arith.select %276, %301, %305 : vector<8x384xi1>, vector<8x384xf32>
    %307 = arith.mulf %306, %306 : vector<8x384xf32>
    %cst_370 = arith.constant 0.0805374458 : f32
    %308 = vector.broadcast %cst_370 : f32 to vector<8x384xf32>
    %309 = arith.mulf %308, %307 : vector<8x384xf32>
    %cst_371 = arith.constant 0.138776854 : f32
    %310 = vector.broadcast %cst_371 : f32 to vector<8x384xf32>
    %311 = arith.subf %309, %310 : vector<8x384xf32>
    %312 = arith.mulf %311, %307 : vector<8x384xf32>
    %cst_372 = arith.constant 0.199777111 : f32
    %313 = vector.broadcast %cst_372 : f32 to vector<8x384xf32>
    %314 = arith.addf %312, %313 : vector<8x384xf32>
    %315 = arith.mulf %314, %307 : vector<8x384xf32>
    %cst_373 = arith.constant 0.333329499 : f32
    %316 = vector.broadcast %cst_373 : f32 to vector<8x384xf32>
    %317 = arith.subf %315, %316 : vector<8x384xf32>
    %318 = arith.mulf %317, %307 : vector<8x384xf32>
    %319 = arith.mulf %318, %306 : vector<8x384xf32>
    %320 = arith.addf %283, %319 : vector<8x384xf32>
    %321 = arith.addf %320, %306 : vector<8x384xf32>
    %322 = arith.mulf %273, %321 : vector<8x384xf32>
    %cst_374 = arith.constant 1.272000e+00 : f32
    %323 = vector.broadcast %cst_374 : f32 to vector<8x384xf32>
    %324 = arith.mulf %323, %322 : vector<8x384xf32>
    %c4_i32 = arith.constant 4 : i32
    %325 = vector.broadcast %c4_i32 : i32 to vector<8x384xi32>
    %326 = arith.cmpi slt, %266, %325 : vector<8x384xi32>
    %327 = arith.select %326, %324, %265 : vector<8x384xi1>, vector<8x384xf32>
    %328 = vector.broadcast %0 : vector<1x384xf32> to vector<8x384xf32>
    %329 = arith.mulf %327, %328 : vector<8x384xf32>
    %c0_375 = arith.constant 0 : index
    %c0_376 = arith.constant 0 : index
    %c0_377 = arith.constant 0 : index
    %330 = vector.load %arg5[%c0_375, %c0_376, %c0_377] : memref<1x8x384xf32, #tpu.memory_space<vmem>>, vector<1x8x384xf32>
    %331 = vector.shape_cast %330 : vector<1x8x384xf32> to vector<8x384xf32>
    %332 = vector.shape_cast %329 : vector<8x384xf32> to vector<1x8x384xf32>
    tpu.vector_store %arg5[%c0_375, %c0_376, %c0_377], %332 {strides = array<i32>} : memref<1x8x384xf32, #tpu.memory_space<vmem>>, vector<1x8x384xf32>,
    return
  }
  func.func @transform_0(%arg0: i32) -> (i32, i32, i32) {
    %c0_i32 = arith.constant 0 : i32
    %c0_i32_0 = arith.constant 0 : i32
    %c0_i32_1 = arith.constant 0 : i32
    return %arg0, %c0_i32, %c0_i32_0 : i32, i32, i32
  }
  func.func @transform_1(%arg0: i32) -> (i32, i32) {
    %c0_i32 = arith.constant 0 : i32
    %c0_i32_0 = arith.constant 0 : i32
    %c0_i32_1 = arith.constant 0 : i32
    return %c0_i32, %c0_i32_0 : i32, i32
  }
  func.func @transform_2(%arg0: i32) -> (i32, i32) {
    %c0_i32 = arith.constant 0 : i32
    %c0_i32_0 = arith.constant 0 : i32
    %c0_i32_1 = arith.constant 0 : i32
    return %c0_i32, %c0_i32_0 : i32, i32
  }
  func.func @transform_3(%arg0: i32) -> (i32, i32) {
    %c0_i32 = arith.constant 0 : i32
    %c0_i32_0 = arith.constant 0 : i32
    %c0_i32_1 = arith.constant 0 : i32
    return %c0_i32, %c0_i32_0 : i32, i32
  }
  func.func @transform_4(%arg0: i32) -> (i32, i32, i32) {
    %c0_i32 = arith.constant 0 : i32
    %c0_i32_0 = arith.constant 0 : i32
    %c0_i32_1 = arith.constant 0 : i32
    return %arg0, %c0_i32, %c0_i32_0 : i32, i32, i32
  }
}

</mosaic_0001>

<llo_original>
// kernel: tpu_custom_call.1
$region0: #{tpu_custom_call.1}
  #allocation0 [shape = 'u32[]', space=smem, size = 0x4, offset = 0x4, fixed_abs, tag = 'smem constant byte address 0x4 - core index']
  #allocation1 [shape = 'u32[72,128]{1,0:T(1,128)}', space=vmem, size = 0x9000, scoped, tag = 'internal scratch']
  #allocation2 [shape = 'f32[8,640]{1,0:T(8,128)}', space=vmem, size = 0x5000, scoped, tag = 'scratch operand']
  #allocation3 [shape = 'f32[200,384]{1,0:T(8,128)}', space=vmem, size = 0x4b000, scoped, tag = 'scratch operand']
  #allocation4 [shape = 'f32[392,384]{1,0:T(8,128)}', space=vmem, size = 0x93000, scoped, tag = 'scratch operand']
  %s0 = inlined_call_operand.hbm [shape: f32[2,4,640], index: 0, kind: input, shape index: {}]
  %s1 = inlined_call_operand.hbm [shape: f32[8,200], index: 1, kind: input, shape index: {}]
  %s2 = inlined_call_operand.hbm [shape: f32[8,392], index: 2, kind: input, shape index: {}]
  %s3 = inlined_call_operand.hbm [shape: f32[1,384], index: 3, kind: input, shape index: {}]
  %s4 = inlined_call_operand.hbm [shape: f32[2,8,384], index: 4, kind: output, shape index: {}]
  %s5 = sld [smem:[#allocation0]]
  $region65: #{tpu_custom_call.1} parent=0
    _
  %s7 = ssub.s32 1, %s5
  %s8 = scalar_select 0, %s7, %s5
  $region1: #{tpu_custom_call.1} parent=0
    #allocation5 [shape = 'u8[20480]{0}', space=vmem, size = 0x5000, scoped, tag = 'input window, operand 0']
    #allocation6 [shape = 's32[2]{0}', space=sflag, size = 0x8, scoped, tag = 'scoped memory for tpu_custom_call.1']
    #allocation7 [shape = 's32[2]{0}', space=sflag, size = 0x8, scoped, tag = 'scoped memory for tpu_custom_call.1']
    #allocation8 [shape = 'u8[8192]{0}', space=vmem, size = 0x2000, scoped, tag = 'input window, operand 1, single buffered']
    #allocation9 [shape = 's32[1]{0}', space=sflag, size = 0x4, scoped, tag = 'scoped memory for tpu_custom_call.1']
    #allocation10 [shape = 'u8[16384]{0}', space=vmem, size = 0x4000, scoped, tag = 'input window, operand 2, single buffered']
    #allocation11 [shape = 'u8[1536]{0}', space=vmem, size = 0x800, scoped, tag = 'input window, operand 3, single buffered']
    #allocation12 [shape = 's32[1]{0}', space=sflag, size = 0x4, scoped, tag = 'scoped memory for tpu_custom_call.1']
    #allocation13 [shape = 'u8[24576]{0}', space=vmem, size = 0x6000, scoped, tag = 'output window, operand 0']
    %9 = vsyncpa [#allocation6], 0
    %s10 = scalar_lea.sflag [#allocation6], 1
    %11 = vsyncpa %s10, 0
    %12 = vsyncpa [#allocation9], 0
    %13 = vsyncpa [#allocation12], 0
    %14 = vsyncpa [#allocation7], 0
    %s15 = scalar_lea.sflag [#allocation7], 1
    %16 = vsyncpa %s15, 0
    loop: start=0, step=1, limit=4
    $region2: #{tpu_custom_call.1} parent=1 // loop_pre_header
      _
    $region3: #{tpu_custom_call.1} parent=1 // loop_header
      %s18 = sphi 0, %s22
      %p19 = scmp.ge.s32.totalorder %s18, 4
      %s28 = sphi 0, %s30
      %s31 = sphi 0, %s28
      %s32 = sphi 0, %s31
      %s48 = sphi 0, %s32
      %s52 = sphi 0, %s52
      %s54 = sphi 0, %s52
      %s55 = sphi 0, %s54
      %s69 = sphi 0, %s55
      %s73 = sphi 0, %s73
      %s75 = sphi 0, %s73
      %s76 = sphi 0, %s75
      %s90 = sphi 0, %s76
      %s94 = sphi 0, %s94
      %s96 = sphi 0, %s94
      %s97 = sphi 0, %s96
      %s111 = sphi 0, %s97
      %s117 = sphi 0, %s119
      %s120 = sphi 0, %s117
      %s121 = sphi 0, %s120
      %s137 = sphi 0, %s121
    $region4: #{tpu_custom_call.1} parent=1 // loop_header_branch
      %21 = sbr.rel (%p19) target = $region8
    $region5: #{tpu_custom_call.1} parent=1 // loop_body
      %s23 = ssub.s32 %s18, 1
      %s24 = ssub.s32 %s18, 2
      %s25 = sadd.s32 %s18, 1
      %s26 = ssub.s32 %s18, %s25
      %p27 = scmp.eq.s32.totalorder %s26, 0
      %s29 = sadd.s32 %s28, 1
      %s30 = scalar_select %p27, %s28, %s29
      %p33 = pneg %p27
      %p34 = scmp.eq.s32.totalorder %s18, 1
      %p35 = por %p33, %p34
      %p36 = scmp.ne.s32.totalorder %s28, %s31
      %p37 = scmp.eq.s32.totalorder %s18, 0
      %p38 = por %p36, %p37
      %p39 = scmp.ne.s32.totalorder %s28, %s31
      %p40 = scmp.eq.s32.totalorder %s23, 1
      %p41 = por %p39, %p40
      %p42 = scmp.ne.s32.totalorder %s31, %s32
      %p43 = scmp.eq.s32.totalorder %s23, 0
      %p44 = por %p42, %p43
      %p45 = scmp.ne.s32.totalorder %s31, %s32
      %p46 = scmp.eq.s32.totalorder %s24, 1
      %p47 = por %p45, %p46
      %p49 = scmp.ne.s32.totalorder %s32, %s48
      %p50 = scmp.eq.s32.totalorder %s24, 0
      %p51 = por %p49, %p50
      %s53 = sadd.s32 %s52, 1
      %p56 = scmp.eq.s32.totalorder %s18, 1
      %p57 = scmp.ne.s32.totalorder %s52, %s54
      %p58 = scmp.eq.s32.totalorder %s18, 0
      %p59 = por %p57, %p58
      %p60 = scmp.ne.s32.totalorder %s52, %s54
      %p61 = scmp.eq.s32.totalorder %s23, 1
      %p62 = por %p60, %p61
      %p63 = scmp.ne.s32.totalorder %s54, %s55
      %p64 = scmp.eq.s32.totalorder %s23, 0
      %p65 = por %p63, %p64
      %p66 = scmp.ne.s32.totalorder %s54, %s55
      %p67 = scmp.eq.s32.totalorder %s24, 1
      %p68 = por %p66, %p67
      %p70 = scmp.ne.s32.totalorder %s55, %s69
      %p71 = scmp.eq.s32.totalorder %s24, 0
      %p72 = por %p70, %p71
      %s74 = sadd.s32 %s73, 1
      %p77 = scmp.eq.s32.totalorder %s18, 1
      %p78 = scmp.ne.s32.totalorder %s73, %s75
      %p79 = scmp.eq.s32.totalorder %s18, 0
      %p80 = por %p78, %p79
      %p81 = scmp.ne.s32.totalorder %s73, %s75
      %p82 = scmp.eq.s32.totalorder %s23, 1
      %p83 = por %p81, %p82
      %p84 = scmp.ne.s32.totalorder %s75, %s76
      %p85 = scmp.eq.s32.totalorder %s23, 0
      %p86 = por %p84, %p85
      %p87 = scmp.ne.s32.totalorder %s75, %s76
      %p88 = scmp.eq.s32.totalorder %s24, 1
      %p89 = por %p87, %p88
      %p91 = scmp.ne.s32.totalorder %s76, %s90
      %p92 = scmp.eq.s32.totalorder %s24, 0
      %p93 = por %p91, %p92
      %s95 = sadd.s32 %s94, 1
      %p98 = scmp.eq.s32.totalorder %s18, 1
      %p99 = scmp.ne.s32.totalorder %s94, %s96
      %p100 = scmp.eq.s32.totalorder %s18, 0
      %p101 = por %p99, %p100
      %p102 = scmp.ne.s32.totalorder %s94, %s96
      %p103 = scmp.eq.s32.totalorder %s23, 1
      %p104 = por %p102, %p103
      %p105 = scmp.ne.s32.totalorder %s96, %s97
      %p106 = scmp.eq.s32.totalorder %s23, 0
      %p107 = por %p105, %p106
      %p108 = scmp.ne.s32.totalorder %s96, %s97
      %p109 = scmp.eq.s32.totalorder %s24, 1
      %p110 = por %p108, %p109
      %p112 = scmp.ne.s32.totalorder %s97, %s111
      %p113 = scmp.eq.s32.totalorder %s24, 0
      %p114 = por %p112, %p113
      %s115 = ssub.s32 %s18, %s25
      %p116 = scmp.eq.s32.totalorder %s115, 0
      %s118 = sadd.s32 %s117, 1
      %s119 = scalar_select %p116, %s117, %s118
      %p122 = pneg %p116
      %p123 = scmp.eq.s32.totalorder %s18, 1
      %p124 = por %p122, %p123
      %p125 = scmp.ne.s32.totalorder %s117, %s120
      %p126 = scmp.eq.s32.totalorder %s18, 0
      %p127 = por %p125, %p126
      %p128 = scmp.ne.s32.totalorder %s117, %s120
      %p129 = scmp.eq.s32.totalorder %s23, 1
      %p130 = por %p128, %p129
      %p131 = scmp.ne.s32.totalorder %s120, %s121
      %p132 = scmp.eq.s32.totalorder %s23, 0
      %p133 = por %p131, %p132
      %p134 = scmp.ne.s32.totalorder %s120, %s121
      %p135 = scmp.eq.s32.totalorder %s24, 1
      %p136 = por %p134, %p135
      %p138 = scmp.ne.s32.totalorder %s121, %s137
      %p139 = scmp.eq.s32.totalorder %s24, 0
      %p140 = por %p138, %p139
      %p141 = scmp.le.s32.totalorder 1, %s18
      %p142 = scmp.lt.s32.totalorder %s18, 3
      %p143 = pnand %p141, %p142
      %p144 = pneg %p143
      // Predicated region
      $region9: #{tpu_custom_call.1} parent=5 // pred_check
        _
      $region10: #{tpu_custom_call.1} parent=5 // pred_check_branch
        %146 = sbr.rel (%p143) target = $region12
      $region11: #{tpu_custom_call.1} parent=5 // pred_region
        %s147 = ssub.s32 %s18, 1
        // Predicated region
        $region13: #{tpu_custom_call.1} parent=11 // pred_check
          %p148 = pneg %p65
        $region14: #{tpu_custom_call.1} parent=11 // pred_check_branch
          %150 = sbr.rel (%p148) target = $region16
        $region15: #{tpu_custom_call.1} parent=11 // pred_region
          %152 = vsyncadd [#allocation9], 0
          %s154 = sshll.u32 %s1, 4
          %s155 = int_to_ptr.hbm [resolvable:$true] %s154
          %s156 = sshll.u32 [#allocation8], 4
          %s157 = int_to_ptr.vmem [resolvable:$true] %s156
          %159 = dma.hbm_to_vmem [thread:$0]  %s155, 256, %s157, [#allocation9]
        $region16: #{tpu_custom_call.1} parent=11 // pred_fallthru
          _
        // Predicated region
        $region17: #{tpu_custom_call.1} parent=11 // pred_check
          %p160 = pneg %p86
        $region18: #{tpu_custom_call.1} parent=11 // pred_check_branch
          %162 = sbr.rel (%p160) target = $region20
        $region19: #{tpu_custom_call.1} parent=11 // pred_region
          %164 = vsyncadd [#allocation9], 0
          %s166 = sshll.u32 %s2, 4
          %s167 = int_to_ptr.hbm [resolvable:$true] %s166
          %s168 = sshll.u32 [#allocation10], 4
          %s169 = int_to_ptr.vmem [resolvable:$true] %s168
          %171 = dma.hbm_to_vmem [thread:$0]  %s167, 512, %s169, [#allocation9]
        $region20: #{tpu_custom_call.1} parent=11 // pred_fallthru
          _
        // Predicated region
        $region21: #{tpu_custom_call.1} parent=11 // pred_check
          %p172 = pneg %p107
        $region22: #{tpu_custom_call.1} parent=11 // pred_check_branch
          %174 = sbr.rel (%p172) target = $region24
        $region23: #{tpu_custom_call.1} parent=11 // pred_region
          %176 = vsyncadd [#allocation12], 0
          %s178 = sshll.u32 %s3, 4
          %s179 = int_to_ptr.hbm [resolvable:$true] %s178
          %s180 = sshll.u32 [#allocation11], 4
          %s181 = int_to_ptr.vmem [resolvable:$true] %s180
          %183 = dma.hbm_to_vmem [thread:$0]  %s179, 48, %s181, [#allocation12]
        $region24: #{tpu_custom_call.1} parent=11 // pred_fallthru
          _
      $region12: #{tpu_custom_call.1} parent=5 // pred_fallthru
        _
      %p184 = scmp.lt.s32.totalorder %s18, 2
      // Predicated region
      $region25: #{tpu_custom_call.1} parent=5 // pred_check
        %p185 = pneg %p184
      $region26: #{tpu_custom_call.1} parent=5 // pred_check_branch
        %187 = sbr.rel (%p185) target = $region28
      $region27: #{tpu_custom_call.1} parent=5 // pred_region
        // Predicated region
        $region29: #{tpu_custom_call.1} parent=27 // pred_check
          %p188 = pneg %p38
        $region30: #{tpu_custom_call.1} parent=27 // pred_check_branch
          %190 = sbr.rel (%p188) target = $region32
        $region31: #{tpu_custom_call.1} parent=27 // pred_region
          %s191 = sand.u32 %s28, 1
          %s192 = scalar_lea.sflag [#allocation6], %s191
          %s193 = sand.u32 %s28, 1
          %s194 = smul.addr %s193, 20
          %s195 = scalar_lea.vmem [#allocation5], %s194
          %197 = vsyncadd %s192, 0
          %s198 = smul.addr %s18, 5
          %s199 = smul.addr %s198, 4
          %s200 = scalar_lea.hbm %s0, %s199
          %s202 = sshll.u32 %s200, 4
          %s203 = int_to_ptr.hbm [resolvable:$true] %s202
          %s204 = sshll.u32 %s195, 4
          %s205 = int_to_ptr.vmem [resolvable:$true] %s204
          %207 = dma.hbm_to_vmem [thread:$0]  %s203, 320, %s205, %s192
        $region32: #{tpu_custom_call.1} parent=27 // pred_fallthru
          _
      $region28: #{tpu_custom_call.1} parent=5 // pred_fallthru
        _
      %p208 = scmp.le.s32.totalorder 1, %s18
      %p209 = scmp.lt.s32.totalorder %s18, 3
      %p210 = pnand %p208, %p209
      %p211 = pneg %p210
      // Predicated region
      $region33: #{tpu_custom_call.1} parent=5 // pred_check
        _
      $region34: #{tpu_custom_call.1} parent=5 // pred_check_branch
        %213 = sbr.rel (%p210) target = $region36
      $region35: #{tpu_custom_call.1} parent=5 // pred_region
        %s214 = ssub.s32 %s18, 1
        %s215 = sand.u32 %s31, 1
        %s216 = scalar_lea.sflag [#allocation6], %s215
        %s217 = sand.u32 %s31, 1
        %s218 = smul.addr %s217, 20
        %s219 = scalar_lea.vmem [#allocation5], %s218
        // Predicated region
        $region37: #{tpu_custom_call.1} parent=35 // pred_check
          %p220 = pneg %p44
        $region38: #{tpu_custom_call.1} parent=35 // pred_check_branch
          %222 = sbr.rel (%p220) target = $region40
        $region39: #{tpu_custom_call.1} parent=35 // pred_region
          %224 = dma.done %s216, 320
        $region40: #{tpu_custom_call.1} parent=35 // pred_fallthru
          _
        // Predicated region
        $region41: #{tpu_custom_call.1} parent=35 // pred_check
          %p225 = pneg %p65
        $region42: #{tpu_custom_call.1} parent=35 // pred_check_branch
          %227 = sbr.rel (%p225) target = $region44
        $region43: #{tpu_custom_call.1} parent=35 // pred_region
          %229 = dma.done [#allocation9], 256
        $region44: #{tpu_custom_call.1} parent=35 // pred_fallthru
          _
        // Predicated region
        $region45: #{tpu_custom_call.1} parent=35 // pred_check
          %p230 = pneg %p86
        $region46: #{tpu_custom_call.1} parent=35 // pred_check_branch
          %232 = sbr.rel (%p230) target = $region48
        $region47: #{tpu_custom_call.1} parent=35 // pred_region
          %234 = dma.done [#allocation9], 512
        $region48: #{tpu_custom_call.1} parent=35 // pred_fallthru
          _
        // Predicated region
        $region49: #{tpu_custom_call.1} parent=35 // pred_check
          %p235 = pneg %p107
        $region50: #{tpu_custom_call.1} parent=35 // pred_check_branch
          %237 = sbr.rel (%p235) target = $region52
        $region51: #{tpu_custom_call.1} parent=35 // pred_region
          %239 = dma.done [#allocation12], 48
        $region52: #{tpu_custom_call.1} parent=35 // pred_fallthru
          _
        %s240 = sand.u32 %s31, 1
        %s241 = scalar_lea.sflag [#allocation6], %s240
        %s242 = sand.u32 %s31, 1
        %s243 = smul.addr %s242, 20
        %s244 = scalar_lea.vmem [#allocation5], %s243
        %p245 = pneg %p44
        %p246 = pneg %p41
        %p247 = pneg %p65
        %p248 = pneg %p62
        %p249 = pneg %p86
        %p250 = pneg %p83
        %p251 = pneg %p107
        %p252 = pneg %p104
        %p253 = pneg %p133
        %p254 = pneg %p130
        %s255 = sand.u32 %s120, 1
        %s256 = scalar_lea.sflag [#allocation7], %s255
        %s257 = sand.u32 %s120, 1
        %s258 = smul.addr %s257, 24
        %s259 = scalar_lea.vmem [#allocation13], %s258
        %v260 = vld [vmem:[#allocation11] sm:$0x7]
        %v261 = vld [vmem:[%s219] sm:$0xff]
        %v262 = vld [vmem:[%s219 + $0x8] sm:$0xf]
        %265 = vst [vmem:[#allocation1] ss:$2 sm:$0xff] %v261
        %s266 = scalar_lea.vmem [#allocation1], 16
        %267 = vst [vmem:[%s266] ss:$2 sm:$0xff] %v262
        %v268 = vld.sshfl [vmem:[#allocation1] sm:$0xff pattern:$0x75316420]
        %v269 = vld.sshfl [vmem:[#allocation1 + $0x8] sm:$0xff pattern:$0x75316420]
        %v270 = vld.sshfl [vmem:[#allocation1 + $0x10] sm:$0xff pattern:$0x75316420]
        %274 = vst [vmem:[#allocation3] sm:$0xf] %v268
        %275 = vst [vmem:[#allocation3 + $0x8] sm:$0xf] %v269
        %276 = vst [vmem:[#allocation3 + $0x10] sm:$0xf] %v270
        %v277 = vld [vmem:[%s219] sm:$0xff]
        %v278 = vld [vmem:[%s219 + $0x8] sm:$0xff]
        %s281 = scalar_lea.vmem [#allocation1], 1
        %282 = vst [vmem:[%s281] ss:$2 sm:$0xff] %v277
        %s283 = scalar_lea.vmem [#allocation1], 17
        %284 = vst [vmem:[%s283] ss:$2 sm:$0xff] %v278
        %v285 = vld.sshfl [vmem:[#allocation1] sm:$0xff pattern:$0x75316420]
        %v286 = vld.sshfl [vmem:[#allocation1 + $0x8] sm:$0xff pattern:$0x75316420]
        %v287 = vld.sshfl [vmem:[#allocation1 + $0x10] sm:$0xff pattern:$0x75316420]
        %v288 = vld.sshfl [vmem:[#allocation1 + $0x18] sm:$0xff pattern:$0x75316420]
        %289 = vrot.lane.b32.xlu0 %v285, 127
        %v290 = vpop.permute.xlu0 %289
        %291 = vrot.lane.b32.xlu0 %v286, 127
        %v292 = vpop.permute.xlu0 %291
        %293 = vrot.lane.b32.xlu0 %v287, 127
        %v294 = vpop.permute.xlu0 %293
        %295 = vrot.lane.b32.xlu0 %v288, 127
        %v296 = vpop.permute.xlu0 %295
        %vm297 = vcmask 1039360
        %v298 = vsel %vm297, %v290, %v292
        %v299 = vsel %vm297, %v292, %v294
        %v300 = vsel %vm297, %v294, %v296
        %304 = vst [vmem:[#allocation3] sm:$0xf0] %v298
        %305 = vst [vmem:[#allocation3 + $0x8] sm:$0xf0] %v299
        %306 = vst [vmem:[#allocation3 + $0x10] sm:$0xf0] %v300
        %v307 = vld [vmem:[%s219] sm:$0xff]
        %v308 = vld [vmem:[%s219 + $0x8] sm:$0xff]
        %311 = vst [vmem:[#allocation1] ss:$2 sm:$0xff] %v307
        %s312 = scalar_lea.vmem [#allocation1], 16
        %313 = vst [vmem:[%s312] ss:$2 sm:$0xff] %v308
        %v314 = vld.sshfl [vmem:[#allocation1] sm:$0xff pattern:$0x75316420]
        %v315 = vld.sshfl [vmem:[#allocation1 + $0x8] sm:$0xff pattern:$0x75316420]
        %v316 = vld.sshfl [vmem:[#allocation1 + $0x10] sm:$0xff pattern:$0x75316420]
        %v317 = vld.sshfl [vmem:[#allocation1 + $0x18] sm:$0xff pattern:$0x75316420]
        %318 = vrot.lane.b32.xlu0 %v314, 126
        %v319 = vpop.permute.xlu0 %318
        %320 = vrot.lane.b32.xlu0 %v315, 126
        %v321 = vpop.permute.xlu0 %320
        %322 = vrot.lane.b32.xlu0 %v316, 126
        %v323 = vpop.permute.xlu0 %322
        %324 = vrot.lane.b32.xlu0 %v317, 126
        %v325 = vpop.permute.xlu0 %324
        %vm326 = vcmask 1031168
        %v327 = vsel %vm326, %v319, %v321
        %v328 = vsel %vm326, %v321, %v323
        %v329 = vsel %vm326, %v323, %v325
        %333 = vst [vmem:[#allocation3 + $0x18] sm:$0xf] %v327
        %334 = vst [vmem:[#allocation3 + $0x20] sm:$0xf] %v328
        %335 = vst [vmem:[#allocation3 + $0x28] sm:$0xf] %v329
        %v336 = vld [vmem:[%s219] sm:$0xff]
        %v337 = vld [vmem:[%s219 + $0x8] sm:$0xff]
        %s340 = scalar_lea.vmem [#allocation1], 1
        %341 = vst [vmem:[%s340] ss:$2 sm:$0xff] %v336
        %s342 = scalar_lea.vmem [#allocation1], 17
        %343 = vst [vmem:[%s342] ss:$2 sm:$0xff] %v337
        %v344 = vld.sshfl [vmem:[#allocation1] sm:$0xff pattern:$0x75316420]
        %v345 = vld.sshfl [vmem:[#allocation1 + $0x8] sm:$0xff pattern:$0x75316420]
        %v346 = vld.sshfl [vmem:[#allocation1 + $0x10] sm:$0xff pattern:$0x75316420]
        %v347 = vld.sshfl [vmem:[#allocation1 + $0x18] sm:$0xff pattern:$0x75316420]
        %348 = vrot.lane.b32.xlu0 %v344, 125
        %v349 = vpop.permute.xlu0 %348
        %350 = vrot.lane.b32.xlu0 %v345, 125
        %v351 = vpop.permute.xlu0 %350
        %352 = vrot.lane.b32.xlu0 %v346, 125
        %v353 = vpop.permute.xlu0 %352
        %354 = vrot.lane.b32.xlu0 %v347, 125
        %v355 = vpop.permute.xlu0 %354
        %vm356 = vcmask 1022976
        %v357 = vsel %vm356, %v349, %v351
        %v358 = vsel %vm356, %v351, %v353
        %v359 = vsel %vm356, %v353, %v355
        %363 = vst [vmem:[#allocation3 + $0x18] sm:$0xf0] %v357
        %364 = vst [vmem:[#allocation3 + $0x20] sm:$0xf0] %v358
        %365 = vst [vmem:[#allocation3 + $0x28] sm:$0xf0] %v359
        %v366 = vld [vmem:[%s219] sm:$0xff]
        %v367 = vld [vmem:[%s219 + $0x8] sm:$0xff]
        %370 = vst [vmem:[#allocation1] ss:$2 sm:$0xff] %v366
        %s371 = scalar_lea.vmem [#allocation1], 16
        %372 = vst [vmem:[%s371] ss:$2 sm:$0xff] %v367
        %v373 = vld.sshfl [vmem:[#allocation1] sm:$0xff pattern:$0x75316420]
        %v374 = vld.sshfl [vmem:[#allocation1 + $0x8] sm:$0xff pattern:$0x75316420]
        %v375 = vld.sshfl [vmem:[#allocation1 + $0x10] sm:$0xff pattern:$0x75316420]
        %v376 = vld.sshfl [vmem:[#allocation1 + $0x18] sm:$0xff pattern:$0x75316420]
        %377 = vrot.lane.b32.xlu0 %v373, 124
        %v378 = vpop.permute.xlu0 %377
        %379 = vrot.lane.b32.xlu0 %v374, 124
        %v380 = vpop.permute.xlu0 %379
        %381 = vrot.lane.b32.xlu0 %v375, 124
        %v382 = vpop.permute.xlu0 %381
        %383 = vrot.lane.b32.xlu0 %v376, 124
        %v384 = vpop.permute.xlu0 %383
        %vm385 = vcmask 1014784
        %v386 = vsel %vm385, %v378, %v380
        %v387 = vsel %vm385, %v380, %v382
        %v388 = vsel %vm385, %v382, %v384
        %392 = vst [vmem:[#allocation3 + $0x30] sm:$0xf] %v386
        %393 = vst [vmem:[#allocation3 + $0x38] sm:$0xf] %v387
        %394 = vst [vmem:[#allocation3 + $0x40] sm:$0xf] %v388
        %v395 = vld [vmem:[%s219] sm:$0xff]
        %v396 = vld [vmem:[%s219 + $0x8] sm:$0xff]
        %s399 = scalar_lea.vmem [#allocation1], 1
        %400 = vst [vmem:[%s399] ss:$2 sm:$0xff] %v395
        %s401 = scalar_lea.vmem [#allocation1], 17
        %402 = vst [vmem:[%s401] ss:$2 sm:$0xff] %v396
        %v403 = vld.sshfl [vmem:[#allocation1] sm:$0xff pattern:$0x75316420]
        %v404 = vld.sshfl [vmem:[#allocation1 + $0x8] sm:$0xff pattern:$0x75316420]
        %v405 = vld.sshfl [vmem:[#allocation1 + $0x10] sm:$0xff pattern:$0x75316420]
        %v406 = vld.sshfl [vmem:[#allocation1 + $0x18] sm:$0xff pattern:$0x75316420]
        %407 = vrot.lane.b32.xlu0 %v403, 123
        %v408 = vpop.permute.xlu0 %407
        %409 = vrot.lane.b32.xlu0 %v404, 123
        %v410 = vpop.permute.xlu0 %409
        %411 = vrot.lane.b32.xlu0 %v405, 123
        %v412 = vpop.permute.xlu0 %411
        %413 = vrot.lane.b32.xlu0 %v406, 123
        %v414 = vpop.permute.xlu0 %413
        %vm415 = vcmask 1006592
        %v416 = vsel %vm415, %v408, %v410
        %v417 = vsel %vm415, %v410, %v412
        %v418 = vsel %vm415, %v412, %v414
        %422 = vst [vmem:[#allocation3 + $0x30] sm:$0xf0] %v416
        %423 = vst [vmem:[#allocation3 + $0x38] sm:$0xf0] %v417
        %424 = vst [vmem:[#allocation3 + $0x40] sm:$0xf0] %v418
        %v425 = vld [vmem:[%s219] sm:$0xff]
        %v426 = vld [vmem:[%s219 + $0x8] sm:$0xff]
        %429 = vst [vmem:[#allocation1] ss:$2 sm:$0xff] %v425
        %s430 = scalar_lea.vmem [#allocation1], 16
        %431 = vst [vmem:[%s430] ss:$2 sm:$0xff] %v426
        %v432 = vld.sshfl [vmem:[#allocation1] sm:$0xff pattern:$0x75316420]
        %v433 = vld.sshfl [vmem:[#allocation1 + $0x8] sm:$0xff pattern:$0x75316420]
        %v434 = vld.sshfl [vmem:[#allocation1 + $0x10] sm:$0xff pattern:$0x75316420]
        %v435 = vld.sshfl [vmem:[#allocation1 + $0x18] sm:$0xff pattern:$0x75316420]
        %436 = vrot.lane.b32.xlu0 %v432, 122
        %v437 = vpop.permute.xlu0 %436
        %438 = vrot.lane.b32.xlu0 %v433, 122
        %v439 = vpop.permute.xlu0 %438
        %440 = vrot.lane.b32.xlu0 %v434, 122
        %v441 = vpop.permute.xlu0 %440
        %442 = vrot.lane.b32.xlu0 %v435, 122
        %v443 = vpop.permute.xlu0 %442
        %vm444 = vcmask 998400
        %v445 = vsel %vm444, %v437, %v439
        %v446 = vsel %vm444, %v439, %v441
        %v447 = vsel %vm444, %v441, %v443
        %451 = vst [vmem:[#allocation3 + $0x48] sm:$0xf] %v445
        %452 = vst [vmem:[#allocation3 + $0x50] sm:$0xf] %v446
        %453 = vst [vmem:[#allocation3 + $0x58] sm:$0xf] %v447
        %v454 = vld [vmem:[%s219] sm:$0xff]
        %v455 = vld [vmem:[%s219 + $0x8] sm:$0xff]
        %s458 = scalar_lea.vmem [#allocation1], 1
        %459 = vst [vmem:[%s458] ss:$2 sm:$0xff] %v454
        %s460 = scalar_lea.vmem [#allocation1], 17
        %461 = vst [vmem:[%s460] ss:$2 sm:$0xff] %v455
        %v462 = vld.sshfl [vmem:[#allocation1] sm:$0xff pattern:$0x75316420]
        %v463 = vld.sshfl [vmem:[#allocation1 + $0x8] sm:$0xff pattern:$0x75316420]
        %v464 = vld.sshfl [vmem:[#allocation1 + $0x10] sm:$0xff pattern:$0x75316420]
        %v465 = vld.sshfl [vmem:[#allocation1 + $0x18] sm:$0xff pattern:$0x75316420]
        %466 = vrot.lane.b32.xlu0 %v462, 106
        %v467 = vpop.permute.xlu0 %466
        %468 = vrot.lane.b32.xlu0 %v463, 106
        %v469 = vpop.permute.xlu0 %468
        %470 = vrot.lane.b32.xlu0 %v464, 106
        %v471 = vpop.permute.xlu0 %470
        %472 = vrot.lane.b32.xlu0 %v465, 106
        %v473 = vpop.permute.xlu0 %472
        %vm474 = vcmask 867328
        %v475 = vsel %vm474, %v467, %v469
        %v476 = vsel %vm474, %v469, %v471
        %v477 = vsel %vm474, %v471, %v473
        %481 = vst [vmem:[#allocation3 + $0x48] sm:$0xf0] %v475
        %482 = vst [vmem:[#allocation3 + $0x50] sm:$0xf0] %v476
        %483 = vst [vmem:[#allocation3 + $0x58] sm:$0xf0] %v477
        %v484 = vld [vmem:[%s219] sm:$0xff]
        %v485 = vld [vmem:[%s219 + $0x8] sm:$0xff]
        %488 = vst [vmem:[#allocation1] ss:$2 sm:$0xff] %v484
        %s489 = scalar_lea.vmem [#allocation1], 16
        %490 = vst [vmem:[%s489] ss:$2 sm:$0xff] %v485
        %v491 = vld.sshfl [vmem:[#allocation1] sm:$0xff pattern:$0x75316420]
        %v492 = vld.sshfl [vmem:[#allocation1 + $0x8] sm:$0xff pattern:$0x75316420]
        %v493 = vld.sshfl [vmem:[#allocation1 + $0x10] sm:$0xff pattern:$0x75316420]
        %v494 = vld.sshfl [vmem:[#allocation1 + $0x18] sm:$0xff pattern:$0x75316420]
        %495 = vrot.lane.b32.xlu0 %v491, 105
        %v496 = vpop.permute.xlu0 %495
        %497 = vrot.lane.b32.xlu0 %v492, 105
        %v498 = vpop.permute.xlu0 %497
        %499 = vrot.lane.b32.xlu0 %v493, 105
        %v500 = vpop.permute.xlu0 %499
        %501 = vrot.lane.b32.xlu0 %v494, 105
        %v502 = vpop.permute.xlu0 %501
        %vm503 = vcmask 859136
        %v504 = vsel %vm503, %v496, %v498
        %v505 = vsel %vm503, %v498, %v500
        %v506 = vsel %vm503, %v500, %v502
        %510 = vst [vmem:[#allocation3 + $0x60] sm:$0xf] %v504
        %511 = vst [vmem:[#allocation3 + $0x68] sm:$0xf] %v505
        %512 = vst [vmem:[#allocation3 + $0x70] sm:$0xf] %v506
        %v513 = vld [vmem:[%s219] sm:$0xff]
        %v514 = vld [vmem:[%s219 + $0x8] sm:$0xff]
        %s517 = scalar_lea.vmem [#allocation1], 1
        %518 = vst [vmem:[%s517] ss:$2 sm:$0xff] %v513
        %s519 = scalar_lea.vmem [#allocation1], 17
        %520 = vst [vmem:[%s519] ss:$2 sm:$0xff] %v514
        %v521 = vld.sshfl [vmem:[#allocation1] sm:$0xff pattern:$0x75316420]
        %v522 = vld.sshfl [vmem:[#allocation1 + $0x8] sm:$0xff pattern:$0x75316420]
        %v523 = vld.sshfl [vmem:[#allocation1 + $0x10] sm:$0xff pattern:$0x75316420]
        %v524 = vld.sshfl [vmem:[#allocation1 + $0x18] sm:$0xff pattern:$0x75316420]
        %525 = vrot.lane.b32.xlu0 %v521, 104
        %v526 = vpop.permute.xlu0 %525
        %527 = vrot.lane.b32.xlu0 %v522, 104
        %v528 = vpop.permute.xlu0 %527
        %529 = vrot.lane.b32.xlu0 %v523, 104
        %v530 = vpop.permute.xlu0 %529
        %531 = vrot.lane.b32.xlu0 %v524, 104
        %v532 = vpop.permute.xlu0 %531
        %vm533 = vcmask 850944
        %v534 = vsel %vm533, %v526, %v528
        %v535 = vsel %vm533, %v528, %v530
        %v536 = vsel %vm533, %v530, %v532
        %540 = vst [vmem:[#allocation3 + $0x60] sm:$0xf0] %v534
        %541 = vst [vmem:[#allocation3 + $0x68] sm:$0xf0] %v535
        %542 = vst [vmem:[#allocation3 + $0x70] sm:$0xf0] %v536
        %v543 = vld [vmem:[%s219] sm:$0xff]
        %v544 = vld [vmem:[%s219 + $0x8] sm:$0xff]
        %547 = vst [vmem:[#allocation1] ss:$2 sm:$0xff] %v543
        %s548 = scalar_lea.vmem [#allocation1], 16
        %549 = vst [vmem:[%s548] ss:$2 sm:$0xff] %v544
        %v550 = vld.sshfl [vmem:[#allocation1] sm:$0xff pattern:$0x75316420]
        %v551 = vld.sshfl [vmem:[#allocation1 + $0x8] sm:$0xff pattern:$0x75316420]
        %v552 = vld.sshfl [vmem:[#allocation1 + $0x10] sm:$0xff pattern:$0x75316420]
        %v553 = vld.sshfl [vmem:[#allocation1 + $0x18] sm:$0xff pattern:$0x75316420]
        %554 = vrot.lane.b32.xlu0 %v550, 103
        %v555 = vpop.permute.xlu0 %554
        %556 = vrot.lane.b32.xlu0 %v551, 103
        %v557 = vpop.permute.xlu0 %556
        %558 = vrot.lane.b32.xlu0 %v552, 103
        %v559 = vpop.permute.xlu0 %558
        %560 = vrot.lane.b32.xlu0 %v553, 103
        %v561 = vpop.permute.xlu0 %560
        %vm562 = vcmask 842752
        %v563 = vsel %vm562, %v555, %v557
        %v564 = vsel %vm562, %v557, %v559
        %v565 = vsel %vm562, %v559, %v561
        %569 = vst [vmem:[#allocation3 + $0x78] sm:$0xf] %v563
        %570 = vst [vmem:[#allocation3 + $0x80] sm:$0xf] %v564
        %571 = vst [vmem:[#allocation3 + $0x88] sm:$0xf] %v565
        %v572 = vld [vmem:[%s219] sm:$0xff]
        %v573 = vld [vmem:[%s219 + $0x8] sm:$0xff]
        %s576 = scalar_lea.vmem [#allocation1], 1
        %577 = vst [vmem:[%s576] ss:$2 sm:$0xff] %v572
        %s578 = scalar_lea.vmem [#allocation1], 17
        %579 = vst [vmem:[%s578] ss:$2 sm:$0xff] %v573
        %v580 = vld.sshfl [vmem:[#allocation1] sm:$0xff pattern:$0x75316420]
        %v581 = vld.sshfl [vmem:[#allocation1 + $0x8] sm:$0xff pattern:$0x75316420]
        %v582 = vld.sshfl [vmem:[#allocation1 + $0x10] sm:$0xff pattern:$0x75316420]
        %v583 = vld.sshfl [vmem:[#allocation1 + $0x18] sm:$0xff pattern:$0x75316420]
        %584 = vrot.lane.b32.xlu0 %v580, 102
        %v585 = vpop.permute.xlu0 %584
        %586 = vrot.lane.b32.xlu0 %v581, 102
        %v587 = vpop.permute.xlu0 %586
        %588 = vrot.lane.b32.xlu0 %v582, 102
        %v589 = vpop.permute.xlu0 %588
        %590 = vrot.lane.b32.xlu0 %v583, 102
        %v591 = vpop.permute.xlu0 %590
        %vm592 = vcmask 834560
        %v593 = vsel %vm592, %v585, %v587
        %v594 = vsel %vm592, %v587, %v589
        %v595 = vsel %vm592, %v589, %v591
        %599 = vst [vmem:[#allocation3 + $0x78] sm:$0xf0] %v593
        %600 = vst [vmem:[#allocation3 + $0x80] sm:$0xf0] %v594
        %601 = vst [vmem:[#allocation3 + $0x88] sm:$0xf0] %v595
        %v602 = vld [vmem:[%s219] sm:$0xff]
        %v603 = vld [vmem:[%s219 + $0x8] sm:$0xff]
        %606 = vst [vmem:[#allocation1] ss:$2 sm:$0xff] %v602
        %s607 = scalar_lea.vmem [#allocation1], 16
        %608 = vst [vmem:[%s607] ss:$2 sm:$0xff] %v603
        %v609 = vld.sshfl [vmem:[#allocation1] sm:$0xff pattern:$0x75316420]
        %v610 = vld.sshfl [vmem:[#allocation1 + $0x8] sm:$0xff pattern:$0x75316420]
        %v611 = vld.sshfl [vmem:[#allocation1 + $0x10] sm:$0xff pattern:$0x75316420]
        %v612 = vld.sshfl [vmem:[#allocation1 + $0x18] sm:$0xff pattern:$0x75316420]
        %613 = vrot.lane.b32.xlu0 %v609, 101
        %v614 = vpop.permute.xlu0 %613
        %615 = vrot.lane.b32.xlu0 %v610, 101
        %v616 = vpop.permute.xlu0 %615
        %617 = vrot.lane.b32.xlu0 %v611, 101
        %v618 = vpop.permute.xlu0 %617
        %619 = vrot.lane.b32.xlu0 %v612, 101
        %v620 = vpop.permute.xlu0 %619
        %vm621 = vcmask 826368
        %v622 = vsel %vm621, %v614, %v616
        %v623 = vsel %vm621, %v616, %v618
        %v624 = vsel %vm621, %v618, %v620
        %628 = vst [vmem:[#allocation3 + $0x90] sm:$0xf] %v622
        %629 = vst [vmem:[#allocation3 + $0x98] sm:$0xf] %v623
        %630 = vst [vmem:[#allocation3 + $0xa0] sm:$0xf] %v624
        %v631 = vld [vmem:[%s219] sm:$0xff]
        %v632 = vld [vmem:[%s219 + $0x8] sm:$0xff]
        %s635 = scalar_lea.vmem [#allocation1], 1
        %636 = vst [vmem:[%s635] ss:$2 sm:$0xff] %v631
        %s637 = scalar_lea.vmem [#allocation1], 17
        %638 = vst [vmem:[%s637] ss:$2 sm:$0xff] %v632
        %v639 = vld.sshfl [vmem:[#allocation1] sm:$0xff pattern:$0x75316420]
        %v640 = vld.sshfl [vmem:[#allocation1 + $0x8] sm:$0xff pattern:$0x75316420]
        %v641 = vld.sshfl [vmem:[#allocation1 + $0x10] sm:$0xff pattern:$0x75316420]
        %v642 = vld.sshfl [vmem:[#allocation1 + $0x18] sm:$0xff pattern:$0x75316420]
        %643 = vrot.lane.b32.xlu0 %v639, 100
        %v644 = vpop.permute.xlu0 %643
        %645 = vrot.lane.b32.xlu0 %v640, 100
        %v646 = vpop.permute.xlu0 %645
        %647 = vrot.lane.b32.xlu0 %v641, 100
        %v648 = vpop.permute.xlu0 %647
        %649 = vrot.lane.b32.xlu0 %v642, 100
        %v650 = vpop.permute.xlu0 %649
        %vm651 = vcmask 818176
        %v652 = vsel %vm651, %v644, %v646
        %v653 = vsel %vm651, %v646, %v648
        %v654 = vsel %vm651, %v648, %v650
        %658 = vst [vmem:[#allocation3 + $0x90] sm:$0xf0] %v652
        %659 = vst [vmem:[#allocation3 + $0x98] sm:$0xf0] %v653
        %660 = vst [vmem:[#allocation3 + $0xa0] sm:$0xf0] %v654
        %v661 = vld [vmem:[%s219] sm:$0xff]
        %v662 = vld [vmem:[%s219 + $0x8] sm:$0xff]
        %665 = vst [vmem:[#allocation1] ss:$2 sm:$0xff] %v661
        %s666 = scalar_lea.vmem [#allocation1], 16
        %667 = vst [vmem:[%s666] ss:$2 sm:$0xff] %v662
        %v668 = vld.sshfl [vmem:[#allocation1] sm:$0xff pattern:$0x75316420]
        %v669 = vld.sshfl [vmem:[#allocation1 + $0x8] sm:$0xff pattern:$0x75316420]
        %v670 = vld.sshfl [vmem:[#allocation1 + $0x10] sm:$0xff pattern:$0x75316420]
        %v671 = vld.sshfl [vmem:[#allocation1 + $0x18] sm:$0xff pattern:$0x75316420]
        %672 = vrot.lane.b32.xlu0 %v668, 84
        %v673 = vpop.permute.xlu0 %672
        %674 = vrot.lane.b32.xlu0 %v669, 84
        %v675 = vpop.permute.xlu0 %674
        %676 = vrot.lane.b32.xlu0 %v670, 84
        %v677 = vpop.permute.xlu0 %676
        %678 = vrot.lane.b32.xlu0 %v671, 84
        %v679 = vpop.permute.xlu0 %678
        %vm680 = vcmask 687104
        %v681 = vsel %vm680, %v673, %v675
        %v682 = vsel %vm680, %v675, %v677
        %v683 = vsel %vm680, %v677, %v679
        %687 = vst [vmem:[#allocation3 + $0xa8] sm:$0xf] %v681
        %688 = vst [vmem:[#allocation3 + $0xb0] sm:$0xf] %v682
        %689 = vst [vmem:[#allocation3 + $0xb8] sm:$0xf] %v683
        %v690 = vld [vmem:[%s219] sm:$0xff]
        %v691 = vld [vmem:[%s219 + $0x8] sm:$0xff]
        %s694 = scalar_lea.vmem [#allocation1], 1
        %695 = vst [vmem:[%s694] ss:$2 sm:$0xff] %v690
        %s696 = scalar_lea.vmem [#allocation1], 17
        %697 = vst [vmem:[%s696] ss:$2 sm:$0xff] %v691
        %v698 = vld.sshfl [vmem:[#allocation1] sm:$0xff pattern:$0x75316420]
        %v699 = vld.sshfl [vmem:[#allocation1 + $0x8] sm:$0xff pattern:$0x75316420]
        %v700 = vld.sshfl [vmem:[#allocation1 + $0x10] sm:$0xff pattern:$0x75316420]
        %v701 = vld.sshfl [vmem:[#allocation1 + $0x18] sm:$0xff pattern:$0x75316420]
        %702 = vrot.lane.b32.xlu0 %v698, 83
        %v703 = vpop.permute.xlu0 %702
        %704 = vrot.lane.b32.xlu0 %v699, 83
        %v705 = vpop.permute.xlu0 %704
        %706 = vrot.lane.b32.xlu0 %v700, 83
        %v707 = vpop.permute.xlu0 %706
        %708 = vrot.lane.b32.xlu0 %v701, 83
        %v709 = vpop.permute.xlu0 %708
        %vm710 = vcmask 678912
        %v711 = vsel %vm710, %v703, %v705
        %v712 = vsel %vm710, %v705, %v707
        %v713 = vsel %vm710, %v707, %v709
        %717 = vst [vmem:[#allocation3 + $0xa8] sm:$0xf0] %v711
        %718 = vst [vmem:[#allocation3 + $0xb0] sm:$0xf0] %v712
        %719 = vst [vmem:[#allocation3 + $0xb8] sm:$0xf0] %v713
        %v720 = vld [vmem:[%s219] sm:$0xff]
        %v721 = vld [vmem:[%s219 + $0x8] sm:$0xff]
        %724 = vst [vmem:[#allocation1] ss:$2 sm:$0xff] %v720
        %s725 = scalar_lea.vmem [#allocation1], 16
        %726 = vst [vmem:[%s725] ss:$2 sm:$0xff] %v721
        %v727 = vld.sshfl [vmem:[#allocation1] sm:$0xff pattern:$0x75316420]
        %v728 = vld.sshfl [vmem:[#allocation1 + $0x8] sm:$0xff pattern:$0x75316420]
        %v729 = vld.sshfl [vmem:[#allocation1 + $0x10] sm:$0xff pattern:$0x75316420]
        %v730 = vld.sshfl [vmem:[#allocation1 + $0x18] sm:$0xff pattern:$0x75316420]
        %731 = vrot.lane.b32.xlu0 %v727, 82
        %v732 = vpop.permute.xlu0 %731
        %733 = vrot.lane.b32.xlu0 %v728, 82
        %v734 = vpop.permute.xlu0 %733
        %735 = vrot.lane.b32.xlu0 %v729, 82
        %v736 = vpop.permute.xlu0 %735
        %737 = vrot.lane.b32.xlu0 %v730, 82
        %v738 = vpop.permute.xlu0 %737
        %vm739 = vcmask 670720
        %v740 = vsel %vm739, %v732, %v734
        %v741 = vsel %vm739, %v734, %v736
        %v742 = vsel %vm739, %v736, %v738
        %746 = vst [vmem:[#allocation3 + $0xc0] sm:$0xf] %v740
        %747 = vst [vmem:[#allocation3 + $0xc8] sm:$0xf] %v741
        %748 = vst [vmem:[#allocation3 + $0xd0] sm:$0xf] %v742
        %v749 = vld [vmem:[%s219] sm:$0xff]
        %v750 = vld [vmem:[%s219 + $0x8] sm:$0xff]
        %s753 = scalar_lea.vmem [#allocation1], 1
        %754 = vst [vmem:[%s753] ss:$2 sm:$0xff] %v749
        %s755 = scalar_lea.vmem [#allocation1], 17
        %756 = vst [vmem:[%s755] ss:$2 sm:$0xff] %v750
        %v757 = vld.sshfl [vmem:[#allocation1] sm:$0xff pattern:$0x75316420]
        %v758 = vld.sshfl [vmem:[#allocation1 + $0x8] sm:$0xff pattern:$0x75316420]
        %v759 = vld.sshfl [vmem:[#allocation1 + $0x10] sm:$0xff pattern:$0x75316420]
        %v760 = vld.sshfl [vmem:[#allocation1 + $0x18] sm:$0xff pattern:$0x75316420]
        %761 = vrot.lane.b32.xlu0 %v757, 81
        %v762 = vpop.permute.xlu0 %761
        %763 = vrot.lane.b32.xlu0 %v758, 81
        %v764 = vpop.permute.xlu0 %763
        %765 = vrot.lane.b32.xlu0 %v759, 81
        %v766 = vpop.permute.xlu0 %765
        %767 = vrot.lane.b32.xlu0 %v760, 81
        %v768 = vpop.permute.xlu0 %767
        %vm769 = vcmask 662528
        %v770 = vsel %vm769, %v762, %v764
        %v771 = vsel %vm769, %v764, %v766
        %v772 = vsel %vm769, %v766, %v768
        %776 = vst [vmem:[#allocation3 + $0xc0] sm:$0xf0] %v770
        %777 = vst [vmem:[#allocation3 + $0xc8] sm:$0xf0] %v771
        %778 = vst [vmem:[#allocation3 + $0xd0] sm:$0xf0] %v772
        %v779 = vld [vmem:[%s219] sm:$0xff]
        %v780 = vld [vmem:[%s219 + $0x8] sm:$0xff]
        %783 = vst [vmem:[#allocation1] ss:$2 sm:$0xff] %v779
        %s784 = scalar_lea.vmem [#allocation1], 16
        %785 = vst [vmem:[%s784] ss:$2 sm:$0xff] %v780
        %v786 = vld.sshfl [vmem:[#allocation1] sm:$0xff pattern:$0x75316420]
        %v787 = vld.sshfl [vmem:[#allocation1 + $0x8] sm:$0xff pattern:$0x75316420]
        %v788 = vld.sshfl [vmem:[#allocation1 + $0x10] sm:$0xff pattern:$0x75316420]
        %v789 = vld.sshfl [vmem:[#allocation1 + $0x18] sm:$0xff pattern:$0x75316420]
        %790 = vrot.lane.b32.xlu0 %v786, 80
        %v791 = vpop.permute.xlu0 %790
        %792 = vrot.lane.b32.xlu0 %v787, 80
        %v793 = vpop.permute.xlu0 %792
        %794 = vrot.lane.b32.xlu0 %v788, 80
        %v795 = vpop.permute.xlu0 %794
        %796 = vrot.lane.b32.xlu0 %v789, 80
        %v797 = vpop.permute.xlu0 %796
        %vm798 = vcmask 654336
        %v799 = vsel %vm798, %v791, %v793
        %v800 = vsel %vm798, %v793, %v795
        %v801 = vsel %vm798, %v795, %v797
        %805 = vst [vmem:[#allocation3 + $0xd8] sm:$0xf] %v799
        %806 = vst [vmem:[#allocation3 + $0xe0] sm:$0xf] %v800
        %807 = vst [vmem:[#allocation3 + $0xe8] sm:$0xf] %v801
        %v808 = vld [vmem:[%s219] sm:$0xff]
        %v809 = vld [vmem:[%s219 + $0x8] sm:$0xff]
        %s812 = scalar_lea.vmem [#allocation1], 1
        %813 = vst [vmem:[%s812] ss:$2 sm:$0xff] %v808
        %s814 = scalar_lea.vmem [#allocation1], 17
        %815 = vst [vmem:[%s814] ss:$2 sm:$0xff] %v809
        %v816 = vld.sshfl [vmem:[#allocation1] sm:$0xff pattern:$0x75316420]
        %v817 = vld.sshfl [vmem:[#allocation1 + $0x8] sm:$0xff pattern:$0x75316420]
        %v818 = vld.sshfl [vmem:[#allocation1 + $0x10] sm:$0xff pattern:$0x75316420]
        %v819 = vld.sshfl [vmem:[#allocation1 + $0x18] sm:$0xff pattern:$0x75316420]
        %820 = vrot.lane.b32.xlu0 %v816, 79
        %v821 = vpop.permute.xlu0 %820
        %822 = vrot.lane.b32.xlu0 %v817, 79
        %v823 = vpop.permute.xlu0 %822
        %824 = vrot.lane.b32.xlu0 %v818, 79
        %v825 = vpop.permute.xlu0 %824
        %826 = vrot.lane.b32.xlu0 %v819, 79
        %v827 = vpop.permute.xlu0 %826
        %vm828 = vcmask 646144
        %v829 = vsel %vm828, %v821, %v823
        %v830 = vsel %vm828, %v823, %v825
        %v831 = vsel %vm828, %v825, %v827
        %835 = vst [vmem:[#allocation3 + $0xd8] sm:$0xf0] %v829
        %836 = vst [vmem:[#allocation3 + $0xe0] sm:$0xf0] %v830
        %837 = vst [vmem:[#allocation3 + $0xe8] sm:$0xf0] %v831
        %v838 = vld [vmem:[%s219] sm:$0xff]
        %v839 = vld [vmem:[%s219 + $0x8] sm:$0xff]
        %842 = vst [vmem:[#allocation1] ss:$2 sm:$0xff] %v838
        %s843 = scalar_lea.vmem [#allocation1], 16
        %844 = vst [vmem:[%s843] ss:$2 sm:$0xff] %v839
        %v845 = vld.sshfl [vmem:[#allocation1] sm:$0xff pattern:$0x75316420]
        %v846 = vld.sshfl [vmem:[#allocation1 + $0x8] sm:$0xff pattern:$0x75316420]
        %v847 = vld.sshfl [vmem:[#allocation1 + $0x10] sm:$0xff pattern:$0x75316420]
        %v848 = vld.sshfl [vmem:[#allocation1 + $0x18] sm:$0xff pattern:$0x75316420]
        %849 = vrot.lane.b32.xlu0 %v845, 78
        %v850 = vpop.permute.xlu0 %849
        %851 = vrot.lane.b32.xlu0 %v846, 78
        %v852 = vpop.permute.xlu0 %851
        %853 = vrot.lane.b32.xlu0 %v847, 78
        %v854 = vpop.permute.xlu0 %853
        %855 = vrot.lane.b32.xlu0 %v848, 78
        %v856 = vpop.permute.xlu0 %855
        %vm857 = vcmask 637952
        %v858 = vsel %vm857, %v850, %v852
        %v859 = vsel %vm857, %v852, %v854
        %v860 = vsel %vm857, %v854, %v856
        %864 = vst [vmem:[#allocation3 + $0xf0] sm:$0xf] %v858
        %865 = vst [vmem:[#allocation3 + $0xf8] sm:$0xf] %v859
        %866 = vst [vmem:[#allocation3 + $0x100] sm:$0xf] %v860
        %v867 = vld [vmem:[%s219] sm:$0xff]
        %v868 = vld [vmem:[%s219 + $0x8] sm:$0xff]
        %s871 = scalar_lea.vmem [#allocation1], 1
        %872 = vst [vmem:[%s871] ss:$2 sm:$0xff] %v867
        %s873 = scalar_lea.vmem [#allocation1], 17
        %874 = vst [vmem:[%s873] ss:$2 sm:$0xff] %v868
        %v875 = vld.sshfl [vmem:[#allocation1] sm:$0xff pattern:$0x75316420]
        %v876 = vld.sshfl [vmem:[#allocation1 + $0x8] sm:$0xff pattern:$0x75316420]
        %v877 = vld.sshfl [vmem:[#allocation1 + $0x10] sm:$0xff pattern:$0x75316420]
        %v878 = vld.sshfl [vmem:[#allocation1 + $0x18] sm:$0xff pattern:$0x75316420]
        %879 = vrot.lane.b32.xlu0 %v875, 62
        %v880 = vpop.permute.xlu0 %879
        %881 = vrot.lane.b32.xlu0 %v876, 62
        %v882 = vpop.permute.xlu0 %881
        %883 = vrot.lane.b32.xlu0 %v877, 62
        %v884 = vpop.permute.xlu0 %883
        %885 = vrot.lane.b32.xlu0 %v878, 62
        %v886 = vpop.permute.xlu0 %885
        %vm887 = vcmask 506880
        %v888 = vsel %vm887, %v880, %v882
        %v889 = vsel %vm887, %v882, %v884
        %v890 = vsel %vm887, %v884, %v886
        %894 = vst [vmem:[#allocation3 + $0xf0] sm:$0xf0] %v888
        %895 = vst [vmem:[#allocation3 + $0xf8] sm:$0xf0] %v889
        %896 = vst [vmem:[#allocation3 + $0x100] sm:$0xf0] %v890
        %v897 = vld [vmem:[%s219] sm:$0xff]
        %v898 = vld [vmem:[%s219 + $0x8] sm:$0xff]
        %901 = vst [vmem:[#allocation1] ss:$2 sm:$0xff] %v897
        %s902 = scalar_lea.vmem [#allocation1], 16
        %903 = vst [vmem:[%s902] ss:$2 sm:$0xff] %v898
        %v904 = vld.sshfl [vmem:[#allocation1] sm:$0xff pattern:$0x75316420]
        %v905 = vld.sshfl [vmem:[#allocation1 + $0x8] sm:$0xff pattern:$0x75316420]
        %v906 = vld.sshfl [vmem:[#allocation1 + $0x10] sm:$0xff pattern:$0x75316420]
        %v907 = vld.sshfl [vmem:[#allocation1 + $0x18] sm:$0xff pattern:$0x75316420]
        %908 = vrot.lane.b32.xlu0 %v904, 61
        %v909 = vpop.permute.xlu0 %908
        %910 = vrot.lane.b32.xlu0 %v905, 61
        %v911 = vpop.permute.xlu0 %910
        %912 = vrot.lane.b32.xlu0 %v906, 61
        %v913 = vpop.permute.xlu0 %912
        %914 = vrot.lane.b32.xlu0 %v907, 61
        %v915 = vpop.permute.xlu0 %914
        %vm916 = vcmask 498688
        %v917 = vsel %vm916, %v909, %v911
        %v918 = vsel %vm916, %v911, %v913
        %v919 = vsel %vm916, %v913, %v915
        %923 = vst [vmem:[#allocation3 + $0x108] sm:$0xf] %v917
        %924 = vst [vmem:[#allocation3 + $0x110] sm:$0xf] %v918
        %925 = vst [vmem:[#allocation3 + $0x118] sm:$0xf] %v919
        %v926 = vld [vmem:[%s219] sm:$0xff]
        %v927 = vld [vmem:[%s219 + $0x8] sm:$0xff]
        %s930 = scalar_lea.vmem [#allocation1], 1
        %931 = vst [vmem:[%s930] ss:$2 sm:$0xff] %v926
        %s932 = scalar_lea.vmem [#allocation1], 17
        %933 = vst [vmem:[%s932] ss:$2 sm:$0xff] %v927
        %v934 = vld.sshfl [vmem:[#allocation1] sm:$0xff pattern:$0x75316420]
        %v935 = vld.sshfl [vmem:[#allocation1 + $0x8] sm:$0xff pattern:$0x75316420]
        %v936 = vld.sshfl [vmem:[#allocation1 + $0x10] sm:$0xff pattern:$0x75316420]
        %v937 = vld.sshfl [vmem:[#allocation1 + $0x18] sm:$0xff pattern:$0x75316420]
        %938 = vrot.lane.b32.xlu0 %v934, 60
        %v939 = vpop.permute.xlu0 %938
        %940 = vrot.lane.b32.xlu0 %v935, 60
        %v941 = vpop.permute.xlu0 %940
        %942 = vrot.lane.b32.xlu0 %v936, 60
        %v943 = vpop.permute.xlu0 %942
        %944 = vrot.lane.b32.xlu0 %v937, 60
        %v945 = vpop.permute.xlu0 %944
        %vm946 = vcmask 490496
        %v947 = vsel %vm946, %v939, %v941
        %v948 = vsel %vm946, %v941, %v943
        %v949 = vsel %vm946, %v943, %v945
        %953 = vst [vmem:[#allocation3 + $0x108] sm:$0xf0] %v947
        %954 = vst [vmem:[#allocation3 + $0x110] sm:$0xf0] %v948
        %955 = vst [vmem:[#allocation3 + $0x118] sm:$0xf0] %v949
        %v956 = vld [vmem:[%s219] sm:$0xff]
        %v957 = vld [vmem:[%s219 + $0x8] sm:$0xff]
        %960 = vst [vmem:[#allocation1] ss:$2 sm:$0xff] %v956
        %s961 = scalar_lea.vmem [#allocation1], 16
        %962 = vst [vmem:[%s961] ss:$2 sm:$0xff] %v957
        %v963 = vld.sshfl [vmem:[#allocation1] sm:$0xff pattern:$0x75316420]
        %v964 = vld.sshfl [vmem:[#allocation1 + $0x8] sm:$0xff pattern:$0x75316420]
        %v965 = vld.sshfl [vmem:[#allocation1 + $0x10] sm:$0xff pattern:$0x75316420]
        %v966 = vld.sshfl [vmem:[#allocation1 + $0x18] sm:$0xff pattern:$0x75316420]
        %967 = vrot.lane.b32.xlu0 %v963, 59
        %v968 = vpop.permute.xlu0 %967
        %969 = vrot.lane.b32.xlu0 %v964, 59
        %v970 = vpop.permute.xlu0 %969
        %971 = vrot.lane.b32.xlu0 %v965, 59
        %v972 = vpop.permute.xlu0 %971
        %973 = vrot.lane.b32.xlu0 %v966, 59
        %v974 = vpop.permute.xlu0 %973
        %vm975 = vcmask 482304
        %v976 = vsel %vm975, %v968, %v970
        %v977 = vsel %vm975, %v970, %v972
        %v978 = vsel %vm975, %v972, %v974
        %982 = vst [vmem:[#allocation3 + $0x120] sm:$0xf] %v976
        %983 = vst [vmem:[#allocation3 + $0x128] sm:$0xf] %v977
        %984 = vst [vmem:[#allocation3 + $0x130] sm:$0xf] %v978
        %v985 = vld [vmem:[%s219] sm:$0xff]
        %v986 = vld [vmem:[%s219 + $0x8] sm:$0xff]
        %s989 = scalar_lea.vmem [#allocation1], 1
        %990 = vst [vmem:[%s989] ss:$2 sm:$0xff] %v985
        %s991 = scalar_lea.vmem [#allocation1], 17
        %992 = vst [vmem:[%s991] ss:$2 sm:$0xff] %v986
        %v993 = vld.sshfl [vmem:[#allocation1] sm:$0xff pattern:$0x75316420]
        %v994 = vld.sshfl [vmem:[#allocation1 + $0x8] sm:$0xff pattern:$0x75316420]
        %v995 = vld.sshfl [vmem:[#allocation1 + $0x10] sm:$0xff pattern:$0x75316420]
        %v996 = vld.sshfl [vmem:[#allocation1 + $0x18] sm:$0xff pattern:$0x75316420]
        %997 = vrot.lane.b32.xlu0 %v993, 58
        %v998 = vpop.permute.xlu0 %997
        %999 = vrot.lane.b32.xlu0 %v994, 58
        %v1000 = vpop.permute.xlu0 %999
        %1001 = vrot.lane.b32.xlu0 %v995, 58
        %v1002 = vpop.permute.xlu0 %1001
        %1003 = vrot.lane.b32.xlu0 %v996, 58
        %v1004 = vpop.permute.xlu0 %1003
        %vm1005 = vcmask 474112
        %v1006 = vsel %vm1005, %v998, %v1000
        %v1007 = vsel %vm1005, %v1000, %v1002
        %v1008 = vsel %vm1005, %v1002, %v1004
        %1012 = vst [vmem:[#allocation3 + $0x120] sm:$0xf0] %v1006
        %1013 = vst [vmem:[#allocation3 + $0x128] sm:$0xf0] %v1007
        %1014 = vst [vmem:[#allocation3 + $0x130] sm:$0xf0] %v1008
        %v1015 = vld [vmem:[%s219] sm:$0xff]
        %v1016 = vld [vmem:[%s219 + $0x8] sm:$0xff]
        %1019 = vst [vmem:[#allocation1] ss:$2 sm:$0xff] %v1015
        %s1020 = scalar_lea.vmem [#allocation1], 16
        %1021 = vst [vmem:[%s1020] ss:$2 sm:$0xff] %v1016
        %v1022 = vld.sshfl [vmem:[#allocation1] sm:$0xff pattern:$0x75316420]
        %v1023 = vld.sshfl [vmem:[#allocation1 + $0x8] sm:$0xff pattern:$0x75316420]
        %v1024 = vld.sshfl [vmem:[#allocation1 + $0x10] sm:$0xff pattern:$0x75316420]
        %v1025 = vld.sshfl [vmem:[#allocation1 + $0x18] sm:$0xff pattern:$0x75316420]
        %1026 = vrot.lane.b32.xlu0 %v1022, 57
        %v1027 = vpop.permute.xlu0 %1026
        %1028 = vrot.lane.b32.xlu0 %v1023, 57
        %v1029 = vpop.permute.xlu0 %1028
        %1030 = vrot.lane.b32.xlu0 %v1024, 57
        %v1031 = vpop.permute.xlu0 %1030
        %1032 = vrot.lane.b32.xlu0 %v1025, 57
        %v1033 = vpop.permute.xlu0 %1032
        %vm1034 = vcmask 465920
        %v1035 = vsel %vm1034, %v1027, %v1029
        %v1036 = vsel %vm1034, %v1029, %v1031
        %v1037 = vsel %vm1034, %v1031, %v1033
        %1041 = vst [vmem:[#allocation3 + $0x138] sm:$0xf] %v1035
        %1042 = vst [vmem:[#allocation3 + $0x140] sm:$0xf] %v1036
        %1043 = vst [vmem:[#allocation3 + $0x148] sm:$0xf] %v1037
        %v1044 = vld [vmem:[%s219] sm:$0xff]
        %v1045 = vld [vmem:[%s219 + $0x8] sm:$0xff]
        %s1048 = scalar_lea.vmem [#allocation1], 1
        %1049 = vst [vmem:[%s1048] ss:$2 sm:$0xff] %v1044
        %s1050 = scalar_lea.vmem [#allocation1], 17
        %1051 = vst [vmem:[%s1050] ss:$2 sm:$0xff] %v1045
        %v1052 = vld.sshfl [vmem:[#allocation1] sm:$0xff pattern:$0x75316420]
        %v1053 = vld.sshfl [vmem:[#allocation1 + $0x8] sm:$0xff pattern:$0x75316420]
        %v1054 = vld.sshfl [vmem:[#allocation1 + $0x10] sm:$0xff pattern:$0x75316420]
        %v1055 = vld.sshfl [vmem:[#allocation1 + $0x18] sm:$0xff pattern:$0x75316420]
        %1056 = vrot.lane.b32.xlu0 %v1052, 56
        %v1057 = vpop.permute.xlu0 %1056
        %1058 = vrot.lane.b32.xlu0 %v1053, 56
        %v1059 = vpop.permute.xlu0 %1058
        %1060 = vrot.lane.b32.xlu0 %v1054, 56
        %v1061 = vpop.permute.xlu0 %1060
        %1062 = vrot.lane.b32.xlu0 %v1055, 56
        %v1063 = vpop.permute.xlu0 %1062
        %vm1064 = vcmask 457728
        %v1065 = vsel %vm1064, %v1057, %v1059
        %v1066 = vsel %vm1064, %v1059, %v1061
        %v1067 = vsel %vm1064, %v1061, %v1063
        %1071 = vst [vmem:[#allocation3 + $0x138] sm:$0xf0] %v1065
        %1072 = vst [vmem:[#allocation3 + $0x140] sm:$0xf0] %v1066
        %1073 = vst [vmem:[#allocation3 + $0x148] sm:$0xf0] %v1067
        %v1074 = vld [vmem:[%s219] sm:$0xff]
        %v1075 = vld [vmem:[%s219 + $0x8] sm:$0xff]
        %1078 = vst [vmem:[#allocation1] ss:$2 sm:$0xff] %v1074
        %s1079 = scalar_lea.vmem [#allocation1], 16
        %1080 = vst [vmem:[%s1079] ss:$2 sm:$0xff] %v1075
        %v1081 = vld.sshfl [vmem:[#allocation1] sm:$0xff pattern:$0x75316420]
        %v1082 = vld.sshfl [vmem:[#allocation1 + $0x8] sm:$0xff pattern:$0x75316420]
        %v1083 = vld.sshfl [vmem:[#allocation1 + $0x10] sm:$0xff pattern:$0x75316420]
        %v1084 = vld.sshfl [vmem:[#allocation1 + $0x18] sm:$0xff pattern:$0x75316420]
        %1085 = vrot.lane.b32.xlu0 %v1081, 40
        %v1086 = vpop.permute.xlu0 %1085
        %1087 = vrot.lane.b32.xlu0 %v1082, 40
        %v1088 = vpop.permute.xlu0 %1087
        %1089 = vrot.lane.b32.xlu0 %v1083, 40
        %v1090 = vpop.permute.xlu0 %1089
        %1091 = vrot.lane.b32.xlu0 %v1084, 40
        %v1092 = vpop.permute.xlu0 %1091
        %vm1093 = vcmask 326656
        %v1094 = vsel %vm1093, %v1086, %v1088
        %v1095 = vsel %vm1093, %v1088, %v1090
        %v1096 = vsel %vm1093, %v1090, %v1092
        %1100 = vst [vmem:[#allocation3 + $0x150] sm:$0xf] %v1094
        %1101 = vst [vmem:[#allocation3 + $0x158] sm:$0xf] %v1095
        %1102 = vst [vmem:[#allocation3 + $0x160] sm:$0xf] %v1096
        %v1103 = vld [vmem:[%s219] sm:$0xff]
        %v1104 = vld [vmem:[%s219 + $0x8] sm:$0xff]
        %s1107 = scalar_lea.vmem [#allocation1], 1
        %1108 = vst [vmem:[%s1107] ss:$2 sm:$0xff] %v1103
        %s1109 = scalar_lea.vmem [#allocation1], 17
        %1110 = vst [vmem:[%s1109] ss:$2 sm:$0xff] %v1104
        %v1111 = vld.sshfl [vmem:[#allocation1] sm:$0xff pattern:$0x75316420]
        %v1112 = vld.sshfl [vmem:[#allocation1 + $0x8] sm:$0xff pattern:$0x75316420]
        %v1113 = vld.sshfl [vmem:[#allocation1 + $0x10] sm:$0xff pattern:$0x75316420]
        %v1114 = vld.sshfl [vmem:[#allocation1 + $0x18] sm:$0xff pattern:$0x75316420]
        %1115 = vrot.lane.b32.xlu0 %v1111, 39
        %v1116 = vpop.permute.xlu0 %1115
        %1117 = vrot.lane.b32.xlu0 %v1112, 39
        %v1118 = vpop.permute.xlu0 %1117
        %1119 = vrot.lane.b32.xlu0 %v1113, 39
        %v1120 = vpop.permute.xlu0 %1119
        %1121 = vrot.lane.b32.xlu0 %v1114, 39
        %v1122 = vpop.permute.xlu0 %1121
        %vm1123 = vcmask 318464
        %v1124 = vsel %vm1123, %v1116, %v1118
        %v1125 = vsel %vm1123, %v1118, %v1120
        %v1126 = vsel %vm1123, %v1120, %v1122
        %1130 = vst [vmem:[#allocation3 + $0x150] sm:$0xf0] %v1124
        %1131 = vst [vmem:[#allocation3 + $0x158] sm:$0xf0] %v1125
        %1132 = vst [vmem:[#allocation3 + $0x160] sm:$0xf0] %v1126
        %v1133 = vld [vmem:[%s219] sm:$0xff]
        %v1134 = vld [vmem:[%s219 + $0x8] sm:$0xff]
        %1137 = vst [vmem:[#allocation1] ss:$2 sm:$0xff] %v1133
        %s1138 = scalar_lea.vmem [#allocation1], 16
        %1139 = vst [vmem:[%s1138] ss:$2 sm:$0xff] %v1134
        %v1140 = vld.sshfl [vmem:[#allocation1] sm:$0xff pattern:$0x75316420]
        %v1141 = vld.sshfl [vmem:[#allocation1 + $0x8] sm:$0xff pattern:$0x75316420]
        %v1142 = vld.sshfl [vmem:[#allocation1 + $0x10] sm:$0xff pattern:$0x75316420]
        %v1143 = vld.sshfl [vmem:[#allocation1 + $0x18] sm:$0xff pattern:$0x75316420]
        %1144 = vrot.lane.b32.xlu0 %v1140, 38
        %v1145 = vpop.permute.xlu0 %1144
        %1146 = vrot.lane.b32.xlu0 %v1141, 38
        %v1147 = vpop.permute.xlu0 %1146
        %1148 = vrot.lane.b32.xlu0 %v1142, 38
        %v1149 = vpop.permute.xlu0 %1148
        %1150 = vrot.lane.b32.xlu0 %v1143, 38
        %v1151 = vpop.permute.xlu0 %1150
        %vm1152 = vcmask 310272
        %v1153 = vsel %vm1152, %v1145, %v1147
        %v1154 = vsel %vm1152, %v1147, %v1149
        %v1155 = vsel %vm1152, %v1149, %v1151
        %1159 = vst [vmem:[#allocation3 + $0x168] sm:$0xf] %v1153
        %1160 = vst [vmem:[#allocation3 + $0x170] sm:$0xf] %v1154
        %1161 = vst [vmem:[#allocation3 + $0x178] sm:$0xf] %v1155
        %v1162 = vld [vmem:[%s219] sm:$0xff]
        %v1163 = vld [vmem:[%s219 + $0x8] sm:$0xff]
        %s1166 = scalar_lea.vmem [#allocation1], 1
        %1167 = vst [vmem:[%s1166] ss:$2 sm:$0xff] %v1162
        %s1168 = scalar_lea.vmem [#allocation1], 17
        %1169 = vst [vmem:[%s1168] ss:$2 sm:$0xff] %v1163
        %v1170 = vld.sshfl [vmem:[#allocation1] sm:$0xff pattern:$0x75316420]
        %v1171 = vld.sshfl [vmem:[#allocation1 + $0x8] sm:$0xff pattern:$0x75316420]
        %v1172 = vld.sshfl [vmem:[#allocation1 + $0x10] sm:$0xff pattern:$0x75316420]
        %v1173 = vld.sshfl [vmem:[#allocation1 + $0x18] sm:$0xff pattern:$0x75316420]
        %1174 = vrot.lane.b32.xlu0 %v1170, 37
        %v1175 = vpop.permute.xlu0 %1174
        %1176 = vrot.lane.b32.xlu0 %v1171, 37
        %v1177 = vpop.permute.xlu0 %1176
        %1178 = vrot.lane.b32.xlu0 %v1172, 37
        %v1179 = vpop.permute.xlu0 %1178
        %1180 = vrot.lane.b32.xlu0 %v1173, 37
        %v1181 = vpop.permute.xlu0 %1180
        %vm1182 = vcmask 302080
        %v1183 = vsel %vm1182, %v1175, %v1177
        %v1184 = vsel %vm1182, %v1177, %v1179
        %v1185 = vsel %vm1182, %v1179, %v1181
        %1189 = vst [vmem:[#allocation3 + $0x168] sm:$0xf0] %v1183
        %1190 = vst [vmem:[#allocation3 + $0x170] sm:$0xf0] %v1184
        %1191 = vst [vmem:[#allocation3 + $0x178] sm:$0xf0] %v1185
        %v1192 = vld [vmem:[%s219] sm:$0xff]
        %v1193 = vld [vmem:[%s219 + $0x8] sm:$0xff]
        %1196 = vst [vmem:[#allocation1] ss:$2 sm:$0xff] %v1192
        %s1197 = scalar_lea.vmem [#allocation1], 16
        %1198 = vst [vmem:[%s1197] ss:$2 sm:$0xff] %v1193
        %v1199 = vld.sshfl [vmem:[#allocation1] sm:$0xff pattern:$0x75316420]
        %v1200 = vld.sshfl [vmem:[#allocation1 + $0x8] sm:$0xff pattern:$0x75316420]
        %v1201 = vld.sshfl [vmem:[#allocation1 + $0x10] sm:$0xff pattern:$0x75316420]
        %v1202 = vld.sshfl [vmem:[#allocation1 + $0x18] sm:$0xff pattern:$0x75316420]
        %1203 = vrot.lane.b32.xlu0 %v1199, 36
        %v1204 = vpop.permute.xlu0 %1203
        %1205 = vrot.lane.b32.xlu0 %v1200, 36
        %v1206 = vpop.permute.xlu0 %1205
        %1207 = vrot.lane.b32.xlu0 %v1201, 36
        %v1208 = vpop.permute.xlu0 %1207
        %1209 = vrot.lane.b32.xlu0 %v1202, 36
        %v1210 = vpop.permute.xlu0 %1209
        %vm1211 = vcmask 293888
        %v1212 = vsel %vm1211, %v1204, %v1206
        %v1213 = vsel %vm1211, %v1206, %v1208
        %v1214 = vsel %vm1211, %v1208, %v1210
        %1218 = vst [vmem:[#allocation3 + $0x180] sm:$0xf] %v1212
        %1219 = vst [vmem:[#allocation3 + $0x188] sm:$0xf] %v1213
        %1220 = vst [vmem:[#allocation3 + $0x190] sm:$0xf] %v1214
        %v1221 = vld [vmem:[%s219] sm:$0xff]
        %v1222 = vld [vmem:[%s219 + $0x8] sm:$0xff]
        %s1225 = scalar_lea.vmem [#allocation1], 1
        %1226 = vst [vmem:[%s1225] ss:$2 sm:$0xff] %v1221
        %s1227 = scalar_lea.vmem [#allocation1], 17
        %1228 = vst [vmem:[%s1227] ss:$2 sm:$0xff] %v1222
        %v1229 = vld.sshfl [vmem:[#allocation1] sm:$0xff pattern:$0x75316420]
        %v1230 = vld.sshfl [vmem:[#allocation1 + $0x8] sm:$0xff pattern:$0x75316420]
        %v1231 = vld.sshfl [vmem:[#allocation1 + $0x10] sm:$0xff pattern:$0x75316420]
        %v1232 = vld.sshfl [vmem:[#allocation1 + $0x18] sm:$0xff pattern:$0x75316420]
        %1233 = vrot.lane.b32.xlu0 %v1229, 35
        %v1234 = vpop.permute.xlu0 %1233
        %1235 = vrot.lane.b32.xlu0 %v1230, 35
        %v1236 = vpop.permute.xlu0 %1235
        %1237 = vrot.lane.b32.xlu0 %v1231, 35
        %v1238 = vpop.permute.xlu0 %1237
        %1239 = vrot.lane.b32.xlu0 %v1232, 35
        %v1240 = vpop.permute.xlu0 %1239
        %vm1241 = vcmask 285696
        %v1242 = vsel %vm1241, %v1234, %v1236
        %v1243 = vsel %vm1241, %v1236, %v1238
        %v1244 = vsel %vm1241, %v1238, %v1240
        %1248 = vst [vmem:[#allocation3 + $0x180] sm:$0xf0] %v1242
        %1249 = vst [vmem:[#allocation3 + $0x188] sm:$0xf0] %v1243
        %1250 = vst [vmem:[#allocation3 + $0x190] sm:$0xf0] %v1244
        %v1251 = vld [vmem:[%s219] sm:$0xff]
        %v1252 = vld [vmem:[%s219 + $0x8] sm:$0xff]
        %1255 = vst [vmem:[#allocation1] ss:$2 sm:$0xff] %v1251
        %s1256 = scalar_lea.vmem [#allocation1], 16
        %1257 = vst [vmem:[%s1256] ss:$2 sm:$0xff] %v1252
        %v1258 = vld.sshfl [vmem:[#allocation1] sm:$0xff pattern:$0x75316420]
        %v1259 = vld.sshfl [vmem:[#allocation1 + $0x8] sm:$0xff pattern:$0x75316420]
        %v1260 = vld.sshfl [vmem:[#allocation1 + $0x10] sm:$0xff pattern:$0x75316420]
        %v1261 = vld.sshfl [vmem:[#allocation1 + $0x18] sm:$0xff pattern:$0x75316420]
        %1262 = vrot.lane.b32.xlu0 %v1258, 34
        %v1263 = vpop.permute.xlu0 %1262
        %1264 = vrot.lane.b32.xlu0 %v1259, 34
        %v1265 = vpop.permute.xlu0 %1264
        %1266 = vrot.lane.b32.xlu0 %v1260, 34
        %v1267 = vpop.permute.xlu0 %1266
        %1268 = vrot.lane.b32.xlu0 %v1261, 34
        %v1269 = vpop.permute.xlu0 %1268
        %vm1270 = vcmask 277504
        %v1271 = vsel %vm1270, %v1263, %v1265
        %v1272 = vsel %vm1270, %v1265, %v1267
        %v1273 = vsel %vm1270, %v1267, %v1269
        %1277 = vst [vmem:[#allocation3 + $0x198] sm:$0xf] %v1271
        %1278 = vst [vmem:[#allocation3 + $0x1a0] sm:$0xf] %v1272
        %1279 = vst [vmem:[#allocation3 + $0x1a8] sm:$0xf] %v1273
        %v1280 = vld [vmem:[%s219] sm:$0xff]
        %v1281 = vld [vmem:[%s219 + $0x8] sm:$0xff]
        %s1284 = scalar_lea.vmem [#allocation1], 1
        %1285 = vst [vmem:[%s1284] ss:$2 sm:$0xff] %v1280
        %s1286 = scalar_lea.vmem [#allocation1], 17
        %1287 = vst [vmem:[%s1286] ss:$2 sm:$0xff] %v1281
        %v1288 = vld.sshfl [vmem:[#allocation1] sm:$0xff pattern:$0x75316420]
        %v1289 = vld.sshfl [vmem:[#allocation1 + $0x8] sm:$0xff pattern:$0x75316420]
        %v1290 = vld.sshfl [vmem:[#allocation1 + $0x10] sm:$0xff pattern:$0x75316420]
        %v1291 = vld.sshfl [vmem:[#allocation1 + $0x18] sm:$0xff pattern:$0x75316420]
        %1292 = vrot.lane.b32.xlu0 %v1288, 18
        %v1293 = vpop.permute.xlu0 %1292
        %1294 = vrot.lane.b32.xlu0 %v1289, 18
        %v1295 = vpop.permute.xlu0 %1294
        %1296 = vrot.lane.b32.xlu0 %v1290, 18
        %v1297 = vpop.permute.xlu0 %1296
        %1298 = vrot.lane.b32.xlu0 %v1291, 18
        %v1299 = vpop.permute.xlu0 %1298
        %vm1300 = vcmask 146432
        %v1301 = vsel %vm1300, %v1293, %v1295
        %v1302 = vsel %vm1300, %v1295, %v1297
        %v1303 = vsel %vm1300, %v1297, %v1299
        %1307 = vst [vmem:[#allocation3 + $0x198] sm:$0xf0] %v1301
        %1308 = vst [vmem:[#allocation3 + $0x1a0] sm:$0xf0] %v1302
        %1309 = vst [vmem:[#allocation3 + $0x1a8] sm:$0xf0] %v1303
        %v1310 = vld [vmem:[%s219] sm:$0xff]
        %v1311 = vld [vmem:[%s219 + $0x8] sm:$0xff]
        %1314 = vst [vmem:[#allocation1] ss:$2 sm:$0xff] %v1310
        %s1315 = scalar_lea.vmem [#allocation1], 16
        %1316 = vst [vmem:[%s1315] ss:$2 sm:$0xff] %v1311
        %v1317 = vld.sshfl [vmem:[#allocation1] sm:$0xff pattern:$0x75316420]
        %v1318 = vld.sshfl [vmem:[#allocation1 + $0x8] sm:$0xff pattern:$0x75316420]
        %v1319 = vld.sshfl [vmem:[#allocation1 + $0x10] sm:$0xff pattern:$0x75316420]
        %v1320 = vld.sshfl [vmem:[#allocation1 + $0x18] sm:$0xff pattern:$0x75316420]
        %1321 = vrot.lane.b32.xlu0 %v1317, 17
        %v1322 = vpop.permute.xlu0 %1321
        %1323 = vrot.lane.b32.xlu0 %v1318, 17
        %v1324 = vpop.permute.xlu0 %1323
        %1325 = vrot.lane.b32.xlu0 %v1319, 17
        %v1326 = vpop.permute.xlu0 %1325
        %1327 = vrot.lane.b32.xlu0 %v1320, 17
        %v1328 = vpop.permute.xlu0 %1327
        %vm1329 = vcmask 138240
        %v1330 = vsel %vm1329, %v1322, %v1324
        %v1331 = vsel %vm1329, %v1324, %v1326
        %v1332 = vsel %vm1329, %v1326, %v1328
        %1336 = vst [vmem:[#allocation3 + $0x1b0] sm:$0xf] %v1330
        %1337 = vst [vmem:[#allocation3 + $0x1b8] sm:$0xf] %v1331
        %1338 = vst [vmem:[#allocation3 + $0x1c0] sm:$0xf] %v1332
        %v1339 = vld [vmem:[%s219] sm:$0xff]
        %v1340 = vld [vmem:[%s219 + $0x8] sm:$0xff]
        %s1343 = scalar_lea.vmem [#allocation1], 1
        %1344 = vst [vmem:[%s1343] ss:$2 sm:$0xff] %v1339
        %s1345 = scalar_lea.vmem [#allocation1], 17
        %1346 = vst [vmem:[%s1345] ss:$2 sm:$0xff] %v1340
        %v1347 = vld.sshfl [vmem:[#allocation1] sm:$0xff pattern:$0x75316420]
        %v1348 = vld.sshfl [vmem:[#allocation1 + $0x8] sm:$0xff pattern:$0x75316420]
        %v1349 = vld.sshfl [vmem:[#allocation1 + $0x10] sm:$0xff pattern:$0x75316420]
        %v1350 = vld.sshfl [vmem:[#allocation1 + $0x18] sm:$0xff pattern:$0x75316420]
        %1351 = vrot.lane.b32.xlu0 %v1347, 16
        %v1352 = vpop.permute.xlu0 %1351
        %1353 = vrot.lane.b32.xlu0 %v1348, 16
        %v1354 = vpop.permute.xlu0 %1353
        %1355 = vrot.lane.b32.xlu0 %v1349, 16
        %v1356 = vpop.permute.xlu0 %1355
        %1357 = vrot.lane.b32.xlu0 %v1350, 16
        %v1358 = vpop.permute.xlu0 %1357
        %vm1359 = vcmask 130048
        %v1360 = vsel %vm1359, %v1352, %v1354
        %v1361 = vsel %vm1359, %v1354, %v1356
        %v1362 = vsel %vm1359, %v1356, %v1358
        %1366 = vst [vmem:[#allocation3 + $0x1b0] sm:$0xf0] %v1360
        %1367 = vst [vmem:[#allocation3 + $0x1b8] sm:$0xf0] %v1361
        %1368 = vst [vmem:[#allocation3 + $0x1c0] sm:$0xf0] %v1362
        %v1369 = vld [vmem:[%s219] sm:$0xff]
        %v1370 = vld [vmem:[%s219 + $0x8] sm:$0xff]
        %1373 = vst [vmem:[#allocation1] ss:$2 sm:$0xff] %v1369
        %s1374 = scalar_lea.vmem [#allocation1], 16
        %1375 = vst [vmem:[%s1374] ss:$2 sm:$0xff] %v1370
        %v1376 = vld.sshfl [vmem:[#allocation1] sm:$0xff pattern:$0x75316420]
        %v1377 = vld.sshfl [vmem:[#allocation1 + $0x8] sm:$0xff pattern:$0x75316420]
        %v1378 = vld.sshfl [vmem:[#allocation1 + $0x10] sm:$0xff pattern:$0x75316420]
        %v1379 = vld.sshfl [vmem:[#allocation1 + $0x18] sm:$0xff pattern:$0x75316420]
        %1380 = vrot.lane.b32.xlu0 %v1376, 15
        %v1381 = vpop.permute.xlu0 %1380
        %1382 = vrot.lane.b32.xlu0 %v1377, 15
        %v1383 = vpop.permute.xlu0 %1382
        %1384 = vrot.lane.b32.xlu0 %v1378, 15
        %v1385 = vpop.permute.xlu0 %1384
        %1386 = vrot.lane.b32.xlu0 %v1379, 15
        %v1387 = vpop.permute.xlu0 %1386
        %vm1388 = vcmask 121856
        %v1389 = vsel %vm1388, %v1381, %v1383
        %v1390 = vsel %vm1388, %v1383, %v1385
        %v1391 = vsel %vm1388, %v1385, %v1387
        %1395 = vst [vmem:[#allocation3 + $0x1c8] sm:$0xf] %v1389
        %1396 = vst [vmem:[#allocation3 + $0x1d0] sm:$0xf] %v1390
        %1397 = vst [vmem:[#allocation3 + $0x1d8] sm:$0xf] %v1391
        %v1398 = vld [vmem:[%s219] sm:$0xff]
        %v1399 = vld [vmem:[%s219 + $0x8] sm:$0xff]
        %s1402 = scalar_lea.vmem [#allocation1], 1
        %1403 = vst [vmem:[%s1402] ss:$2 sm:$0xff] %v1398
        %s1404 = scalar_lea.vmem [#allocation1], 17
        %1405 = vst [vmem:[%s1404] ss:$2 sm:$0xff] %v1399
        %v1406 = vld.sshfl [vmem:[#allocation1] sm:$0xff pattern:$0x75316420]
        %v1407 = vld.sshfl [vmem:[#allocation1 + $0x8] sm:$0xff pattern:$0x75316420]
        %v1408 = vld.sshfl [vmem:[#allocation1 + $0x10] sm:$0xff pattern:$0x75316420]
        %v1409 = vld.sshfl [vmem:[#allocation1 + $0x18] sm:$0xff pattern:$0x75316420]
        %1410 = vrot.lane.b32.xlu0 %v1406, 14
        %v1411 = vpop.permute.xlu0 %1410
        %1412 = vrot.lane.b32.xlu0 %v1407, 14
        %v1413 = vpop.permute.xlu0 %1412
        %1414 = vrot.lane.b32.xlu0 %v1408, 14
        %v1415 = vpop.permute.xlu0 %1414
        %1416 = vrot.lane.b32.xlu0 %v1409, 14
        %v1417 = vpop.permute.xlu0 %1416
        %vm1418 = vcmask 113664
        %v1419 = vsel %vm1418, %v1411, %v1413
        %v1420 = vsel %vm1418, %v1413, %v1415
        %v1421 = vsel %vm1418, %v1415, %v1417
        %1425 = vst [vmem:[#allocation3 + $0x1c8] sm:$0xf0] %v1419
        %1426 = vst [vmem:[#allocation3 + $0x1d0] sm:$0xf0] %v1420
        %1427 = vst [vmem:[#allocation3 + $0x1d8] sm:$0xf0] %v1421
        %v1428 = vld [vmem:[%s219] sm:$0xff]
        %v1429 = vld [vmem:[%s219 + $0x8] sm:$0xff]
        %1432 = vst [vmem:[#allocation1] ss:$2 sm:$0xff] %v1428
        %s1433 = scalar_lea.vmem [#allocation1], 16
        %1434 = vst [vmem:[%s1433] ss:$2 sm:$0xff] %v1429
        %v1435 = vld.sshfl [vmem:[#allocation1] sm:$0xff pattern:$0x75316420]
        %v1436 = vld.sshfl [vmem:[#allocation1 + $0x8] sm:$0xff pattern:$0x75316420]
        %v1437 = vld.sshfl [vmem:[#allocation1 + $0x10] sm:$0xff pattern:$0x75316420]
        %v1438 = vld.sshfl [vmem:[#allocation1 + $0x18] sm:$0xff pattern:$0x75316420]
        %1439 = vrot.lane.b32.xlu0 %v1435, 13
        %v1440 = vpop.permute.xlu0 %1439
        %1441 = vrot.lane.b32.xlu0 %v1436, 13
        %v1442 = vpop.permute.xlu0 %1441
        %1443 = vrot.lane.b32.xlu0 %v1437, 13
        %v1444 = vpop.permute.xlu0 %1443
        %1445 = vrot.lane.b32.xlu0 %v1438, 13
        %v1446 = vpop.permute.xlu0 %1445
        %vm1447 = vcmask 105472
        %v1448 = vsel %vm1447, %v1440, %v1442
        %v1449 = vsel %vm1447, %v1442, %v1444
        %v1450 = vsel %vm1447, %v1444, %v1446
        %1454 = vst [vmem:[#allocation3 + $0x1e0] sm:$0xf] %v1448
        %1455 = vst [vmem:[#allocation3 + $0x1e8] sm:$0xf] %v1449
        %1456 = vst [vmem:[#allocation3 + $0x1f0] sm:$0xf] %v1450
        %v1457 = vld [vmem:[%s219] sm:$0xff]
        %v1458 = vld [vmem:[%s219 + $0x8] sm:$0xff]
        %s1461 = scalar_lea.vmem [#allocation1], 1
        %1462 = vst [vmem:[%s1461] ss:$2 sm:$0xff] %v1457
        %s1463 = scalar_lea.vmem [#allocation1], 17
        %1464 = vst [vmem:[%s1463] ss:$2 sm:$0xff] %v1458
        %v1465 = vld.sshfl [vmem:[#allocation1] sm:$0xff pattern:$0x75316420]
        %v1466 = vld.sshfl [vmem:[#allocation1 + $0x8] sm:$0xff pattern:$0x75316420]
        %v1467 = vld.sshfl [vmem:[#allocation1 + $0x10] sm:$0xff pattern:$0x75316420]
        %v1468 = vld.sshfl [vmem:[#allocation1 + $0x18] sm:$0xff pattern:$0x75316420]
        %1469 = vrot.lane.b32.xlu0 %v1465, 12
        %v1470 = vpop.permute.xlu0 %1469
        %1471 = vrot.lane.b32.xlu0 %v1466, 12
        %v1472 = vpop.permute.xlu0 %1471
        %1473 = vrot.lane.b32.xlu0 %v1467, 12
        %v1474 = vpop.permute.xlu0 %1473
        %1475 = vrot.lane.b32.xlu0 %v1468, 12
        %v1476 = vpop.permute.xlu0 %1475
        %vm1477 = vcmask 97280
        %v1478 = vsel %vm1477, %v1470, %v1472
        %v1479 = vsel %vm1477, %v1472, %v1474
        %v1480 = vsel %vm1477, %v1474, %v1476
        %1484 = vst [vmem:[#allocation3 + $0x1e0] sm:$0xf0] %v1478
        %1485 = vst [vmem:[#allocation3 + $0x1e8] sm:$0xf0] %v1479
        %1486 = vst [vmem:[#allocation3 + $0x1f0] sm:$0xf0] %v1480
        %v1487 = vld [vmem:[%s219 + $0x4] sm:$0xff]
        %v1488 = vld [vmem:[%s219 + $0xc] sm:$0xff]
        %1491 = vst [vmem:[#allocation1] ss:$2 sm:$0xff] %v1487
        %s1492 = scalar_lea.vmem [#allocation1], 16
        %1493 = vst [vmem:[%s1492] ss:$2 sm:$0xff] %v1488
        %v1494 = vld.sshfl [vmem:[#allocation1] sm:$0xff pattern:$0x75316420]
        %v1495 = vld.sshfl [vmem:[#allocation1 + $0x8] sm:$0xff pattern:$0x75316420]
        %v1496 = vld.sshfl [vmem:[#allocation1 + $0x10] sm:$0xff pattern:$0x75316420]
        %v1497 = vld.sshfl [vmem:[#allocation1 + $0x18] sm:$0xff pattern:$0x75316420]
        %1498 = vrot.lane.b32.xlu0 %v1494, 124
        %v1499 = vpop.permute.xlu0 %1498
        %1500 = vrot.lane.b32.xlu0 %v1495, 124
        %v1501 = vpop.permute.xlu0 %1500
        %1502 = vrot.lane.b32.xlu0 %v1496, 124
        %v1503 = vpop.permute.xlu0 %1502
        %1504 = vrot.lane.b32.xlu0 %v1497, 124
        %v1505 = vpop.permute.xlu0 %1504
        %v1506 = vsel %vm385, %v1499, %v1501
        %v1507 = vsel %vm385, %v1501, %v1503
        %v1508 = vsel %vm385, %v1503, %v1505
        %1512 = vst [vmem:[#allocation3 + $0x1f8] sm:$0xf] %v1506
        %1513 = vst [vmem:[#allocation3 + $0x200] sm:$0xf] %v1507
        %1514 = vst [vmem:[#allocation3 + $0x208] sm:$0xf] %v1508
        %v1515 = vld [vmem:[%s219 + $0x4] sm:$0xff]
        %v1516 = vld [vmem:[%s219 + $0xc] sm:$0xff]
        %s1519 = scalar_lea.vmem [#allocation1], 1
        %1520 = vst [vmem:[%s1519] ss:$2 sm:$0xff] %v1515
        %s1521 = scalar_lea.vmem [#allocation1], 17
        %1522 = vst [vmem:[%s1521] ss:$2 sm:$0xff] %v1516
        %v1523 = vld.sshfl [vmem:[#allocation1] sm:$0xff pattern:$0x75316420]
        %v1524 = vld.sshfl [vmem:[#allocation1 + $0x8] sm:$0xff pattern:$0x75316420]
        %v1525 = vld.sshfl [vmem:[#allocation1 + $0x10] sm:$0xff pattern:$0x75316420]
        %v1526 = vld.sshfl [vmem:[#allocation1 + $0x18] sm:$0xff pattern:$0x75316420]
        %1527 = vrot.lane.b32.xlu0 %v1523, 123
        %v1528 = vpop.permute.xlu0 %1527
        %1529 = vrot.lane.b32.xlu0 %v1524, 123
        %v1530 = vpop.permute.xlu0 %1529
        %1531 = vrot.lane.b32.xlu0 %v1525, 123
        %v1532 = vpop.permute.xlu0 %1531
        %1533 = vrot.lane.b32.xlu0 %v1526, 123
        %v1534 = vpop.permute.xlu0 %1533
        %v1535 = vsel %vm415, %v1528, %v1530
        %v1536 = vsel %vm415, %v1530, %v1532
        %v1537 = vsel %vm415, %v1532, %v1534
        %1541 = vst [vmem:[#allocation3 + $0x1f8] sm:$0xf0] %v1535
        %1542 = vst [vmem:[#allocation3 + $0x200] sm:$0xf0] %v1536
        %1543 = vst [vmem:[#allocation3 + $0x208] sm:$0xf0] %v1537
        %v1544 = vld [vmem:[%s219 + $0x4] sm:$0xff]
        %v1545 = vld [vmem:[%s219 + $0xc] sm:$0xff]
        %1548 = vst [vmem:[#allocation1] ss:$2 sm:$0xff] %v1544
        %s1549 = scalar_lea.vmem [#allocation1], 16
        %1550 = vst [vmem:[%s1549] ss:$2 sm:$0xff] %v1545
        %v1551 = vld.sshfl [vmem:[#allocation1] sm:$0xff pattern:$0x75316420]
        %v1552 = vld.sshfl [vmem:[#allocation1 + $0x8] sm:$0xff pattern:$0x75316420]
        %v1553 = vld.sshfl [vmem:[#allocation1 + $0x10] sm:$0xff pattern:$0x75316420]
        %v1554 = vld.sshfl [vmem:[#allocation1 + $0x18] sm:$0xff pattern:$0x75316420]
        %1555 = vrot.lane.b32.xlu0 %v1551, 122
        %v1556 = vpop.permute.xlu0 %1555
        %1557 = vrot.lane.b32.xlu0 %v1552, 122
        %v1558 = vpop.permute.xlu0 %1557
        %1559 = vrot.lane.b32.xlu0 %v1553, 122
        %v1560 = vpop.permute.xlu0 %1559
        %1561 = vrot.lane.b32.xlu0 %v1554, 122
        %v1562 = vpop.permute.xlu0 %1561
        %v1563 = vsel %vm444, %v1556, %v1558
        %v1564 = vsel %vm444, %v1558, %v1560
        %v1565 = vsel %vm444, %v1560, %v1562
        %1569 = vst [vmem:[#allocation3 + $0x210] sm:$0xf] %v1563
        %1570 = vst [vmem:[#allocation3 + $0x218] sm:$0xf] %v1564
        %1571 = vst [vmem:[#allocation3 + $0x220] sm:$0xf] %v1565
        %v1572 = vld [vmem:[%s219 + $0x4] sm:$0xff]
        %v1573 = vld [vmem:[%s219 + $0xc] sm:$0xff]
        %s1576 = scalar_lea.vmem [#allocation1], 1
        %1577 = vst [vmem:[%s1576] ss:$2 sm:$0xff] %v1572
        %s1578 = scalar_lea.vmem [#allocation1], 17
        %1579 = vst [vmem:[%s1578] ss:$2 sm:$0xff] %v1573
        %v1580 = vld.sshfl [vmem:[#allocation1] sm:$0xff pattern:$0x75316420]
        %v1581 = vld.sshfl [vmem:[#allocation1 + $0x8] sm:$0xff pattern:$0x75316420]
        %v1582 = vld.sshfl [vmem:[#allocation1 + $0x10] sm:$0xff pattern:$0x75316420]
        %v1583 = vld.sshfl [vmem:[#allocation1 + $0x18] sm:$0xff pattern:$0x75316420]
        %1584 = vrot.lane.b32.xlu0 %v1580, 121
        %v1585 = vpop.permute.xlu0 %1584
        %1586 = vrot.lane.b32.xlu0 %v1581, 121
        %v1587 = vpop.permute.xlu0 %1586
        %1588 = vrot.lane.b32.xlu0 %v1582, 121
        %v1589 = vpop.permute.xlu0 %1588
        %1590 = vrot.lane.b32.xlu0 %v1583, 121
        %v1591 = vpop.permute.xlu0 %1590
        %vm1592 = vcmask 990208
        %v1593 = vsel %vm1592, %v1585, %v1587
        %v1594 = vsel %vm1592, %v1587, %v1589
        %v1595 = vsel %vm1592, %v1589, %v1591
        %1599 = vst [vmem:[#allocation3 + $0x210] sm:$0xf0] %v1593
        %1600 = vst [vmem:[#allocation3 + $0x218] sm:$0xf0] %v1594
        %1601 = vst [vmem:[#allocation3 + $0x220] sm:$0xf0] %v1595
        %v1602 = vld [vmem:[%s219 + $0x4] sm:$0xff]
        %v1603 = vld [vmem:[%s219 + $0xc] sm:$0xff]
        %1606 = vst [vmem:[#allocation1] ss:$2 sm:$0xff] %v1602
        %s1607 = scalar_lea.vmem [#allocation1], 16
        %1608 = vst [vmem:[%s1607] ss:$2 sm:$0xff] %v1603
        %v1609 = vld.sshfl [vmem:[#allocation1] sm:$0xff pattern:$0x75316420]
        %v1610 = vld.sshfl [vmem:[#allocation1 + $0x8] sm:$0xff pattern:$0x75316420]
        %v1611 = vld.sshfl [vmem:[#allocation1 + $0x10] sm:$0xff pattern:$0x75316420]
        %v1612 = vld.sshfl [vmem:[#allocation1 + $0x18] sm:$0xff pattern:$0x75316420]
        %1613 = vrot.lane.b32.xlu0 %v1609, 120
        %v1614 = vpop.permute.xlu0 %1613
        %1615 = vrot.lane.b32.xlu0 %v1610, 120
        %v1616 = vpop.permute.xlu0 %1615
        %1617 = vrot.lane.b32.xlu0 %v1611, 120
        %v1618 = vpop.permute.xlu0 %1617
        %1619 = vrot.lane.b32.xlu0 %v1612, 120
        %v1620 = vpop.permute.xlu0 %1619
        %vm1621 = vcmask 982016
        %v1622 = vsel %vm1621, %v1614, %v1616
        %v1623 = vsel %vm1621, %v1616, %v1618
        %v1624 = vsel %vm1621, %v1618, %v1620
        %1628 = vst [vmem:[#allocation3 + $0x228] sm:$0xf] %v1622
        %1629 = vst [vmem:[#allocation3 + $0x230] sm:$0xf] %v1623
        %1630 = vst [vmem:[#allocation3 + $0x238] sm:$0xf] %v1624
        %v1631 = vld [vmem:[%s219 + $0x4] sm:$0xff]
        %v1632 = vld [vmem:[%s219 + $0xc] sm:$0xff]
        %s1635 = scalar_lea.vmem [#allocation1], 1
        %1636 = vst [vmem:[%s1635] ss:$2 sm:$0xff] %v1631
        %s1637 = scalar_lea.vmem [#allocation1], 17
        %1638 = vst [vmem:[%s1637] ss:$2 sm:$0xff] %v1632
        %v1639 = vld.sshfl [vmem:[#allocation1] sm:$0xff pattern:$0x75316420]
        %v1640 = vld.sshfl [vmem:[#allocation1 + $0x8] sm:$0xff pattern:$0x75316420]
        %v1641 = vld.sshfl [vmem:[#allocation1 + $0x10] sm:$0xff pattern:$0x75316420]
        %v1642 = vld.sshfl [vmem:[#allocation1 + $0x18] sm:$0xff pattern:$0x75316420]
        %1643 = vrot.lane.b32.xlu0 %v1639, 119
        %v1644 = vpop.permute.xlu0 %1643
        %1645 = vrot.lane.b32.xlu0 %v1640, 119
        %v1646 = vpop.permute.xlu0 %1645
        %1647 = vrot.lane.b32.xlu0 %v1641, 119
        %v1648 = vpop.permute.xlu0 %1647
        %1649 = vrot.lane.b32.xlu0 %v1642, 119
        %v1650 = vpop.permute.xlu0 %1649
        %vm1651 = vcmask 973824
        %v1652 = vsel %vm1651, %v1644, %v1646
        %v1653 = vsel %vm1651, %v1646, %v1648
        %v1654 = vsel %vm1651, %v1648, %v1650
        %1658 = vst [vmem:[#allocation3 + $0x228] sm:$0xf0] %v1652
        %1659 = vst [vmem:[#allocation3 + $0x230] sm:$0xf0] %v1653
        %1660 = vst [vmem:[#allocation3 + $0x238] sm:$0xf0] %v1654
        %v1661 = vld [vmem:[%s219 + $0x4] sm:$0xff]
        %v1662 = vld [vmem:[%s219 + $0xc] sm:$0xff]
        %1665 = vst [vmem:[#allocation1] ss:$2 sm:$0xff] %v1661
        %s1666 = scalar_lea.vmem [#allocation1], 16
        %1667 = vst [vmem:[%s1666] ss:$2 sm:$0xff] %v1662
        %v1668 = vld.sshfl [vmem:[#allocation1] sm:$0xff pattern:$0x75316420]
        %v1669 = vld.sshfl [vmem:[#allocation1 + $0x8] sm:$0xff pattern:$0x75316420]
        %v1670 = vld.sshfl [vmem:[#allocation1 + $0x10] sm:$0xff pattern:$0x75316420]
        %v1671 = vld.sshfl [vmem:[#allocation1 + $0x18] sm:$0xff pattern:$0x75316420]
        %1672 = vrot.lane.b32.xlu0 %v1668, 118
        %v1673 = vpop.permute.xlu0 %1672
        %1674 = vrot.lane.b32.xlu0 %v1669, 118
        %v1675 = vpop.permute.xlu0 %1674
        %1676 = vrot.lane.b32.xlu0 %v1670, 118
        %v1677 = vpop.permute.xlu0 %1676
        %1678 = vrot.lane.b32.xlu0 %v1671, 118
        %v1679 = vpop.permute.xlu0 %1678
        %vm1680 = vcmask 965632
        %v1681 = vsel %vm1680, %v1673, %v1675
        %v1682 = vsel %vm1680, %v1675, %v1677
        %v1683 = vsel %vm1680, %v1677, %v1679
        %1687 = vst [vmem:[#allocation3 + $0x240] sm:$0xf] %v1681
        %1688 = vst [vmem:[#allocation3 + $0x248] sm:$0xf] %v1682
        %1689 = vst [vmem:[#allocation3 + $0x250] sm:$0xf] %v1683
        %1690 = vst [vmem:[#allocation3 + $0x240] sm:$0xf0] 0.0
        %1691 = vst [vmem:[#allocation3 + $0x248] sm:$0xf0] 0.0
        %1692 = vst [vmem:[#allocation3 + $0x250] sm:$0xf0] 0.0
        %v1693 = vld [vmem:[#allocation8] sm:$0xff]
        %v1694 = vld [vmem:[#allocation8 + $0x8] sm:$0xff]
        %v1695 = vld [vmem:[#allocation3] sm:$0xff]
        %v1696 = vld [vmem:[#allocation3 + $0x8] sm:$0xff]
        %v1697 = vld [vmem:[#allocation3 + $0x10] sm:$0xff]
        %v1698 = vld [vmem:[#allocation3 + $0x18] sm:$0xff]
        %v1699 = vld [vmem:[#allocation3 + $0x20] sm:$0xff]
        %v1700 = vld [vmem:[#allocation3 + $0x28] sm:$0xff]
        %v1701 = vld [vmem:[#allocation3 + $0x30] sm:$0xff]
        %v1702 = vld [vmem:[#allocation3 + $0x38] sm:$0xff]
        %v1703 = vld [vmem:[#allocation3 + $0x40] sm:$0xff]
        %v1704 = vld [vmem:[#allocation3 + $0x48] sm:$0xff]
        %v1705 = vld [vmem:[#allocation3 + $0x50] sm:$0xff]
        %v1706 = vld [vmem:[#allocation3 + $0x58] sm:$0xff]
        %v1707 = vld [vmem:[#allocation3 + $0x60] sm:$0xff]
        %v1708 = vld [vmem:[#allocation3 + $0x68] sm:$0xff]
        %v1709 = vld [vmem:[#allocation3 + $0x70] sm:$0xff]
        %v1710 = vld [vmem:[#allocation3 + $0x78] sm:$0xff]
        %v1711 = vld [vmem:[#allocation3 + $0x80] sm:$0xff]
        %v1712 = vld [vmem:[#allocation3 + $0x88] sm:$0xff]
        %v1713 = vld [vmem:[#allocation3 + $0x90] sm:$0xff]
        %v1714 = vld [vmem:[#allocation3 + $0x98] sm:$0xff]
        %v1715 = vld [vmem:[#allocation3 + $0xa0] sm:$0xff]
        %v1716 = vld [vmem:[#allocation3 + $0xa8] sm:$0xff]
        %v1717 = vld [vmem:[#allocation3 + $0xb0] sm:$0xff]
        %v1718 = vld [vmem:[#allocation3 + $0xb8] sm:$0xff]
        %v1719 = vld [vmem:[#allocation3 + $0xc0] sm:$0xff]
        %v1720 = vld [vmem:[#allocation3 + $0xc8] sm:$0xff]
        %v1721 = vld [vmem:[#allocation3 + $0xd0] sm:$0xff]
        %v1722 = vld [vmem:[#allocation3 + $0xd8] sm:$0xff]
        %v1723 = vld [vmem:[#allocation3 + $0xe0] sm:$0xff]
        %v1724 = vld [vmem:[#allocation3 + $0xe8] sm:$0xff]
        %v1725 = vld [vmem:[#allocation3 + $0xf0] sm:$0xff]
        %v1726 = vld [vmem:[#allocation3 + $0xf8] sm:$0xff]
        %v1727 = vld [vmem:[#allocation3 + $0x100] sm:$0xff]
        %v1728 = vld [vmem:[#allocation3 + $0x108] sm:$0xff]
        %v1729 = vld [vmem:[#allocation3 + $0x110] sm:$0xff]
        %v1730 = vld [vmem:[#allocation3 + $0x118] sm:$0xff]
        %v1731 = vld [vmem:[#allocation3 + $0x120] sm:$0xff]
        %v1732 = vld [vmem:[#allocation3 + $0x128] sm:$0xff]
        %v1733 = vld [vmem:[#allocation3 + $0x130] sm:$0xff]
        %v1734 = vld [vmem:[#allocation3 + $0x138] sm:$0xff]
        %v1735 = vld [vmem:[#allocation3 + $0x140] sm:$0xff]
        %v1736 = vld [vmem:[#allocation3 + $0x148] sm:$0xff]
        %v1737 = vld [vmem:[#allocation3 + $0x150] sm:$0xff]
        %v1738 = vld [vmem:[#allocation3 + $0x158] sm:$0xff]
        %v1739 = vld [vmem:[#allocation3 + $0x160] sm:$0xff]
        %v1740 = vld [vmem:[#allocation3 + $0x168] sm:$0xff]
        %v1741 = vld [vmem:[#allocation3 + $0x170] sm:$0xff]
        %v1742 = vld [vmem:[#allocation3 + $0x178] sm:$0xff]
        %v1743 = vld [vmem:[#allocation3 + $0x180] sm:$0xff]
        %v1744 = vld [vmem:[#allocation3 + $0x188] sm:$0xff]
        %v1745 = vld [vmem:[#allocation3 + $0x190] sm:$0xff]
        %v1746 = vld [vmem:[#allocation3 + $0x198] sm:$0xff]
        %v1747 = vld [vmem:[#allocation3 + $0x1a0] sm:$0xff]
        %v1748 = vld [vmem:[#allocation3 + $0x1a8] sm:$0xff]
        %v1749 = vld [vmem:[#allocation3 + $0x1b0] sm:$0xff]
        %v1750 = vld [vmem:[#allocation3 + $0x1b8] sm:$0xff]
        %v1751 = vld [vmem:[#allocation3 + $0x1c0] sm:$0xff]
        %v1752 = vld [vmem:[#allocation3 + $0x1c8] sm:$0xff]
        %v1753 = vld [vmem:[#allocation3 + $0x1d0] sm:$0xff]
        %v1754 = vld [vmem:[#allocation3 + $0x1d8] sm:$0xff]
        %v1755 = vld [vmem:[#allocation3 + $0x1e0] sm:$0xff]
        %v1756 = vld [vmem:[#allocation3 + $0x1e8] sm:$0xff]
        %v1757 = vld [vmem:[#allocation3 + $0x1f0] sm:$0xff]
        %v1758 = vld [vmem:[#allocation3 + $0x1f8] sm:$0xff]
        %v1759 = vld [vmem:[#allocation3 + $0x200] sm:$0xff]
        %v1760 = vld [vmem:[#allocation3 + $0x208] sm:$0xff]
        %v1761 = vld [vmem:[#allocation3 + $0x210] sm:$0xff]
        %v1762 = vld [vmem:[#allocation3 + $0x218] sm:$0xff]
        %v1763 = vld [vmem:[#allocation3 + $0x220] sm:$0xff]
        %v1764 = vld [vmem:[#allocation3 + $0x228] sm:$0xff]
        %v1765 = vld [vmem:[#allocation3 + $0x230] sm:$0xff]
        %v1766 = vld [vmem:[#allocation3 + $0x238] sm:$0xff]
        %v1767 = vld [vmem:[#allocation3 + $0x240] sm:$0xff]
        %v1768 = vld [vmem:[#allocation3 + $0x248] sm:$0xff]
        %v1769 = vld [vmem:[#allocation3 + $0x250] sm:$0xff]
        %vm1770 = vcmask 588800
        %v1772 = vsel %vm1770, %v1694, 0
        %1774 = vmatpush.msra.mxu0 %v1740
        %1775 = vmatpush.msra.mxu0 %v1737
        %1776 = vmatpush.msra.mxu0 %v1734
        %1777 = vmatpush.msra.mxu0 %v1731
        %1778 = vmatpush.msra.mxu0 %v1728
        %1779 = vmatpush.msra.mxu0 %v1725
        %1780 = vmatpush.msra.mxu0 %v1722
        %1781 = vmatpush.msra.mxu0 %v1719
        %1782 = vmatpush.msra.mxu0 %v1716
        %1783 = vmatpush.msra.mxu0 %v1713
        %1784 = vmatpush.msra.mxu0 %v1710
        %1785 = vmatpush.msra.mxu0 %v1707
        %1786 = vmatpush.msra.mxu0 %v1704
        %1787 = vmatpush.msra.mxu0 %v1701
        %1788 = vmatpush.msra.mxu0 %v1698
        %1789 = vmatpush.msra.mxu0 %v1695
        %1790 = vmatmul.f32.gmra.mxu0 %v1693
        %v1791 = vpop.f32.mrf.mxu0
        %v1792 = vadd.f32 0.0, %v1791
        %1793 = vdwg.mxu0
        %1794 = vmatpush.msra.mxu0 0.0
        %1795 = vmatpush.msra.mxu0 0.0
        %1796 = vmatpush.msra.mxu0 0.0
        %1797 = vmatpush.msra.mxu0 0.0
        %1798 = vmatpush.msra.mxu0 0.0
        %1799 = vmatpush.msra.mxu0 0.0
        %1800 = vmatpush.msra.mxu0 0.0
        %1801 = vmatpush.msra.mxu0 %v1767
        %1802 = vmatpush.msra.mxu0 %v1764
        %1803 = vmatpush.msra.mxu0 %v1761
        %1804 = vmatpush.msra.mxu0 %v1758
        %1805 = vmatpush.msra.mxu0 %v1755
        %1806 = vmatpush.msra.mxu0 %v1752
        %1807 = vmatpush.msra.mxu0 %v1749
        %1808 = vmatpush.msra.mxu0 %v1746
        %1809 = vmatpush.msra.mxu0 %v1743
        %1810 = vmatmul.f32.gmra.mxu0 %v1772
        %v1811 = vpop.f32.mrf.mxu0
        %v1812 = vadd.f32 %v1792, %v1811
        %1813 = vdwg.mxu0
        %1814 = vmatpush.msra.mxu0 %v1741
        %1815 = vmatpush.msra.mxu0 %v1738
        %1816 = vmatpush.msra.mxu0 %v1735
        %1817 = vmatpush.msra.mxu0 %v1732
        %1818 = vmatpush.msra.mxu0 %v1729
        %1819 = vmatpush.msra.mxu0 %v1726
        %1820 = vmatpush.msra.mxu0 %v1723
        %1821 = vmatpush.msra.mxu0 %v1720
        %1822 = vmatpush.msra.mxu0 %v1717
        %1823 = vmatpush.msra.mxu0 %v1714
        %1824 = vmatpush.msra.mxu0 %v1711
        %1825 = vmatpush.msra.mxu0 %v1708
        %1826 = vmatpush.msra.mxu0 %v1705
        %1827 = vmatpush.msra.mxu0 %v1702
        %1828 = vmatpush.msra.mxu0 %v1699
        %1829 = vmatpush.msra.mxu0 %v1696
        %1830 = vmatmul.f32.gmra.mxu0 %v1693
        %v1831 = vpop.f32.mrf.mxu0
        %v1832 = vadd.f32 0.0, %v1831
        %1833 = vdwg.mxu0
        %1834 = vmatpush.msra.mxu0 0.0
        %1835 = vmatpush.msra.mxu0 0.0
        %1836 = vmatpush.msra.mxu0 0.0
        %1837 = vmatpush.msra.mxu0 0.0
        %1838 = vmatpush.msra.mxu0 0.0
        %1839 = vmatpush.msra.mxu0 0.0
        %1840 = vmatpush.msra.mxu0 0.0
        %1841 = vmatpush.msra.mxu0 %v1768
        %1842 = vmatpush.msra.mxu0 %v1765
        %1843 = vmatpush.msra.mxu0 %v1762
        %1844 = vmatpush.msra.mxu0 %v1759
        %1845 = vmatpush.msra.mxu0 %v1756
        %1846 = vmatpush.msra.mxu0 %v1753
        %1847 = vmatpush.msra.mxu0 %v1750
        %1848 = vmatpush.msra.mxu0 %v1747
        %1849 = vmatpush.msra.mxu0 %v1744
        %1850 = vmatmul.f32.gmra.mxu0 %v1772
        %v1851 = vpop.f32.mrf.mxu0
        %v1852 = vadd.f32 %v1832, %v1851
        %1853 = vdwg.mxu0
        %1854 = vmatpush.msra.mxu0 %v1742
        %1855 = vmatpush.msra.mxu0 %v1739
        %1856 = vmatpush.msra.mxu0 %v1736
        %1857 = vmatpush.msra.mxu0 %v1733
        %1858 = vmatpush.msra.mxu0 %v1730
        %1859 = vmatpush.msra.mxu0 %v1727
        %1860 = vmatpush.msra.mxu0 %v1724
        %1861 = vmatpush.msra.mxu0 %v1721
        %1862 = vmatpush.msra.mxu0 %v1718
        %1863 = vmatpush.msra.mxu0 %v1715
        %1864 = vmatpush.msra.mxu0 %v1712
        %1865 = vmatpush.msra.mxu0 %v1709
        %1866 = vmatpush.msra.mxu0 %v1706
        %1867 = vmatpush.msra.mxu0 %v1703
        %1868 = vmatpush.msra.mxu0 %v1700
        %1869 = vmatpush.msra.mxu0 %v1697
        %1870 = vmatmul.f32.gmra.mxu0 %v1693
        %v1871 = vpop.f32.mrf.mxu0
        %v1872 = vadd.f32 0.0, %v1871
        %1873 = vdwg.mxu0
        %1874 = vmatpush.msra.mxu0 0.0
        %1875 = vmatpush.msra.mxu0 0.0
        %1876 = vmatpush.msra.mxu0 0.0
        %1877 = vmatpush.msra.mxu0 0.0
        %1878 = vmatpush.msra.mxu0 0.0
        %1879 = vmatpush.msra.mxu0 0.0
        %1880 = vmatpush.msra.mxu0 0.0
        %1881 = vmatpush.msra.mxu0 %v1769
        %1882 = vmatpush.msra.mxu0 %v1766
        %1883 = vmatpush.msra.mxu0 %v1763
        %1884 = vmatpush.msra.mxu0 %v1760
        %1885 = vmatpush.msra.mxu0 %v1757
        %1886 = vmatpush.msra.mxu0 %v1754
        %1887 = vmatpush.msra.mxu0 %v1751
        %1888 = vmatpush.msra.mxu0 %v1748
        %1889 = vmatpush.msra.mxu0 %v1745
        %1890 = vmatmul.f32.gmra.mxu0 %v1772
        %v1891 = vpop.f32.mrf.mxu0
        %v1892 = vadd.f32 %v1872, %v1891
        %1893 = vdwg.mxu0
        %vm1894 = vcmp.ge.f32.partialorder %v1812, 0.0
        %vm1895 = vcmp.ge.f32.partialorder %v1852, 0.0
        %vm1896 = vcmp.ge.f32.partialorder %v1892, 0.0
        %v1897 = vmul.f32 %v1812, 0.01
        %v1898 = vmul.f32 %v1852, 0.01
        %v1899 = vmul.f32 %v1892, 0.01
        %v1900 = vsel %vm1894, %v1812, %v1897
        %v1901 = vsel %vm1895, %v1852, %v1898
        %v1902 = vsel %vm1896, %v1892, %v1899
        %v1904 = vperm.slane %v260, 0
        %v1905 = vperm.slane %v260, 1
        %v1906 = vperm.slane %v260, 2
        %v1910 = vmul.f32 %v1900, %v1904
        %v1911 = vmul.f32 %v1901, %v1905
        %v1912 = vmul.f32 %v1902, %v1906
        %vm1913 = vcmask 564224
        %1914 = vst.msk [vmem:[#allocation2] sm:$0xff] %vm1913, 0.0
        %vm1915 = vcmask 1048104
        %1916 = vst.msk [vmem:[#allocation2 + $0x18] sm:$0xff] %vm1915, 0.0
        %1917 = vst [vmem:[#allocation2 + $0x20] sm:$0xff] 0.0
        %1921 = vrot.lane.b32.xlu0 %v1910, 69
        %v1922 = vpop.permute.xlu0 %1921
        %1923 = vrot.lane.b32.xlu0 %v1911, 69
        %v1924 = vpop.permute.xlu0 %1923
        %1925 = vrot.lane.b32.xlu0 %v1912, 69
        %v1926 = vpop.permute.xlu0 %1925
        %v1927 = vsel %vm1913, %v1922, %v1924
        %v1928 = vsel %vm1913, %v1924, %v1926
        %1933 = vst.msk [vmem:[#allocation2] sm:$0xff] %vm1915, %v1922
        %1934 = vst [vmem:[#allocation2 + $0x8] sm:$0xff] %v1927
        %1935 = vst [vmem:[#allocation2 + $0x10] sm:$0xff] %v1928
        %1936 = vst.msk [vmem:[#allocation2 + $0x18] sm:$0xff] %vm1913, %v1926
        %v1937 = vld [vmem:[#allocation2] sm:$0xff]
        %v1938 = vld [vmem:[#allocation2 + $0x8] sm:$0xff]
        %v1939 = vld [vmem:[#allocation2 + $0x10] sm:$0xff]
        %1940 = vst [vmem:[#allocation4] sm:$0xff] %v1937
        %1941 = vst [vmem:[#allocation4 + $0x8] sm:$0xff] %v1938
        %1942 = vst [vmem:[#allocation4 + $0x10] sm:$0xff] %v1939
        %v1943 = vld [vmem:[#allocation2] sm:$0xff]
        %v1944 = vld [vmem:[#allocation2 + $0x8] sm:$0xff]
        %v1945 = vld [vmem:[#allocation2 + $0x10] sm:$0xff]
        %v1946 = vld [vmem:[#allocation2 + $0x18] sm:$0xff]
        %1951 = vrot.lane.b32.xlu0 %v1943, 127
        %v1952 = vpop.permute.xlu0 %1951
        %1953 = vrot.lane.b32.xlu0 %v1944, 127
        %v1954 = vpop.permute.xlu0 %1953
        %1955 = vrot.lane.b32.xlu0 %v1945, 127
        %v1956 = vpop.permute.xlu0 %1955
        %1957 = vrot.lane.b32.xlu0 %v1946, 127
        %v1958 = vpop.permute.xlu0 %1957
        %v1959 = vsel %vm297, %v1952, %v1954
        %v1960 = vsel %vm297, %v1954, %v1956
        %v1961 = vsel %vm297, %v1956, %v1958
        %1965 = vst [vmem:[#allocation4 + $0x18] sm:$0xff] %v1959
        %1966 = vst [vmem:[#allocation4 + $0x20] sm:$0xff] %v1960
        %1967 = vst [vmem:[#allocation4 + $0x28] sm:$0xff] %v1961
        %v1968 = vld [vmem:[#allocation2] sm:$0xff]
        %v1969 = vld [vmem:[#allocation2 + $0x8] sm:$0xff]
        %v1970 = vld [vmem:[#allocation2 + $0x10] sm:$0xff]
        %v1971 = vld [vmem:[#allocation2 + $0x18] sm:$0xff]
        %1976 = vrot.lane.b32.xlu0 %v1968, 126
        %v1977 = vpop.permute.xlu0 %1976
        %1978 = vrot.lane.b32.xlu0 %v1969, 126
        %v1979 = vpop.permute.xlu0 %1978
        %1980 = vrot.lane.b32.xlu0 %v1970, 126
        %v1981 = vpop.permute.xlu0 %1980
        %1982 = vrot.lane.b32.xlu0 %v1971, 126
        %v1983 = vpop.permute.xlu0 %1982
        %v1984 = vsel %vm326, %v1977, %v1979
        %v1985 = vsel %vm326, %v1979, %v1981
        %v1986 = vsel %vm326, %v1981, %v1983
        %1990 = vst [vmem:[#allocation4 + $0x30] sm:$0xff] %v1984
        %1991 = vst [vmem:[#allocation4 + $0x38] sm:$0xff] %v1985
        %1992 = vst [vmem:[#allocation4 + $0x40] sm:$0xff] %v1986
        %v1993 = vld [vmem:[#allocation2] sm:$0xff]
        %v1994 = vld [vmem:[#allocation2 + $0x8] sm:$0xff]
        %v1995 = vld [vmem:[#allocation2 + $0x10] sm:$0xff]
        %v1996 = vld [vmem:[#allocation2 + $0x18] sm:$0xff]
        %2001 = vrot.lane.b32.xlu0 %v1993, 125
        %v2002 = vpop.permute.xlu0 %2001
        %2003 = vrot.lane.b32.xlu0 %v1994, 125
        %v2004 = vpop.permute.xlu0 %2003
        %2005 = vrot.lane.b32.xlu0 %v1995, 125
        %v2006 = vpop.permute.xlu0 %2005
        %2007 = vrot.lane.b32.xlu0 %v1996, 125
        %v2008 = vpop.permute.xlu0 %2007
        %v2009 = vsel %vm356, %v2002, %v2004
        %v2010 = vsel %vm356, %v2004, %v2006
        %v2011 = vsel %vm356, %v2006, %v2008
        %2015 = vst [vmem:[#allocation4 + $0x48] sm:$0xff] %v2009
        %2016 = vst [vmem:[#allocation4 + $0x50] sm:$0xff] %v2010
        %2017 = vst [vmem:[#allocation4 + $0x58] sm:$0xff] %v2011
        %v2018 = vld [vmem:[#allocation2] sm:$0xff]
        %v2019 = vld [vmem:[#allocation2 + $0x8] sm:$0xff]
        %v2020 = vld [vmem:[#allocation2 + $0x10] sm:$0xff]
        %v2021 = vld [vmem:[#allocation2 + $0x18] sm:$0xff]
        %2026 = vrot.lane.b32.xlu0 %v2018, 124
        %v2027 = vpop.permute.xlu0 %2026
        %2028 = vrot.lane.b32.xlu0 %v2019, 124
        %v2029 = vpop.permute.xlu0 %2028
        %2030 = vrot.lane.b32.xlu0 %v2020, 124
        %v2031 = vpop.permute.xlu0 %2030
        %2032 = vrot.lane.b32.xlu0 %v2021, 124
        %v2033 = vpop.permute.xlu0 %2032
        %v2034 = vsel %vm385, %v2027, %v2029
        %v2035 = vsel %vm385, %v2029, %v2031
        %v2036 = vsel %vm385, %v2031, %v2033
        %2040 = vst [vmem:[#allocation4 + $0x60] sm:$0xff] %v2034
        %2041 = vst [vmem:[#allocation4 + $0x68] sm:$0xff] %v2035
        %2042 = vst [vmem:[#allocation4 + $0x70] sm:$0xff] %v2036
        %v2043 = vld [vmem:[#allocation2] sm:$0xff]
        %v2044 = vld [vmem:[#allocation2 + $0x8] sm:$0xff]
        %v2045 = vld [vmem:[#allocation2 + $0x10] sm:$0xff]
        %v2046 = vld [vmem:[#allocation2 + $0x18] sm:$0xff]
        %2051 = vrot.lane.b32.xlu0 %v2043, 123
        %v2052 = vpop.permute.xlu0 %2051
        %2053 = vrot.lane.b32.xlu0 %v2044, 123
        %v2054 = vpop.permute.xlu0 %2053
        %2055 = vrot.lane.b32.xlu0 %v2045, 123
        %v2056 = vpop.permute.xlu0 %2055
        %2057 = vrot.lane.b32.xlu0 %v2046, 123
        %v2058 = vpop.permute.xlu0 %2057
        %v2059 = vsel %vm415, %v2052, %v2054
        %v2060 = vsel %vm415, %v2054, %v2056
        %v2061 = vsel %vm415, %v2056, %v2058
        %2065 = vst [vmem:[#allocation4 + $0x78] sm:$0xff] %v2059
        %2066 = vst [vmem:[#allocation4 + $0x80] sm:$0xff] %v2060
        %2067 = vst [vmem:[#allocation4 + $0x88] sm:$0xff] %v2061
        %v2068 = vld [vmem:[#allocation2] sm:$0xff]
        %v2069 = vld [vmem:[#allocation2 + $0x8] sm:$0xff]
        %v2070 = vld [vmem:[#allocation2 + $0x10] sm:$0xff]
        %v2071 = vld [vmem:[#allocation2 + $0x18] sm:$0xff]
        %2076 = vrot.lane.b32.xlu0 %v2068, 122
        %v2077 = vpop.permute.xlu0 %2076
        %2078 = vrot.lane.b32.xlu0 %v2069, 122
        %v2079 = vpop.permute.xlu0 %2078
        %2080 = vrot.lane.b32.xlu0 %v2070, 122
        %v2081 = vpop.permute.xlu0 %2080
        %2082 = vrot.lane.b32.xlu0 %v2071, 122
        %v2083 = vpop.permute.xlu0 %2082
        %v2084 = vsel %vm444, %v2077, %v2079
        %v2085 = vsel %vm444, %v2079, %v2081
        %v2086 = vsel %vm444, %v2081, %v2083
        %2090 = vst [vmem:[#allocation4 + $0x90] sm:$0xff] %v2084
        %2091 = vst [vmem:[#allocation4 + $0x98] sm:$0xff] %v2085
        %2092 = vst [vmem:[#allocation4 + $0xa0] sm:$0xff] %v2086
        %v2093 = vld [vmem:[#allocation2] sm:$0xff]
        %v2094 = vld [vmem:[#allocation2 + $0x8] sm:$0xff]
        %v2095 = vld [vmem:[#allocation2 + $0x10] sm:$0xff]
        %v2096 = vld [vmem:[#allocation2 + $0x18] sm:$0xff]
        %2101 = vrot.lane.b32.xlu0 %v2093, 106
        %v2102 = vpop.permute.xlu0 %2101
        %2103 = vrot.lane.b32.xlu0 %v2094, 106
        %v2104 = vpop.permute.xlu0 %2103
        %2105 = vrot.lane.b32.xlu0 %v2095, 106
        %v2106 = vpop.permute.xlu0 %2105
        %2107 = vrot.lane.b32.xlu0 %v2096, 106
        %v2108 = vpop.permute.xlu0 %2107
        %v2109 = vsel %vm474, %v2102, %v2104
        %v2110 = vsel %vm474, %v2104, %v2106
        %v2111 = vsel %vm474, %v2106, %v2108
        %2115 = vst [vmem:[#allocation4 + $0xa8] sm:$0xff] %v2109
        %2116 = vst [vmem:[#allocation4 + $0xb0] sm:$0xff] %v2110
        %2117 = vst [vmem:[#allocation4 + $0xb8] sm:$0xff] %v2111
        %v2118 = vld [vmem:[#allocation2] sm:$0xff]
        %v2119 = vld [vmem:[#allocation2 + $0x8] sm:$0xff]
        %v2120 = vld [vmem:[#allocation2 + $0x10] sm:$0xff]
        %v2121 = vld [vmem:[#allocation2 + $0x18] sm:$0xff]
        %2126 = vrot.lane.b32.xlu0 %v2118, 105
        %v2127 = vpop.permute.xlu0 %2126
        %2128 = vrot.lane.b32.xlu0 %v2119, 105
        %v2129 = vpop.permute.xlu0 %2128
        %2130 = vrot.lane.b32.xlu0 %v2120, 105
        %v2131 = vpop.permute.xlu0 %2130
        %2132 = vrot.lane.b32.xlu0 %v2121, 105
        %v2133 = vpop.permute.xlu0 %2132
        %v2134 = vsel %vm503, %v2127, %v2129
        %v2135 = vsel %vm503, %v2129, %v2131
        %v2136 = vsel %vm503, %v2131, %v2133
        %2140 = vst [vmem:[#allocation4 + $0xc0] sm:$0xff] %v2134
        %2141 = vst [vmem:[#allocation4 + $0xc8] sm:$0xff] %v2135
        %2142 = vst [vmem:[#allocation4 + $0xd0] sm:$0xff] %v2136
        %v2143 = vld [vmem:[#allocation2] sm:$0xff]
        %v2144 = vld [vmem:[#allocation2 + $0x8] sm:$0xff]
        %v2145 = vld [vmem:[#allocation2 + $0x10] sm:$0xff]
        %v2146 = vld [vmem:[#allocation2 + $0x18] sm:$0xff]
        %2151 = vrot.lane.b32.xlu0 %v2143, 104
        %v2152 = vpop.permute.xlu0 %2151
        %2153 = vrot.lane.b32.xlu0 %v2144, 104
        %v2154 = vpop.permute.xlu0 %2153
        %2155 = vrot.lane.b32.xlu0 %v2145, 104
        %v2156 = vpop.permute.xlu0 %2155
        %2157 = vrot.lane.b32.xlu0 %v2146, 104
        %v2158 = vpop.permute.xlu0 %2157
        %v2159 = vsel %vm533, %v2152, %v2154
        %v2160 = vsel %vm533, %v2154, %v2156
        %v2161 = vsel %vm533, %v2156, %v2158
        %2165 = vst [vmem:[#allocation4 + $0xd8] sm:$0xff] %v2159
        %2166 = vst [vmem:[#allocation4 + $0xe0] sm:$0xff] %v2160
        %2167 = vst [vmem:[#allocation4 + $0xe8] sm:$0xff] %v2161
        %v2168 = vld [vmem:[#allocation2] sm:$0xff]
        %v2169 = vld [vmem:[#allocation2 + $0x8] sm:$0xff]
        %v2170 = vld [vmem:[#allocation2 + $0x10] sm:$0xff]
        %v2171 = vld [vmem:[#allocation2 + $0x18] sm:$0xff]
        %2176 = vrot.lane.b32.xlu0 %v2168, 103
        %v2177 = vpop.permute.xlu0 %2176
        %2178 = vrot.lane.b32.xlu0 %v2169, 103
        %v2179 = vpop.permute.xlu0 %2178
        %2180 = vrot.lane.b32.xlu0 %v2170, 103
        %v2181 = vpop.permute.xlu0 %2180
        %2182 = vrot.lane.b32.xlu0 %v2171, 103
        %v2183 = vpop.permute.xlu0 %2182
        %v2184 = vsel %vm562, %v2177, %v2179
        %v2185 = vsel %vm562, %v2179, %v2181
        %v2186 = vsel %vm562, %v2181, %v2183
        %2190 = vst [vmem:[#allocation4 + $0xf0] sm:$0xff] %v2184
        %2191 = vst [vmem:[#allocation4 + $0xf8] sm:$0xff] %v2185
        %2192 = vst [vmem:[#allocation4 + $0x100] sm:$0xff] %v2186
        %v2193 = vld [vmem:[#allocation2] sm:$0xff]
        %v2194 = vld [vmem:[#allocation2 + $0x8] sm:$0xff]
        %v2195 = vld [vmem:[#allocation2 + $0x10] sm:$0xff]
        %v2196 = vld [vmem:[#allocation2 + $0x18] sm:$0xff]
        %2201 = vrot.lane.b32.xlu0 %v2193, 102
        %v2202 = vpop.permute.xlu0 %2201
        %2203 = vrot.lane.b32.xlu0 %v2194, 102
        %v2204 = vpop.permute.xlu0 %2203
        %2205 = vrot.lane.b32.xlu0 %v2195, 102
        %v2206 = vpop.permute.xlu0 %2205
        %2207 = vrot.lane.b32.xlu0 %v2196, 102
        %v2208 = vpop.permute.xlu0 %2207
        %v2209 = vsel %vm592, %v2202, %v2204
        %v2210 = vsel %vm592, %v2204, %v2206
        %v2211 = vsel %vm592, %v2206, %v2208
        %2215 = vst [vmem:[#allocation4 + $0x108] sm:$0xff] %v2209
        %2216 = vst [vmem:[#allocation4 + $0x110] sm:$0xff] %v2210
        %2217 = vst [vmem:[#allocation4 + $0x118] sm:$0xff] %v2211
        %v2218 = vld [vmem:[#allocation2] sm:$0xff]
        %v2219 = vld [vmem:[#allocation2 + $0x8] sm:$0xff]
        %v2220 = vld [vmem:[#allocation2 + $0x10] sm:$0xff]
        %v2221 = vld [vmem:[#allocation2 + $0x18] sm:$0xff]
        %2226 = vrot.lane.b32.xlu0 %v2218, 101
        %v2227 = vpop.permute.xlu0 %2226
        %2228 = vrot.lane.b32.xlu0 %v2219, 101
        %v2229 = vpop.permute.xlu0 %2228
        %2230 = vrot.lane.b32.xlu0 %v2220, 101
        %v2231 = vpop.permute.xlu0 %2230
        %2232 = vrot.lane.b32.xlu0 %v2221, 101
        %v2233 = vpop.permute.xlu0 %2232
        %v2234 = vsel %vm621, %v2227, %v2229
        %v2235 = vsel %vm621, %v2229, %v2231
        %v2236 = vsel %vm621, %v2231, %v2233
        %2240 = vst [vmem:[#allocation4 + $0x120] sm:$0xff] %v2234
        %2241 = vst [vmem:[#allocation4 + $0x128] sm:$0xff] %v2235
        %2242 = vst [vmem:[#allocation4 + $0x130] sm:$0xff] %v2236
        %v2243 = vld [vmem:[#allocation2] sm:$0xff]
        %v2244 = vld [vmem:[#allocation2 + $0x8] sm:$0xff]
        %v2245 = vld [vmem:[#allocation2 + $0x10] sm:$0xff]
        %v2246 = vld [vmem:[#allocation2 + $0x18] sm:$0xff]
        %2251 = vrot.lane.b32.xlu0 %v2243, 100
        %v2252 = vpop.permute.xlu0 %2251
        %2253 = vrot.lane.b32.xlu0 %v2244, 100
        %v2254 = vpop.permute.xlu0 %2253
        %2255 = vrot.lane.b32.xlu0 %v2245, 100
        %v2256 = vpop.permute.xlu0 %2255
        %2257 = vrot.lane.b32.xlu0 %v2246, 100
        %v2258 = vpop.permute.xlu0 %2257
        %v2259 = vsel %vm651, %v2252, %v2254
        %v2260 = vsel %vm651, %v2254, %v2256
        %v2261 = vsel %vm651, %v2256, %v2258
        %2265 = vst [vmem:[#allocation4 + $0x138] sm:$0xff] %v2259
        %2266 = vst [vmem:[#allocation4 + $0x140] sm:$0xff] %v2260
        %2267 = vst [vmem:[#allocation4 + $0x148] sm:$0xff] %v2261
        %v2268 = vld [vmem:[#allocation2] sm:$0xff]
        %v2269 = vld [vmem:[#allocation2 + $0x8] sm:$0xff]
        %v2270 = vld [vmem:[#allocation2 + $0x10] sm:$0xff]
        %v2271 = vld [vmem:[#allocation2 + $0x18] sm:$0xff]
        %2276 = vrot.lane.b32.xlu0 %v2268, 84
        %v2277 = vpop.permute.xlu0 %2276
        %2278 = vrot.lane.b32.xlu0 %v2269, 84
        %v2279 = vpop.permute.xlu0 %2278
        %2280 = vrot.lane.b32.xlu0 %v2270, 84
        %v2281 = vpop.permute.xlu0 %2280
        %2282 = vrot.lane.b32.xlu0 %v2271, 84
        %v2283 = vpop.permute.xlu0 %2282
        %v2284 = vsel %vm680, %v2277, %v2279
        %v2285 = vsel %vm680, %v2279, %v2281
        %v2286 = vsel %vm680, %v2281, %v2283
        %2290 = vst [vmem:[#allocation4 + $0x150] sm:$0xff] %v2284
        %2291 = vst [vmem:[#allocation4 + $0x158] sm:$0xff] %v2285
        %2292 = vst [vmem:[#allocation4 + $0x160] sm:$0xff] %v2286
        %v2293 = vld [vmem:[#allocation2] sm:$0xff]
        %v2294 = vld [vmem:[#allocation2 + $0x8] sm:$0xff]
        %v2295 = vld [vmem:[#allocation2 + $0x10] sm:$0xff]
        %v2296 = vld [vmem:[#allocation2 + $0x18] sm:$0xff]
        %2301 = vrot.lane.b32.xlu0 %v2293, 83
        %v2302 = vpop.permute.xlu0 %2301
        %2303 = vrot.lane.b32.xlu0 %v2294, 83
        %v2304 = vpop.permute.xlu0 %2303
        %2305 = vrot.lane.b32.xlu0 %v2295, 83
        %v2306 = vpop.permute.xlu0 %2305
        %2307 = vrot.lane.b32.xlu0 %v2296, 83
        %v2308 = vpop.permute.xlu0 %2307
        %v2309 = vsel %vm710, %v2302, %v2304
        %v2310 = vsel %vm710, %v2304, %v2306
        %v2311 = vsel %vm710, %v2306, %v2308
        %2315 = vst [vmem:[#allocation4 + $0x168] sm:$0xff] %v2309
        %2316 = vst [vmem:[#allocation4 + $0x170] sm:$0xff] %v2310
        %2317 = vst [vmem:[#allocation4 + $0x178] sm:$0xff] %v2311
        %v2318 = vld [vmem:[#allocation2] sm:$0xff]
        %v2319 = vld [vmem:[#allocation2 + $0x8] sm:$0xff]
        %v2320 = vld [vmem:[#allocation2 + $0x10] sm:$0xff]
        %v2321 = vld [vmem:[#allocation2 + $0x18] sm:$0xff]
        %2326 = vrot.lane.b32.xlu0 %v2318, 82
        %v2327 = vpop.permute.xlu0 %2326
        %2328 = vrot.lane.b32.xlu0 %v2319, 82
        %v2329 = vpop.permute.xlu0 %2328
        %2330 = vrot.lane.b32.xlu0 %v2320, 82
        %v2331 = vpop.permute.xlu0 %2330
        %2332 = vrot.lane.b32.xlu0 %v2321, 82
        %v2333 = vpop.permute.xlu0 %2332
        %v2334 = vsel %vm739, %v2327, %v2329
        %v2335 = vsel %vm739, %v2329, %v2331
        %v2336 = vsel %vm739, %v2331, %v2333
        %2340 = vst [vmem:[#allocation4 + $0x180] sm:$0xff] %v2334
        %2341 = vst [vmem:[#allocation4 + $0x188] sm:$0xff] %v2335
        %2342 = vst [vmem:[#allocation4 + $0x190] sm:$0xff] %v2336
        %v2343 = vld [vmem:[#allocation2] sm:$0xff]
        %v2344 = vld [vmem:[#allocation2 + $0x8] sm:$0xff]
        %v2345 = vld [vmem:[#allocation2 + $0x10] sm:$0xff]
        %v2346 = vld [vmem:[#allocation2 + $0x18] sm:$0xff]
        %2351 = vrot.lane.b32.xlu0 %v2343, 81
        %v2352 = vpop.permute.xlu0 %2351
        %2353 = vrot.lane.b32.xlu0 %v2344, 81
        %v2354 = vpop.permute.xlu0 %2353
        %2355 = vrot.lane.b32.xlu0 %v2345, 81
        %v2356 = vpop.permute.xlu0 %2355
        %2357 = vrot.lane.b32.xlu0 %v2346, 81
        %v2358 = vpop.permute.xlu0 %2357
        %v2359 = vsel %vm769, %v2352, %v2354
        %v2360 = vsel %vm769, %v2354, %v2356
        %v2361 = vsel %vm769, %v2356, %v2358
        %2365 = vst [vmem:[#allocation4 + $0x198] sm:$0xff] %v2359
        %2366 = vst [vmem:[#allocation4 + $0x1a0] sm:$0xff] %v2360
        %2367 = vst [vmem:[#allocation4 + $0x1a8] sm:$0xff] %v2361
        %v2368 = vld [vmem:[#allocation2] sm:$0xff]
        %v2369 = vld [vmem:[#allocation2 + $0x8] sm:$0xff]
        %v2370 = vld [vmem:[#allocation2 + $0x10] sm:$0xff]
        %v2371 = vld [vmem:[#allocation2 + $0x18] sm:$0xff]
        %2376 = vrot.lane.b32.xlu0 %v2368, 80
        %v2377 = vpop.permute.xlu0 %2376
        %2378 = vrot.lane.b32.xlu0 %v2369, 80
        %v2379 = vpop.permute.xlu0 %2378
        %2380 = vrot.lane.b32.xlu0 %v2370, 80
        %v2381 = vpop.permute.xlu0 %2380
        %2382 = vrot.lane.b32.xlu0 %v2371, 80
        %v2383 = vpop.permute.xlu0 %2382
        %v2384 = vsel %vm798, %v2377, %v2379
        %v2385 = vsel %vm798, %v2379, %v2381
        %v2386 = vsel %vm798, %v2381, %v2383
        %2390 = vst [vmem:[#allocation4 + $0x1b0] sm:$0xff] %v2384
        %2391 = vst [vmem:[#allocation4 + $0x1b8] sm:$0xff] %v2385
        %2392 = vst [vmem:[#allocation4 + $0x1c0] sm:$0xff] %v2386
        %v2393 = vld [vmem:[#allocation2] sm:$0xff]
        %v2394 = vld [vmem:[#allocation2 + $0x8] sm:$0xff]
        %v2395 = vld [vmem:[#allocation2 + $0x10] sm:$0xff]
        %v2396 = vld [vmem:[#allocation2 + $0x18] sm:$0xff]
        %2401 = vrot.lane.b32.xlu0 %v2393, 79
        %v2402 = vpop.permute.xlu0 %2401
        %2403 = vrot.lane.b32.xlu0 %v2394, 79
        %v2404 = vpop.permute.xlu0 %2403
        %2405 = vrot.lane.b32.xlu0 %v2395, 79
        %v2406 = vpop.permute.xlu0 %2405
        %2407 = vrot.lane.b32.xlu0 %v2396, 79
        %v2408 = vpop.permute.xlu0 %2407
        %v2409 = vsel %vm828, %v2402, %v2404
        %v2410 = vsel %vm828, %v2404, %v2406
        %v2411 = vsel %vm828, %v2406, %v2408
        %2415 = vst [vmem:[#allocation4 + $0x1c8] sm:$0xff] %v2409
        %2416 = vst [vmem:[#allocation4 + $0x1d0] sm:$0xff] %v2410
        %2417 = vst [vmem:[#allocation4 + $0x1d8] sm:$0xff] %v2411
        %v2418 = vld [vmem:[#allocation2] sm:$0xff]
        %v2419 = vld [vmem:[#allocation2 + $0x8] sm:$0xff]
        %v2420 = vld [vmem:[#allocation2 + $0x10] sm:$0xff]
        %v2421 = vld [vmem:[#allocation2 + $0x18] sm:$0xff]
        %2426 = vrot.lane.b32.xlu0 %v2418, 78
        %v2427 = vpop.permute.xlu0 %2426
        %2428 = vrot.lane.b32.xlu0 %v2419, 78
        %v2429 = vpop.permute.xlu0 %2428
        %2430 = vrot.lane.b32.xlu0 %v2420, 78
        %v2431 = vpop.permute.xlu0 %2430
        %2432 = vrot.lane.b32.xlu0 %v2421, 78
        %v2433 = vpop.permute.xlu0 %2432
        %v2434 = vsel %vm857, %v2427, %v2429
        %v2435 = vsel %vm857, %v2429, %v2431
        %v2436 = vsel %vm857, %v2431, %v2433
        %2440 = vst [vmem:[#allocation4 + $0x1e0] sm:$0xff] %v2434
        %2441 = vst [vmem:[#allocation4 + $0x1e8] sm:$0xff] %v2435
        %2442 = vst [vmem:[#allocation4 + $0x1f0] sm:$0xff] %v2436
        %v2443 = vld [vmem:[#allocation2] sm:$0xff]
        %v2444 = vld [vmem:[#allocation2 + $0x8] sm:$0xff]
        %v2445 = vld [vmem:[#allocation2 + $0x10] sm:$0xff]
        %v2446 = vld [vmem:[#allocation2 + $0x18] sm:$0xff]
        %2451 = vrot.lane.b32.xlu0 %v2443, 62
        %v2452 = vpop.permute.xlu0 %2451
        %2453 = vrot.lane.b32.xlu0 %v2444, 62
        %v2454 = vpop.permute.xlu0 %2453
        %2455 = vrot.lane.b32.xlu0 %v2445, 62
        %v2456 = vpop.permute.xlu0 %2455
        %2457 = vrot.lane.b32.xlu0 %v2446, 62
        %v2458 = vpop.permute.xlu0 %2457
        %v2459 = vsel %vm887, %v2452, %v2454
        %v2460 = vsel %vm887, %v2454, %v2456
        %v2461 = vsel %vm887, %v2456, %v2458
        %2465 = vst [vmem:[#allocation4 + $0x1f8] sm:$0xff] %v2459
        %2466 = vst [vmem:[#allocation4 + $0x200] sm:$0xff] %v2460
        %2467 = vst [vmem:[#allocation4 + $0x208] sm:$0xff] %v2461
        %v2468 = vld [vmem:[#allocation2] sm:$0xff]
        %v2469 = vld [vmem:[#allocation2 + $0x8] sm:$0xff]
        %v2470 = vld [vmem:[#allocation2 + $0x10] sm:$0xff]
        %v2471 = vld [vmem:[#allocation2 + $0x18] sm:$0xff]
        %2476 = vrot.lane.b32.xlu0 %v2468, 61
        %v2477 = vpop.permute.xlu0 %2476
        %2478 = vrot.lane.b32.xlu0 %v2469, 61
        %v2479 = vpop.permute.xlu0 %2478
        %2480 = vrot.lane.b32.xlu0 %v2470, 61
        %v2481 = vpop.permute.xlu0 %2480
        %2482 = vrot.lane.b32.xlu0 %v2471, 61
        %v2483 = vpop.permute.xlu0 %2482
        %v2484 = vsel %vm916, %v2477, %v2479
        %v2485 = vsel %vm916, %v2479, %v2481
        %v2486 = vsel %vm916, %v2481, %v2483
        %2490 = vst [vmem:[#allocation4 + $0x210] sm:$0xff] %v2484
        %2491 = vst [vmem:[#allocation4 + $0x218] sm:$0xff] %v2485
        %2492 = vst [vmem:[#allocation4 + $0x220] sm:$0xff] %v2486
        %v2493 = vld [vmem:[#allocation2] sm:$0xff]
        %v2494 = vld [vmem:[#allocation2 + $0x8] sm:$0xff]
        %v2495 = vld [vmem:[#allocation2 + $0x10] sm:$0xff]
        %v2496 = vld [vmem:[#allocation2 + $0x18] sm:$0xff]
        %2501 = vrot.lane.b32.xlu0 %v2493, 60
        %v2502 = vpop.permute.xlu0 %2501
        %2503 = vrot.lane.b32.xlu0 %v2494, 60
        %v2504 = vpop.permute.xlu0 %2503
        %2505 = vrot.lane.b32.xlu0 %v2495, 60
        %v2506 = vpop.permute.xlu0 %2505
        %2507 = vrot.lane.b32.xlu0 %v2496, 60
        %v2508 = vpop.permute.xlu0 %2507
        %v2509 = vsel %vm946, %v2502, %v2504
        %v2510 = vsel %vm946, %v2504, %v2506
        %v2511 = vsel %vm946, %v2506, %v2508
        %2515 = vst [vmem:[#allocation4 + $0x228] sm:$0xff] %v2509
        %2516 = vst [vmem:[#allocation4 + $0x230] sm:$0xff] %v2510
        %2517 = vst [vmem:[#allocation4 + $0x238] sm:$0xff] %v2511
        %v2518 = vld [vmem:[#allocation2] sm:$0xff]
        %v2519 = vld [vmem:[#allocation2 + $0x8] sm:$0xff]
        %v2520 = vld [vmem:[#allocation2 + $0x10] sm:$0xff]
        %v2521 = vld [vmem:[#allocation2 + $0x18] sm:$0xff]
        %2526 = vrot.lane.b32.xlu0 %v2518, 59
        %v2527 = vpop.permute.xlu0 %2526
        %2528 = vrot.lane.b32.xlu0 %v2519, 59
        %v2529 = vpop.permute.xlu0 %2528
        %2530 = vrot.lane.b32.xlu0 %v2520, 59
        %v2531 = vpop.permute.xlu0 %2530
        %2532 = vrot.lane.b32.xlu0 %v2521, 59
        %v2533 = vpop.permute.xlu0 %2532
        %v2534 = vsel %vm975, %v2527, %v2529
        %v2535 = vsel %vm975, %v2529, %v2531
        %v2536 = vsel %vm975, %v2531, %v2533
        %2540 = vst [vmem:[#allocation4 + $0x240] sm:$0xff] %v2534
        %2541 = vst [vmem:[#allocation4 + $0x248] sm:$0xff] %v2535
        %2542 = vst [vmem:[#allocation4 + $0x250] sm:$0xff] %v2536
        %v2543 = vld [vmem:[#allocation2] sm:$0xff]
        %v2544 = vld [vmem:[#allocation2 + $0x8] sm:$0xff]
        %v2545 = vld [vmem:[#allocation2 + $0x10] sm:$0xff]
        %v2546 = vld [vmem:[#allocation2 + $0x18] sm:$0xff]
        %2551 = vrot.lane.b32.xlu0 %v2543, 58
        %v2552 = vpop.permute.xlu0 %2551
        %2553 = vrot.lane.b32.xlu0 %v2544, 58
        %v2554 = vpop.permute.xlu0 %2553
        %2555 = vrot.lane.b32.xlu0 %v2545, 58
        %v2556 = vpop.permute.xlu0 %2555
        %2557 = vrot.lane.b32.xlu0 %v2546, 58
        %v2558 = vpop.permute.xlu0 %2557
        %v2559 = vsel %vm1005, %v2552, %v2554
        %v2560 = vsel %vm1005, %v2554, %v2556
        %v2561 = vsel %vm1005, %v2556, %v2558
        %2565 = vst [vmem:[#allocation4 + $0x258] sm:$0xff] %v2559
        %2566 = vst [vmem:[#allocation4 + $0x260] sm:$0xff] %v2560
        %2567 = vst [vmem:[#allocation4 + $0x268] sm:$0xff] %v2561
        %v2568 = vld [vmem:[#allocation2] sm:$0xff]
        %v2569 = vld [vmem:[#allocation2 + $0x8] sm:$0xff]
        %v2570 = vld [vmem:[#allocation2 + $0x10] sm:$0xff]
        %v2571 = vld [vmem:[#allocation2 + $0x18] sm:$0xff]
        %2576 = vrot.lane.b32.xlu0 %v2568, 57
        %v2577 = vpop.permute.xlu0 %2576
        %2578 = vrot.lane.b32.xlu0 %v2569, 57
        %v2579 = vpop.permute.xlu0 %2578
        %2580 = vrot.lane.b32.xlu0 %v2570, 57
        %v2581 = vpop.permute.xlu0 %2580
        %2582 = vrot.lane.b32.xlu0 %v2571, 57
        %v2583 = vpop.permute.xlu0 %2582
        %v2584 = vsel %vm1034, %v2577, %v2579
        %v2585 = vsel %vm1034, %v2579, %v2581
        %v2586 = vsel %vm1034, %v2581, %v2583
        %2590 = vst [vmem:[#allocation4 + $0x270] sm:$0xff] %v2584
        %2591 = vst [vmem:[#allocation4 + $0x278] sm:$0xff] %v2585
        %2592 = vst [vmem:[#allocation4 + $0x280] sm:$0xff] %v2586
        %v2593 = vld [vmem:[#allocation2] sm:$0xff]
        %v2594 = vld [vmem:[#allocation2 + $0x8] sm:$0xff]
        %v2595 = vld [vmem:[#allocation2 + $0x10] sm:$0xff]
        %v2596 = vld [vmem:[#allocation2 + $0x18] sm:$0xff]
        %2601 = vrot.lane.b32.xlu0 %v2593, 56
        %v2602 = vpop.permute.xlu0 %2601
        %2603 = vrot.lane.b32.xlu0 %v2594, 56
        %v2604 = vpop.permute.xlu0 %2603
        %2605 = vrot.lane.b32.xlu0 %v2595, 56
        %v2606 = vpop.permute.xlu0 %2605
        %2607 = vrot.lane.b32.xlu0 %v2596, 56
        %v2608 = vpop.permute.xlu0 %2607
        %v2609 = vsel %vm1064, %v2602, %v2604
        %v2610 = vsel %vm1064, %v2604, %v2606
        %v2611 = vsel %vm1064, %v2606, %v2608
        %2615 = vst [vmem:[#allocation4 + $0x288] sm:$0xff] %v2609
        %2616 = vst [vmem:[#allocation4 + $0x290] sm:$0xff] %v2610
        %2617 = vst [vmem:[#allocation4 + $0x298] sm:$0xff] %v2611
        %v2618 = vld [vmem:[#allocation2] sm:$0xff]
        %v2619 = vld [vmem:[#allocation2 + $0x8] sm:$0xff]
        %v2620 = vld [vmem:[#allocation2 + $0x10] sm:$0xff]
        %v2621 = vld [vmem:[#allocation2 + $0x18] sm:$0xff]
        %2626 = vrot.lane.b32.xlu0 %v2618, 40
        %v2627 = vpop.permute.xlu0 %2626
        %2628 = vrot.lane.b32.xlu0 %v2619, 40
        %v2629 = vpop.permute.xlu0 %2628
        %2630 = vrot.lane.b32.xlu0 %v2620, 40
        %v2631 = vpop.permute.xlu0 %2630
        %2632 = vrot.lane.b32.xlu0 %v2621, 40
        %v2633 = vpop.permute.xlu0 %2632
        %v2634 = vsel %vm1093, %v2627, %v2629
        %v2635 = vsel %vm1093, %v2629, %v2631
        %v2636 = vsel %vm1093, %v2631, %v2633
        %2640 = vst [vmem:[#allocation4 + $0x2a0] sm:$0xff] %v2634
        %2641 = vst [vmem:[#allocation4 + $0x2a8] sm:$0xff] %v2635
        %2642 = vst [vmem:[#allocation4 + $0x2b0] sm:$0xff] %v2636
        %v2643 = vld [vmem:[#allocation2] sm:$0xff]
        %v2644 = vld [vmem:[#allocation2 + $0x8] sm:$0xff]
        %v2645 = vld [vmem:[#allocation2 + $0x10] sm:$0xff]
        %v2646 = vld [vmem:[#allocation2 + $0x18] sm:$0xff]
        %2651 = vrot.lane.b32.xlu0 %v2643, 39
        %v2652 = vpop.permute.xlu0 %2651
        %2653 = vrot.lane.b32.xlu0 %v2644, 39
        %v2654 = vpop.permute.xlu0 %2653
        %2655 = vrot.lane.b32.xlu0 %v2645, 39
        %v2656 = vpop.permute.xlu0 %2655
        %2657 = vrot.lane.b32.xlu0 %v2646, 39
        %v2658 = vpop.permute.xlu0 %2657
        %v2659 = vsel %vm1123, %v2652, %v2654
        %v2660 = vsel %vm1123, %v2654, %v2656
        %v2661 = vsel %vm1123, %v2656, %v2658
        %2665 = vst [vmem:[#allocation4 + $0x2b8] sm:$0xff] %v2659
        %2666 = vst [vmem:[#allocation4 + $0x2c0] sm:$0xff] %v2660
        %2667 = vst [vmem:[#allocation4 + $0x2c8] sm:$0xff] %v2661
        %v2668 = vld [vmem:[#allocation2] sm:$0xff]
        %v2669 = vld [vmem:[#allocation2 + $0x8] sm:$0xff]
        %v2670 = vld [vmem:[#allocation2 + $0x10] sm:$0xff]
        %v2671 = vld [vmem:[#allocation2 + $0x18] sm:$0xff]
        %2676 = vrot.lane.b32.xlu0 %v2668, 38
        %v2677 = vpop.permute.xlu0 %2676
        %2678 = vrot.lane.b32.xlu0 %v2669, 38
        %v2679 = vpop.permute.xlu0 %2678
        %2680 = vrot.lane.b32.xlu0 %v2670, 38
        %v2681 = vpop.permute.xlu0 %2680
        %2682 = vrot.lane.b32.xlu0 %v2671, 38
        %v2683 = vpop.permute.xlu0 %2682
        %v2684 = vsel %vm1152, %v2677, %v2679
        %v2685 = vsel %vm1152, %v2679, %v2681
        %v2686 = vsel %vm1152, %v2681, %v2683
        %2690 = vst [vmem:[#allocation4 + $0x2d0] sm:$0xff] %v2684
        %2691 = vst [vmem:[#allocation4 + $0x2d8] sm:$0xff] %v2685
        %2692 = vst [vmem:[#allocation4 + $0x2e0] sm:$0xff] %v2686
        %v2693 = vld [vmem:[#allocation2] sm:$0xff]
        %v2694 = vld [vmem:[#allocation2 + $0x8] sm:$0xff]
        %v2695 = vld [vmem:[#allocation2 + $0x10] sm:$0xff]
        %v2696 = vld [vmem:[#allocation2 + $0x18] sm:$0xff]
        %2701 = vrot.lane.b32.xlu0 %v2693, 37
        %v2702 = vpop.permute.xlu0 %2701
        %2703 = vrot.lane.b32.xlu0 %v2694, 37
        %v2704 = vpop.permute.xlu0 %2703
        %2705 = vrot.lane.b32.xlu0 %v2695, 37
        %v2706 = vpop.permute.xlu0 %2705
        %2707 = vrot.lane.b32.xlu0 %v2696, 37
        %v2708 = vpop.permute.xlu0 %2707
        %v2709 = vsel %vm1182, %v2702, %v2704
        %v2710 = vsel %vm1182, %v2704, %v2706
        %v2711 = vsel %vm1182, %v2706, %v2708
        %2715 = vst [vmem:[#allocation4 + $0x2e8] sm:$0xff] %v2709
        %2716 = vst [vmem:[#allocation4 + $0x2f0] sm:$0xff] %v2710
        %2717 = vst [vmem:[#allocation4 + $0x2f8] sm:$0xff] %v2711
        %v2718 = vld [vmem:[#allocation2] sm:$0xff]
        %v2719 = vld [vmem:[#allocation2 + $0x8] sm:$0xff]
        %v2720 = vld [vmem:[#allocation2 + $0x10] sm:$0xff]
        %v2721 = vld [vmem:[#allocation2 + $0x18] sm:$0xff]
        %2726 = vrot.lane.b32.xlu0 %v2718, 36
        %v2727 = vpop.permute.xlu0 %2726
        %2728 = vrot.lane.b32.xlu0 %v2719, 36
        %v2729 = vpop.permute.xlu0 %2728
        %2730 = vrot.lane.b32.xlu0 %v2720, 36
        %v2731 = vpop.permute.xlu0 %2730
        %2732 = vrot.lane.b32.xlu0 %v2721, 36
        %v2733 = vpop.permute.xlu0 %2732
        %v2734 = vsel %vm1211, %v2727, %v2729
        %v2735 = vsel %vm1211, %v2729, %v2731
        %v2736 = vsel %vm1211, %v2731, %v2733
        %2740 = vst [vmem:[#allocation4 + $0x300] sm:$0xff] %v2734
        %2741 = vst [vmem:[#allocation4 + $0x308] sm:$0xff] %v2735
        %2742 = vst [vmem:[#allocation4 + $0x310] sm:$0xff] %v2736
        %v2743 = vld [vmem:[#allocation2] sm:$0xff]
        %v2744 = vld [vmem:[#allocation2 + $0x8] sm:$0xff]
        %v2745 = vld [vmem:[#allocation2 + $0x10] sm:$0xff]
        %v2746 = vld [vmem:[#allocation2 + $0x18] sm:$0xff]
        %2751 = vrot.lane.b32.xlu0 %v2743, 35
        %v2752 = vpop.permute.xlu0 %2751
        %2753 = vrot.lane.b32.xlu0 %v2744, 35
        %v2754 = vpop.permute.xlu0 %2753
        %2755 = vrot.lane.b32.xlu0 %v2745, 35
        %v2756 = vpop.permute.xlu0 %2755
        %2757 = vrot.lane.b32.xlu0 %v2746, 35
        %v2758 = vpop.permute.xlu0 %2757
        %v2759 = vsel %vm1241, %v2752, %v2754
        %v2760 = vsel %vm1241, %v2754, %v2756
        %v2761 = vsel %vm1241, %v2756, %v2758
        %2765 = vst [vmem:[#allocation4 + $0x318] sm:$0xff] %v2759
        %2766 = vst [vmem:[#allocation4 + $0x320] sm:$0xff] %v2760
        %2767 = vst [vmem:[#allocation4 + $0x328] sm:$0xff] %v2761
        %v2768 = vld [vmem:[#allocation2] sm:$0xff]
        %v2769 = vld [vmem:[#allocation2 + $0x8] sm:$0xff]
        %v2770 = vld [vmem:[#allocation2 + $0x10] sm:$0xff]
        %v2771 = vld [vmem:[#allocation2 + $0x18] sm:$0xff]
        %2776 = vrot.lane.b32.xlu0 %v2768, 34
        %v2777 = vpop.permute.xlu0 %2776
        %2778 = vrot.lane.b32.xlu0 %v2769, 34
        %v2779 = vpop.permute.xlu0 %2778
        %2780 = vrot.lane.b32.xlu0 %v2770, 34
        %v2781 = vpop.permute.xlu0 %2780
        %2782 = vrot.lane.b32.xlu0 %v2771, 34
        %v2783 = vpop.permute.xlu0 %2782
        %v2784 = vsel %vm1270, %v2777, %v2779
        %v2785 = vsel %vm1270, %v2779, %v2781
        %v2786 = vsel %vm1270, %v2781, %v2783
        %2790 = vst [vmem:[#allocation4 + $0x330] sm:$0xff] %v2784
        %2791 = vst [vmem:[#allocation4 + $0x338] sm:$0xff] %v2785
        %2792 = vst [vmem:[#allocation4 + $0x340] sm:$0xff] %v2786
        %v2793 = vld [vmem:[#allocation2] sm:$0xff]
        %v2794 = vld [vmem:[#allocation2 + $0x8] sm:$0xff]
        %v2795 = vld [vmem:[#allocation2 + $0x10] sm:$0xff]
        %v2796 = vld [vmem:[#allocation2 + $0x18] sm:$0xff]
        %2801 = vrot.lane.b32.xlu0 %v2793, 18
        %v2802 = vpop.permute.xlu0 %2801
        %2803 = vrot.lane.b32.xlu0 %v2794, 18
        %v2804 = vpop.permute.xlu0 %2803
        %2805 = vrot.lane.b32.xlu0 %v2795, 18
        %v2806 = vpop.permute.xlu0 %2805
        %2807 = vrot.lane.b32.xlu0 %v2796, 18
        %v2808 = vpop.permute.xlu0 %2807
        %v2809 = vsel %vm1300, %v2802, %v2804
        %v2810 = vsel %vm1300, %v2804, %v2806
        %v2811 = vsel %vm1300, %v2806, %v2808
        %2815 = vst [vmem:[#allocation4 + $0x348] sm:$0xff] %v2809
        %2816 = vst [vmem:[#allocation4 + $0x350] sm:$0xff] %v2810
        %2817 = vst [vmem:[#allocation4 + $0x358] sm:$0xff] %v2811
        %v2818 = vld [vmem:[#allocation2] sm:$0xff]
        %v2819 = vld [vmem:[#allocation2 + $0x8] sm:$0xff]
        %v2820 = vld [vmem:[#allocation2 + $0x10] sm:$0xff]
        %v2821 = vld [vmem:[#allocation2 + $0x18] sm:$0xff]
        %2826 = vrot.lane.b32.xlu0 %v2818, 17
        %v2827 = vpop.permute.xlu0 %2826
        %2828 = vrot.lane.b32.xlu0 %v2819, 17
        %v2829 = vpop.permute.xlu0 %2828
        %2830 = vrot.lane.b32.xlu0 %v2820, 17
        %v2831 = vpop.permute.xlu0 %2830
        %2832 = vrot.lane.b32.xlu0 %v2821, 17
        %v2833 = vpop.permute.xlu0 %2832
        %v2834 = vsel %vm1329, %v2827, %v2829
        %v2835 = vsel %vm1329, %v2829, %v2831
        %v2836 = vsel %vm1329, %v2831, %v2833
        %2840 = vst [vmem:[#allocation4 + $0x360] sm:$0xff] %v2834
        %2841 = vst [vmem:[#allocation4 + $0x368] sm:$0xff] %v2835
        %2842 = vst [vmem:[#allocation4 + $0x370] sm:$0xff] %v2836
        %v2843 = vld [vmem:[#allocation2] sm:$0xff]
        %v2844 = vld [vmem:[#allocation2 + $0x8] sm:$0xff]
        %v2845 = vld [vmem:[#allocation2 + $0x10] sm:$0xff]
        %v2846 = vld [vmem:[#allocation2 + $0x18] sm:$0xff]
        %2851 = vrot.lane.b32.xlu0 %v2843, 16
        %v2852 = vpop.permute.xlu0 %2851
        %2853 = vrot.lane.b32.xlu0 %v2844, 16
        %v2854 = vpop.permute.xlu0 %2853
        %2855 = vrot.lane.b32.xlu0 %v2845, 16
        %v2856 = vpop.permute.xlu0 %2855
        %2857 = vrot.lane.b32.xlu0 %v2846, 16
        %v2858 = vpop.permute.xlu0 %2857
        %v2859 = vsel %vm1359, %v2852, %v2854
        %v2860 = vsel %vm1359, %v2854, %v2856
        %v2861 = vsel %vm1359, %v2856, %v2858
        %2865 = vst [vmem:[#allocation4 + $0x378] sm:$0xff] %v2859
        %2866 = vst [vmem:[#allocation4 + $0x380] sm:$0xff] %v2860
        %2867 = vst [vmem:[#allocation4 + $0x388] sm:$0xff] %v2861
        %v2868 = vld [vmem:[#allocation2] sm:$0xff]
        %v2869 = vld [vmem:[#allocation2 + $0x8] sm:$0xff]
        %v2870 = vld [vmem:[#allocation2 + $0x10] sm:$0xff]
        %v2871 = vld [vmem:[#allocation2 + $0x18] sm:$0xff]
        %2876 = vrot.lane.b32.xlu0 %v2868, 15
        %v2877 = vpop.permute.xlu0 %2876
        %2878 = vrot.lane.b32.xlu0 %v2869, 15
        %v2879 = vpop.permute.xlu0 %2878
        %2880 = vrot.lane.b32.xlu0 %v2870, 15
        %v2881 = vpop.permute.xlu0 %2880
        %2882 = vrot.lane.b32.xlu0 %v2871, 15
        %v2883 = vpop.permute.xlu0 %2882
        %v2884 = vsel %vm1388, %v2877, %v2879
        %v2885 = vsel %vm1388, %v2879, %v2881
        %v2886 = vsel %vm1388, %v2881, %v2883
        %2890 = vst [vmem:[#allocation4 + $0x390] sm:$0xff] %v2884
        %2891 = vst [vmem:[#allocation4 + $0x398] sm:$0xff] %v2885
        %2892 = vst [vmem:[#allocation4 + $0x3a0] sm:$0xff] %v2886
        %v2893 = vld [vmem:[#allocation2] sm:$0xff]
        %v2894 = vld [vmem:[#allocation2 + $0x8] sm:$0xff]
        %v2895 = vld [vmem:[#allocation2 + $0x10] sm:$0xff]
        %v2896 = vld [vmem:[#allocation2 + $0x18] sm:$0xff]
        %2901 = vrot.lane.b32.xlu0 %v2893, 14
        %v2902 = vpop.permute.xlu0 %2901
        %2903 = vrot.lane.b32.xlu0 %v2894, 14
        %v2904 = vpop.permute.xlu0 %2903
        %2905 = vrot.lane.b32.xlu0 %v2895, 14
        %v2906 = vpop.permute.xlu0 %2905
        %2907 = vrot.lane.b32.xlu0 %v2896, 14
        %v2908 = vpop.permute.xlu0 %2907
        %v2909 = vsel %vm1418, %v2902, %v2904
        %v2910 = vsel %vm1418, %v2904, %v2906
        %v2911 = vsel %vm1418, %v2906, %v2908
        %2915 = vst [vmem:[#allocation4 + $0x3a8] sm:$0xff] %v2909
        %2916 = vst [vmem:[#allocation4 + $0x3b0] sm:$0xff] %v2910
        %2917 = vst [vmem:[#allocation4 + $0x3b8] sm:$0xff] %v2911
        %v2918 = vld [vmem:[#allocation2] sm:$0xff]
        %v2919 = vld [vmem:[#allocation2 + $0x8] sm:$0xff]
        %v2920 = vld [vmem:[#allocation2 + $0x10] sm:$0xff]
        %v2921 = vld [vmem:[#allocation2 + $0x18] sm:$0xff]
        %2926 = vrot.lane.b32.xlu0 %v2918, 13
        %v2927 = vpop.permute.xlu0 %2926
        %2928 = vrot.lane.b32.xlu0 %v2919, 13
        %v2929 = vpop.permute.xlu0 %2928
        %2930 = vrot.lane.b32.xlu0 %v2920, 13
        %v2931 = vpop.permute.xlu0 %2930
        %2932 = vrot.lane.b32.xlu0 %v2921, 13
        %v2933 = vpop.permute.xlu0 %2932
        %v2934 = vsel %vm1447, %v2927, %v2929
        %v2935 = vsel %vm1447, %v2929, %v2931
        %v2936 = vsel %vm1447, %v2931, %v2933
        %2940 = vst [vmem:[#allocation4 + $0x3c0] sm:$0xff] %v2934
        %2941 = vst [vmem:[#allocation4 + $0x3c8] sm:$0xff] %v2935
        %2942 = vst [vmem:[#allocation4 + $0x3d0] sm:$0xff] %v2936
        %v2943 = vld [vmem:[#allocation2] sm:$0xff]
        %v2944 = vld [vmem:[#allocation2 + $0x8] sm:$0xff]
        %v2945 = vld [vmem:[#allocation2 + $0x10] sm:$0xff]
        %v2946 = vld [vmem:[#allocation2 + $0x18] sm:$0xff]
        %2951 = vrot.lane.b32.xlu0 %v2943, 12
        %v2952 = vpop.permute.xlu0 %2951
        %2953 = vrot.lane.b32.xlu0 %v2944, 12
        %v2954 = vpop.permute.xlu0 %2953
        %2955 = vrot.lane.b32.xlu0 %v2945, 12
        %v2956 = vpop.permute.xlu0 %2955
        %2957 = vrot.lane.b32.xlu0 %v2946, 12
        %v2958 = vpop.permute.xlu0 %2957
        %v2959 = vsel %vm1477, %v2952, %v2954
        %v2960 = vsel %vm1477, %v2954, %v2956
        %v2961 = vsel %vm1477, %v2956, %v2958
        %2965 = vst [vmem:[#allocation4 + $0x3d8] sm:$0xff] %v2959
        %2966 = vst [vmem:[#allocation4 + $0x3e0] sm:$0xff] %v2960
        %2967 = vst [vmem:[#allocation4 + $0x3e8] sm:$0xff] %v2961
        %v2968 = vld [vmem:[#allocation2 + $0x8] sm:$0xff]
        %v2969 = vld [vmem:[#allocation2 + $0x10] sm:$0xff]
        %v2970 = vld [vmem:[#allocation2 + $0x18] sm:$0xff]
        %v2971 = vld [vmem:[#allocation2 + $0x20] sm:$0xff]
        %2976 = vrot.lane.b32.xlu0 %v2968, 124
        %v2977 = vpop.permute.xlu0 %2976
        %2978 = vrot.lane.b32.xlu0 %v2969, 124
        %v2979 = vpop.permute.xlu0 %2978
        %2980 = vrot.lane.b32.xlu0 %v2970, 124
        %v2981 = vpop.permute.xlu0 %2980
        %2982 = vrot.lane.b32.xlu0 %v2971, 124
        %v2983 = vpop.permute.xlu0 %2982
        %v2984 = vsel %vm385, %v2977, %v2979
        %v2985 = vsel %vm385, %v2979, %v2981
        %v2986 = vsel %vm385, %v2981, %v2983
        %2990 = vst [vmem:[#allocation4 + $0x3f0] sm:$0xff] %v2984
        %2991 = vst [vmem:[#allocation4 + $0x3f8] sm:$0xff] %v2985
        %2992 = vst [vmem:[#allocation4 + $0x400] sm:$0xff] %v2986
        %v2993 = vld [vmem:[#allocation2 + $0x8] sm:$0xff]
        %v2994 = vld [vmem:[#allocation2 + $0x10] sm:$0xff]
        %v2995 = vld [vmem:[#allocation2 + $0x18] sm:$0xff]
        %v2996 = vld [vmem:[#allocation2 + $0x20] sm:$0xff]
        %3001 = vrot.lane.b32.xlu0 %v2993, 123
        %v3002 = vpop.permute.xlu0 %3001
        %3003 = vrot.lane.b32.xlu0 %v2994, 123
        %v3004 = vpop.permute.xlu0 %3003
        %3005 = vrot.lane.b32.xlu0 %v2995, 123
        %v3006 = vpop.permute.xlu0 %3005
        %3007 = vrot.lane.b32.xlu0 %v2996, 123
        %v3008 = vpop.permute.xlu0 %3007
        %v3009 = vsel %vm415, %v3002, %v3004
        %v3010 = vsel %vm415, %v3004, %v3006
        %v3011 = vsel %vm415, %v3006, %v3008
        %3015 = vst [vmem:[#allocation4 + $0x408] sm:$0xff] %v3009
        %3016 = vst [vmem:[#allocation4 + $0x410] sm:$0xff] %v3010
        %3017 = vst [vmem:[#allocation4 + $0x418] sm:$0xff] %v3011
        %v3018 = vld [vmem:[#allocation2 + $0x8] sm:$0xff]
        %v3019 = vld [vmem:[#allocation2 + $0x10] sm:$0xff]
        %v3020 = vld [vmem:[#allocation2 + $0x18] sm:$0xff]
        %v3021 = vld [vmem:[#allocation2 + $0x20] sm:$0xff]
        %3026 = vrot.lane.b32.xlu0 %v3018, 122
        %v3027 = vpop.permute.xlu0 %3026
        %3028 = vrot.lane.b32.xlu0 %v3019, 122
        %v3029 = vpop.permute.xlu0 %3028
        %3030 = vrot.lane.b32.xlu0 %v3020, 122
        %v3031 = vpop.permute.xlu0 %3030
        %3032 = vrot.lane.b32.xlu0 %v3021, 122
        %v3033 = vpop.permute.xlu0 %3032
        %v3034 = vsel %vm444, %v3027, %v3029
        %v3035 = vsel %vm444, %v3029, %v3031
        %v3036 = vsel %vm444, %v3031, %v3033
        %3040 = vst [vmem:[#allocation4 + $0x420] sm:$0xff] %v3034
        %3041 = vst [vmem:[#allocation4 + $0x428] sm:$0xff] %v3035
        %3042 = vst [vmem:[#allocation4 + $0x430] sm:$0xff] %v3036
        %v3043 = vld [vmem:[#allocation2 + $0x8] sm:$0xff]
        %v3044 = vld [vmem:[#allocation2 + $0x10] sm:$0xff]
        %v3045 = vld [vmem:[#allocation2 + $0x18] sm:$0xff]
        %v3046 = vld [vmem:[#allocation2 + $0x20] sm:$0xff]
        %3051 = vrot.lane.b32.xlu0 %v3043, 121
        %v3052 = vpop.permute.xlu0 %3051
        %3053 = vrot.lane.b32.xlu0 %v3044, 121
        %v3054 = vpop.permute.xlu0 %3053
        %3055 = vrot.lane.b32.xlu0 %v3045, 121
        %v3056 = vpop.permute.xlu0 %3055
        %3057 = vrot.lane.b32.xlu0 %v3046, 121
        %v3058 = vpop.permute.xlu0 %3057
        %v3059 = vsel %vm1592, %v3052, %v3054
        %v3060 = vsel %vm1592, %v3054, %v3056
        %v3061 = vsel %vm1592, %v3056, %v3058
        %3065 = vst [vmem:[#allocation4 + $0x438] sm:$0xff] %v3059
        %3066 = vst [vmem:[#allocation4 + $0x440] sm:$0xff] %v3060
        %3067 = vst [vmem:[#allocation4 + $0x448] sm:$0xff] %v3061
        %v3068 = vld [vmem:[#allocation2 + $0x8] sm:$0xff]
        %v3069 = vld [vmem:[#allocation2 + $0x10] sm:$0xff]
        %v3070 = vld [vmem:[#allocation2 + $0x18] sm:$0xff]
        %v3071 = vld [vmem:[#allocation2 + $0x20] sm:$0xff]
        %3076 = vrot.lane.b32.xlu0 %v3068, 120
        %v3077 = vpop.permute.xlu0 %3076
        %3078 = vrot.lane.b32.xlu0 %v3069, 120
        %v3079 = vpop.permute.xlu0 %3078
        %3080 = vrot.lane.b32.xlu0 %v3070, 120
        %v3081 = vpop.permute.xlu0 %3080
        %3082 = vrot.lane.b32.xlu0 %v3071, 120
        %v3083 = vpop.permute.xlu0 %3082
        %v3084 = vsel %vm1621, %v3077, %v3079
        %v3085 = vsel %vm1621, %v3079, %v3081
        %v3086 = vsel %vm1621, %v3081, %v3083
        %3090 = vst [vmem:[#allocation4 + $0x450] sm:$0xff] %v3084
        %3091 = vst [vmem:[#allocation4 + $0x458] sm:$0xff] %v3085
        %3092 = vst [vmem:[#allocation4 + $0x460] sm:$0xff] %v3086
        %v3093 = vld [vmem:[#allocation2 + $0x8] sm:$0xff]
        %v3094 = vld [vmem:[#allocation2 + $0x10] sm:$0xff]
        %v3095 = vld [vmem:[#allocation2 + $0x18] sm:$0xff]
        %v3096 = vld [vmem:[#allocation2 + $0x20] sm:$0xff]
        %3101 = vrot.lane.b32.xlu0 %v3093, 119
        %v3102 = vpop.permute.xlu0 %3101
        %3103 = vrot.lane.b32.xlu0 %v3094, 119
        %v3104 = vpop.permute.xlu0 %3103
        %3105 = vrot.lane.b32.xlu0 %v3095, 119
        %v3106 = vpop.permute.xlu0 %3105
        %3107 = vrot.lane.b32.xlu0 %v3096, 119
        %v3108 = vpop.permute.xlu0 %3107
        %v3109 = vsel %vm1651, %v3102, %v3104
        %v3110 = vsel %vm1651, %v3104, %v3106
        %v3111 = vsel %vm1651, %v3106, %v3108
        %3115 = vst [vmem:[#allocation4 + $0x468] sm:$0xff] %v3109
        %3116 = vst [vmem:[#allocation4 + $0x470] sm:$0xff] %v3110
        %3117 = vst [vmem:[#allocation4 + $0x478] sm:$0xff] %v3111
        %v3118 = vld [vmem:[#allocation2 + $0x8] sm:$0xff]
        %v3119 = vld [vmem:[#allocation2 + $0x10] sm:$0xff]
        %v3120 = vld [vmem:[#allocation2 + $0x18] sm:$0xff]
        %v3121 = vld [vmem:[#allocation2 + $0x20] sm:$0xff]
        %3126 = vrot.lane.b32.xlu0 %v3118, 118
        %v3127 = vpop.permute.xlu0 %3126
        %3128 = vrot.lane.b32.xlu0 %v3119, 118
        %v3129 = vpop.permute.xlu0 %3128
        %3130 = vrot.lane.b32.xlu0 %v3120, 118
        %v3131 = vpop.permute.xlu0 %3130
        %3132 = vrot.lane.b32.xlu0 %v3121, 118
        %v3133 = vpop.permute.xlu0 %3132
        %v3134 = vsel %vm1680, %v3127, %v3129
        %v3135 = vsel %vm1680, %v3129, %v3131
        %v3136 = vsel %vm1680, %v3131, %v3133
        %3140 = vst [vmem:[#allocation4 + $0x480] sm:$0xff] %v3134
        %3141 = vst [vmem:[#allocation4 + $0x488] sm:$0xff] %v3135
        %3142 = vst [vmem:[#allocation4 + $0x490] sm:$0xff] %v3136
        %v3143 = vld [vmem:[#allocation10] sm:$0xff]
        %v3144 = vld [vmem:[#allocation10 + $0x8] sm:$0xff]
        %v3145 = vld [vmem:[#allocation10 + $0x10] sm:$0xff]
        %v3146 = vld [vmem:[#allocation10 + $0x18] sm:$0xff]
        %v3147 = vld [vmem:[#allocation4] sm:$0xff]
        %v3148 = vld [vmem:[#allocation4 + $0x8] sm:$0xff]
        %v3149 = vld [vmem:[#allocation4 + $0x10] sm:$0xff]
        %v3150 = vld [vmem:[#allocation4 + $0x18] sm:$0xff]
        %v3151 = vld [vmem:[#allocation4 + $0x20] sm:$0xff]
        %v3152 = vld [vmem:[#allocation4 + $0x28] sm:$0xff]
        %v3153 = vld [vmem:[#allocation4 + $0x30] sm:$0xff]
        %v3154 = vld [vmem:[#allocation4 + $0x38] sm:$0xff]
        %v3155 = vld [vmem:[#allocation4 + $0x40] sm:$0xff]
        %v3156 = vld [vmem:[#allocation4 + $0x48] sm:$0xff]
        %v3157 = vld [vmem:[#allocation4 + $0x50] sm:$0xff]
        %v3158 = vld [vmem:[#allocation4 + $0x58] sm:$0xff]
        %v3159 = vld [vmem:[#allocation4 + $0x60] sm:$0xff]
        %v3160 = vld [vmem:[#allocation4 + $0x68] sm:$0xff]
        %v3161 = vld [vmem:[#allocation4 + $0x70] sm:$0xff]
        %v3162 = vld [vmem:[#allocation4 + $0x78] sm:$0xff]
        %v3163 = vld [vmem:[#allocation4 + $0x80] sm:$0xff]
        %v3164 = vld [vmem:[#allocation4 + $0x88] sm:$0xff]
        %v3165 = vld [vmem:[#allocation4 + $0x90] sm:$0xff]
        %v3166 = vld [vmem:[#allocation4 + $0x98] sm:$0xff]
        %v3167 = vld [vmem:[#allocation4 + $0xa0] sm:$0xff]
        %v3168 = vld [vmem:[#allocation4 + $0xa8] sm:$0xff]
        %v3169 = vld [vmem:[#allocation4 + $0xb0] sm:$0xff]
        %v3170 = vld [vmem:[#allocation4 + $0xb8] sm:$0xff]
        %v3171 = vld [vmem:[#allocation4 + $0xc0] sm:$0xff]
        %v3172 = vld [vmem:[#allocation4 + $0xc8] sm:$0xff]
        %v3173 = vld [vmem:[#allocation4 + $0xd0] sm:$0xff]
        %v3174 = vld [vmem:[#allocation4 + $0xd8] sm:$0xff]
        %v3175 = vld [vmem:[#allocation4 + $0xe0] sm:$0xff]
        %v3176 = vld [vmem:[#allocation4 + $0xe8] sm:$0xff]
        %v3177 = vld [vmem:[#allocation4 + $0xf0] sm:$0xff]
        %v3178 = vld [vmem:[#allocation4 + $0xf8] sm:$0xff]
        %v3179 = vld [vmem:[#allocation4 + $0x100] sm:$0xff]
        %v3180 = vld [vmem:[#allocation4 + $0x108] sm:$0xff]
        %v3181 = vld [vmem:[#allocation4 + $0x110] sm:$0xff]
        %v3182 = vld [vmem:[#allocation4 + $0x118] sm:$0xff]
        %v3183 = vld [vmem:[#allocation4 + $0x120] sm:$0xff]
        %v3184 = vld [vmem:[#allocation4 + $0x128] sm:$0xff]
        %v3185 = vld [vmem:[#allocation4 + $0x130] sm:$0xff]
        %v3186 = vld [vmem:[#allocation4 + $0x138] sm:$0xff]
        %v3187 = vld [vmem:[#allocation4 + $0x140] sm:$0xff]
        %v3188 = vld [vmem:[#allocation4 + $0x148] sm:$0xff]
        %v3189 = vld [vmem:[#allocation4 + $0x150] sm:$0xff]
        %v3190 = vld [vmem:[#allocation4 + $0x158] sm:$0xff]
        %v3191 = vld [vmem:[#allocation4 + $0x160] sm:$0xff]
        %v3192 = vld [vmem:[#allocation4 + $0x168] sm:$0xff]
        %v3193 = vld [vmem:[#allocation4 + $0x170] sm:$0xff]
        %v3194 = vld [vmem:[#allocation4 + $0x178] sm:$0xff]
        %v3195 = vld [vmem:[#allocation4 + $0x180] sm:$0xff]
        %v3196 = vld [vmem:[#allocation4 + $0x188] sm:$0xff]
        %v3197 = vld [vmem:[#allocation4 + $0x190] sm:$0xff]
        %v3198 = vld [vmem:[#allocation4 + $0x198] sm:$0xff]
        %v3199 = vld [vmem:[#allocation4 + $0x1a0] sm:$0xff]
        %v3200 = vld [vmem:[#allocation4 + $0x1a8] sm:$0xff]
        %v3201 = vld [vmem:[#allocation4 + $0x1b0] sm:$0xff]
        %v3202 = vld [vmem:[#allocation4 + $0x1b8] sm:$0xff]
        %v3203 = vld [vmem:[#allocation4 + $0x1c0] sm:$0xff]
        %v3204 = vld [vmem:[#allocation4 + $0x1c8] sm:$0xff]
        %v3205 = vld [vmem:[#allocation4 + $0x1d0] sm:$0xff]
        %v3206 = vld [vmem:[#allocation4 + $0x1d8] sm:$0xff]
        %v3207 = vld [vmem:[#allocation4 + $0x1e0] sm:$0xff]
        %v3208 = vld [vmem:[#allocation4 + $0x1e8] sm:$0xff]
        %v3209 = vld [vmem:[#allocation4 + $0x1f0] sm:$0xff]
        %v3210 = vld [vmem:[#allocation4 + $0x1f8] sm:$0xff]
        %v3211 = vld [vmem:[#allocation4 + $0x200] sm:$0xff]
        %v3212 = vld [vmem:[#allocation4 + $0x208] sm:$0xff]
        %v3213 = vld [vmem:[#allocation4 + $0x210] sm:$0xff]
        %v3214 = vld [vmem:[#allocation4 + $0x218] sm:$0xff]
        %v3215 = vld [vmem:[#allocation4 + $0x220] sm:$0xff]
        %v3216 = vld [vmem:[#allocation4 + $0x228] sm:$0xff]
        %v3217 = vld [vmem:[#allocation4 + $0x230] sm:$0xff]
        %v3218 = vld [vmem:[#allocation4 + $0x238] sm:$0xff]
        %v3219 = vld [vmem:[#allocation4 + $0x240] sm:$0xff]
        %v3220 = vld [vmem:[#allocation4 + $0x248] sm:$0xff]
        %v3221 = vld [vmem:[#allocation4 + $0x250] sm:$0xff]
        %v3222 = vld [vmem:[#allocation4 + $0x258] sm:$0xff]
        %v3223 = vld [vmem:[#allocation4 + $0x260] sm:$0xff]
        %v3224 = vld [vmem:[#allocation4 + $0x268] sm:$0xff]
        %v3225 = vld [vmem:[#allocation4 + $0x270] sm:$0xff]
        %v3226 = vld [vmem:[#allocation4 + $0x278] sm:$0xff]
        %v3227 = vld [vmem:[#allocation4 + $0x280] sm:$0xff]
        %v3228 = vld [vmem:[#allocation4 + $0x288] sm:$0xff]
        %v3229 = vld [vmem:[#allocation4 + $0x290] sm:$0xff]
        %v3230 = vld [vmem:[#allocation4 + $0x298] sm:$0xff]
        %v3231 = vld [vmem:[#allocation4 + $0x2a0] sm:$0xff]
        %v3232 = vld [vmem:[#allocation4 + $0x2a8] sm:$0xff]
        %v3233 = vld [vmem:[#allocation4 + $0x2b0] sm:$0xff]
        %v3234 = vld [vmem:[#allocation4 + $0x2b8] sm:$0xff]
        %v3235 = vld [vmem:[#allocation4 + $0x2c0] sm:$0xff]
        %v3236 = vld [vmem:[#allocation4 + $0x2c8] sm:$0xff]
        %v3237 = vld [vmem:[#allocation4 + $0x2d0] sm:$0xff]
        %v3238 = vld [vmem:[#allocation4 + $0x2d8] sm:$0xff]
        %v3239 = vld [vmem:[#allocation4 + $0x2e0] sm:$0xff]
        %v3240 = vld [vmem:[#allocation4 + $0x2e8] sm:$0xff]
        %v3241 = vld [vmem:[#allocation4 + $0x2f0] sm:$0xff]
        %v3242 = vld [vmem:[#allocation4 + $0x2f8] sm:$0xff]
        %v3243 = vld [vmem:[#allocation4 + $0x300] sm:$0xff]
        %v3244 = vld [vmem:[#allocation4 + $0x308] sm:$0xff]
        %v3245 = vld [vmem:[#allocation4 + $0x310] sm:$0xff]
        %v3246 = vld [vmem:[#allocation4 + $0x318] sm:$0xff]
        %v3247 = vld [vmem:[#allocation4 + $0x320] sm:$0xff]
        %v3248 = vld [vmem:[#allocation4 + $0x328] sm:$0xff]
        %v3249 = vld [vmem:[#allocation4 + $0x330] sm:$0xff]
        %v3250 = vld [vmem:[#allocation4 + $0x338] sm:$0xff]
        %v3251 = vld [vmem:[#allocation4 + $0x340] sm:$0xff]
        %v3252 = vld [vmem:[#allocation4 + $0x348] sm:$0xff]
        %v3253 = vld [vmem:[#allocation4 + $0x350] sm:$0xff]
        %v3254 = vld [vmem:[#allocation4 + $0x358] sm:$0xff]
        %v3255 = vld [vmem:[#allocation4 + $0x360] sm:$0xff]
        %v3256 = vld [vmem:[#allocation4 + $0x368] sm:$0xff]
        %v3257 = vld [vmem:[#allocation4 + $0x370] sm:$0xff]
        %v3258 = vld [vmem:[#allocation4 + $0x378] sm:$0xff]
        %v3259 = vld [vmem:[#allocation4 + $0x380] sm:$0xff]
        %v3260 = vld [vmem:[#allocation4 + $0x388] sm:$0xff]
        %v3261 = vld [vmem:[#allocation4 + $0x390] sm:$0xff]
        %v3262 = vld [vmem:[#allocation4 + $0x398] sm:$0xff]
        %v3263 = vld [vmem:[#allocation4 + $0x3a0] sm:$0xff]
        %v3264 = vld [vmem:[#allocation4 + $0x3a8] sm:$0xff]
        %v3265 = vld [vmem:[#allocation4 + $0x3b0] sm:$0xff]
        %v3266 = vld [vmem:[#allocation4 + $0x3b8] sm:$0xff]
        %v3267 = vld [vmem:[#allocation4 + $0x3c0] sm:$0xff]
        %v3268 = vld [vmem:[#allocation4 + $0x3c8] sm:$0xff]
        %v3269 = vld [vmem:[#allocation4 + $0x3d0] sm:$0xff]
        %v3270 = vld [vmem:[#allocation4 + $0x3d8] sm:$0xff]
        %v3271 = vld [vmem:[#allocation4 + $0x3e0] sm:$0xff]
        %v3272 = vld [vmem:[#allocation4 + $0x3e8] sm:$0xff]
        %v3273 = vld [vmem:[#allocation4 + $0x3f0] sm:$0xff]
        %v3274 = vld [vmem:[#allocation4 + $0x3f8] sm:$0xff]
        %v3275 = vld [vmem:[#allocation4 + $0x400] sm:$0xff]
        %v3276 = vld [vmem:[#allocation4 + $0x408] sm:$0xff]
        %v3277 = vld [vmem:[#allocation4 + $0x410] sm:$0xff]
        %v3278 = vld [vmem:[#allocation4 + $0x418] sm:$0xff]
        %v3279 = vld [vmem:[#allocation4 + $0x420] sm:$0xff]
        %v3280 = vld [vmem:[#allocation4 + $0x428] sm:$0xff]
        %v3281 = vld [vmem:[#allocation4 + $0x430] sm:$0xff]
        %v3282 = vld [vmem:[#allocation4 + $0x438] sm:$0xff]
        %v3283 = vld [vmem:[#allocation4 + $0x440] sm:$0xff]
        %v3284 = vld [vmem:[#allocation4 + $0x448] sm:$0xff]
        %v3285 = vld [vmem:[#allocation4 + $0x450] sm:$0xff]
        %v3286 = vld [vmem:[#allocation4 + $0x458] sm:$0xff]
        %v3287 = vld [vmem:[#allocation4 + $0x460] sm:$0xff]
        %v3288 = vld [vmem:[#allocation4 + $0x468] sm:$0xff]
        %v3289 = vld [vmem:[#allocation4 + $0x470] sm:$0xff]
        %v3290 = vld [vmem:[#allocation4 + $0x478] sm:$0xff]
        %v3291 = vld [vmem:[#allocation4 + $0x480] sm:$0xff]
        %v3292 = vld [vmem:[#allocation4 + $0x488] sm:$0xff]
        %v3293 = vld [vmem:[#allocation4 + $0x490] sm:$0xff]
        %vm3294 = vcmask 64512
        %v3296 = vsel %vm3294, %v3146, 0
        %3298 = vmatpush.msra.mxu0 %v3192
        %3299 = vmatpush.msra.mxu0 %v3189
        %3300 = vmatpush.msra.mxu0 %v3186
        %3301 = vmatpush.msra.mxu0 %v3183
        %3302 = vmatpush.msra.mxu0 %v3180
        %3303 = vmatpush.msra.mxu0 %v3177
        %3304 = vmatpush.msra.mxu0 %v3174
        %3305 = vmatpush.msra.mxu0 %v3171
        %3306 = vmatpush.msra.mxu0 %v3168
        %3307 = vmatpush.msra.mxu0 %v3165
        %3308 = vmatpush.msra.mxu0 %v3162
        %3309 = vmatpush.msra.mxu0 %v3159
        %3310 = vmatpush.msra.mxu0 %v3156
        %3311 = vmatpush.msra.mxu0 %v3153
        %3312 = vmatpush.msra.mxu0 %v3150
        %3313 = vmatpush.msra.mxu0 %v3147
        %3314 = vmatmul.f32.gmra.mxu0 %v3143
        %v3315 = vpop.f32.mrf.mxu0
        %v3316 = vadd.f32 0.0, %v3315
        %3317 = vdwg.mxu0
        %3318 = vmatpush.msra.mxu0 %v3240
        %3319 = vmatpush.msra.mxu0 %v3237
        %3320 = vmatpush.msra.mxu0 %v3234
        %3321 = vmatpush.msra.mxu0 %v3231
        %3322 = vmatpush.msra.mxu0 %v3228
        %3323 = vmatpush.msra.mxu0 %v3225
        %3324 = vmatpush.msra.mxu0 %v3222
        %3325 = vmatpush.msra.mxu0 %v3219
        %3326 = vmatpush.msra.mxu0 %v3216
        %3327 = vmatpush.msra.mxu0 %v3213
        %3328 = vmatpush.msra.mxu0 %v3210
        %3329 = vmatpush.msra.mxu0 %v3207
        %3330 = vmatpush.msra.mxu0 %v3204
        %3331 = vmatpush.msra.mxu0 %v3201
        %3332 = vmatpush.msra.mxu0 %v3198
        %3333 = vmatpush.msra.mxu0 %v3195
        %3334 = vmatmul.f32.gmra.mxu0 %v3144
        %v3335 = vpop.f32.mrf.mxu0
        %v3336 = vadd.f32 %v3316, %v3335
        %3337 = vdwg.mxu0
        %3338 = vmatpush.msra.mxu0 %v3288
        %3339 = vmatpush.msra.mxu0 %v3285
        %3340 = vmatpush.msra.mxu0 %v3282
        %3341 = vmatpush.msra.mxu0 %v3279
        %3342 = vmatpush.msra.mxu0 %v3276
        %3343 = vmatpush.msra.mxu0 %v3273
        %3344 = vmatpush.msra.mxu0 %v3270
        %3345 = vmatpush.msra.mxu0 %v3267
        %3346 = vmatpush.msra.mxu0 %v3264
        %3347 = vmatpush.msra.mxu0 %v3261
        %3348 = vmatpush.msra.mxu0 %v3258
        %3349 = vmatpush.msra.mxu0 %v3255
        %3350 = vmatpush.msra.mxu0 %v3252
        %3351 = vmatpush.msra.mxu0 %v3249
        %3352 = vmatpush.msra.mxu0 %v3246
        %3353 = vmatpush.msra.mxu0 %v3243
        %3354 = vmatmul.f32.gmra.mxu0 %v3145
        %v3355 = vpop.f32.mrf.mxu0
        %v3356 = vadd.f32 %v3336, %v3355
        %3357 = vdwg.mxu0
        %3358 = vmatpush.msra.mxu0 0.0
        %3359 = vmatpush.msra.mxu0 0.0
        %3360 = vmatpush.msra.mxu0 0.0
        %3361 = vmatpush.msra.mxu0 0.0
        %3362 = vmatpush.msra.mxu0 0.0
        %3363 = vmatpush.msra.mxu0 0.0
        %3364 = vmatpush.msra.mxu0 0.0
        %3365 = vmatpush.msra.mxu0 0.0
        %3366 = vmatpush.msra.mxu0 0.0
        %3367 = vmatpush.msra.mxu0 0.0
        %3368 = vmatpush.msra.mxu0 0.0
        %3369 = vmatpush.msra.mxu0 0.0
        %3370 = vmatpush.msra.mxu0 0.0
        %3371 = vmatpush.msra.mxu0 0.0
        %3372 = vmatpush.msra.mxu0 0.0
        %3373 = vmatpush.msra.mxu0 %v3291
        %3374 = vmatmul.f32.gmra.mxu0 %v3296
        %v3375 = vpop.f32.mrf.mxu0
        %v3376 = vadd.f32 %v3356, %v3375
        %3377 = vdwg.mxu0
        %3378 = vmatpush.msra.mxu0 %v3193
        %3379 = vmatpush.msra.mxu0 %v3190
        %3380 = vmatpush.msra.mxu0 %v3187
        %3381 = vmatpush.msra.mxu0 %v3184
        %3382 = vmatpush.msra.mxu0 %v3181
        %3383 = vmatpush.msra.mxu0 %v3178
        %3384 = vmatpush.msra.mxu0 %v3175
        %3385 = vmatpush.msra.mxu0 %v3172
        %3386 = vmatpush.msra.mxu0 %v3169
        %3387 = vmatpush.msra.mxu0 %v3166
        %3388 = vmatpush.msra.mxu0 %v3163
        %3389 = vmatpush.msra.mxu0 %v3160
        %3390 = vmatpush.msra.mxu0 %v3157
        %3391 = vmatpush.msra.mxu0 %v3154
        %3392 = vmatpush.msra.mxu0 %v3151
        %3393 = vmatpush.msra.mxu0 %v3148
        %3394 = vmatmul.f32.gmra.mxu0 %v3143
        %v3395 = vpop.f32.mrf.mxu0
        %v3396 = vadd.f32 0.0, %v3395
        %3397 = vdwg.mxu0
        %3398 = vmatpush.msra.mxu0 %v3241
        %3399 = vmatpush.msra.mxu0 %v3238
        %3400 = vmatpush.msra.mxu0 %v3235
        %3401 = vmatpush.msra.mxu0 %v3232
        %3402 = vmatpush.msra.mxu0 %v3229
        %3403 = vmatpush.msra.mxu0 %v3226
        %3404 = vmatpush.msra.mxu0 %v3223
        %3405 = vmatpush.msra.mxu0 %v3220
        %3406 = vmatpush.msra.mxu0 %v3217
        %3407 = vmatpush.msra.mxu0 %v3214
        %3408 = vmatpush.msra.mxu0 %v3211
        %3409 = vmatpush.msra.mxu0 %v3208
        %3410 = vmatpush.msra.mxu0 %v3205
        %3411 = vmatpush.msra.mxu0 %v3202
        %3412 = vmatpush.msra.mxu0 %v3199
        %3413 = vmatpush.msra.mxu0 %v3196
        %3414 = vmatmul.f32.gmra.mxu0 %v3144
        %v3415 = vpop.f32.mrf.mxu0
        %v3416 = vadd.f32 %v3396, %v3415
        %3417 = vdwg.mxu0
        %3418 = vmatpush.msra.mxu0 %v3289
        %3419 = vmatpush.msra.mxu0 %v3286
        %3420 = vmatpush.msra.mxu0 %v3283
        %3421 = vmatpush.msra.mxu0 %v3280
        %3422 = vmatpush.msra.mxu0 %v3277
        %3423 = vmatpush.msra.mxu0 %v3274
        %3424 = vmatpush.msra.mxu0 %v3271
        %3425 = vmatpush.msra.mxu0 %v3268
        %3426 = vmatpush.msra.mxu0 %v3265
        %3427 = vmatpush.msra.mxu0 %v3262
        %3428 = vmatpush.msra.mxu0 %v3259
        %3429 = vmatpush.msra.mxu0 %v3256
        %3430 = vmatpush.msra.mxu0 %v3253
        %3431 = vmatpush.msra.mxu0 %v3250
        %3432 = vmatpush.msra.mxu0 %v3247
        %3433 = vmatpush.msra.mxu0 %v3244
        %3434 = vmatmul.f32.gmra.mxu0 %v3145
        %v3435 = vpop.f32.mrf.mxu0
        %v3436 = vadd.f32 %v3416, %v3435
        %3437 = vdwg.mxu0
        %3438 = vmatpush.msra.mxu0 0.0
        %3439 = vmatpush.msra.mxu0 0.0
        %3440 = vmatpush.msra.mxu0 0.0
        %3441 = vmatpush.msra.mxu0 0.0
        %3442 = vmatpush.msra.mxu0 0.0
        %3443 = vmatpush.msra.mxu0 0.0
        %3444 = vmatpush.msra.mxu0 0.0
        %3445 = vmatpush.msra.mxu0 0.0
        %3446 = vmatpush.msra.mxu0 0.0
        %3447 = vmatpush.msra.mxu0 0.0
        %3448 = vmatpush.msra.mxu0 0.0
        %3449 = vmatpush.msra.mxu0 0.0
        %3450 = vmatpush.msra.mxu0 0.0
        %3451 = vmatpush.msra.mxu0 0.0
        %3452 = vmatpush.msra.mxu0 0.0
        %3453 = vmatpush.msra.mxu0 %v3292
        %3454 = vmatmul.f32.gmra.mxu0 %v3296
        %v3455 = vpop.f32.mrf.mxu0
        %v3456 = vadd.f32 %v3436, %v3455
        %3457 = vdwg.mxu0
        %3458 = vmatpush.msra.mxu0 %v3194
        %3459 = vmatpush.msra.mxu0 %v3191
        %3460 = vmatpush.msra.mxu0 %v3188
        %3461 = vmatpush.msra.mxu0 %v3185
        %3462 = vmatpush.msra.mxu0 %v3182
        %3463 = vmatpush.msra.mxu0 %v3179
        %3464 = vmatpush.msra.mxu0 %v3176
        %3465 = vmatpush.msra.mxu0 %v3173
        %3466 = vmatpush.msra.mxu0 %v3170
        %3467 = vmatpush.msra.mxu0 %v3167
        %3468 = vmatpush.msra.mxu0 %v3164
        %3469 = vmatpush.msra.mxu0 %v3161
        %3470 = vmatpush.msra.mxu0 %v3158
        %3471 = vmatpush.msra.mxu0 %v3155
        %3472 = vmatpush.msra.mxu0 %v3152
        %3473 = vmatpush.msra.mxu0 %v3149
        %3474 = vmatmul.f32.gmra.mxu0 %v3143
        %v3475 = vpop.f32.mrf.mxu0
        %v3476 = vadd.f32 0.0, %v3475
        %3477 = vdwg.mxu0
        %3478 = vmatpush.msra.mxu0 %v3242
        %3479 = vmatpush.msra.mxu0 %v3239
        %3480 = vmatpush.msra.mxu0 %v3236
        %3481 = vmatpush.msra.mxu0 %v3233
        %3482 = vmatpush.msra.mxu0 %v3230
        %3483 = vmatpush.msra.mxu0 %v3227
        %3484 = vmatpush.msra.mxu0 %v3224
        %3485 = vmatpush.msra.mxu0 %v3221
        %3486 = vmatpush.msra.mxu0 %v3218
        %3487 = vmatpush.msra.mxu0 %v3215
        %3488 = vmatpush.msra.mxu0 %v3212
        %3489 = vmatpush.msra.mxu0 %v3209
        %3490 = vmatpush.msra.mxu0 %v3206
        %3491 = vmatpush.msra.mxu0 %v3203
        %3492 = vmatpush.msra.mxu0 %v3200
        %3493 = vmatpush.msra.mxu0 %v3197
        %3494 = vmatmul.f32.gmra.mxu0 %v3144
        %v3495 = vpop.f32.mrf.mxu0
        %v3496 = vadd.f32 %v3476, %v3495
        %3497 = vdwg.mxu0
        %3498 = vmatpush.msra.mxu0 %v3290
        %3499 = vmatpush.msra.mxu0 %v3287
        %3500 = vmatpush.msra.mxu0 %v3284
        %3501 = vmatpush.msra.mxu0 %v3281
        %3502 = vmatpush.msra.mxu0 %v3278
        %3503 = vmatpush.msra.mxu0 %v3275
        %3504 = vmatpush.msra.mxu0 %v3272
        %3505 = vmatpush.msra.mxu0 %v3269
        %3506 = vmatpush.msra.mxu0 %v3266
        %3507 = vmatpush.msra.mxu0 %v3263
        %3508 = vmatpush.msra.mxu0 %v3260
        %3509 = vmatpush.msra.mxu0 %v3257
        %3510 = vmatpush.msra.mxu0 %v3254
        %3511 = vmatpush.msra.mxu0 %v3251
        %3512 = vmatpush.msra.mxu0 %v3248
        %3513 = vmatpush.msra.mxu0 %v3245
        %3514 = vmatmul.f32.gmra.mxu0 %v3145
        %v3515 = vpop.f32.mrf.mxu0
        %v3516 = vadd.f32 %v3496, %v3515
        %3517 = vdwg.mxu0
        %3518 = vmatpush.msra.mxu0 0.0
        %3519 = vmatpush.msra.mxu0 0.0
        %3520 = vmatpush.msra.mxu0 0.0
        %3521 = vmatpush.msra.mxu0 0.0
        %3522 = vmatpush.msra.mxu0 0.0
        %3523 = vmatpush.msra.mxu0 0.0
        %3524 = vmatpush.msra.mxu0 0.0
        %3525 = vmatpush.msra.mxu0 0.0
        %3526 = vmatpush.msra.mxu0 0.0
        %3527 = vmatpush.msra.mxu0 0.0
        %3528 = vmatpush.msra.mxu0 0.0
        %3529 = vmatpush.msra.mxu0 0.0
        %3530 = vmatpush.msra.mxu0 0.0
        %3531 = vmatpush.msra.mxu0 0.0
        %3532 = vmatpush.msra.mxu0 0.0
        %3533 = vmatpush.msra.mxu0 %v3293
        %3534 = vmatmul.f32.gmra.mxu0 %v3296
        %v3535 = vpop.f32.mrf.mxu0
        %v3536 = vadd.f32 %v3516, %v3535
        %3537 = vdwg.mxu0
        %v3538 = vlaneseq
        %v3539 = vshrl.u32 %v3538, 7
        %v3540 = vmul.f32 %v3376, 0.5
        %v3541 = vmul.f32 %v3456, 0.5
        %v3542 = vmul.f32 %v3536, 0.5
        %vm3543 = vcmp.lt.f32.partialorder %v3540, 0.0
        %vm3544 = vcmp.lt.f32.partialorder %v3541, 0.0
        %vm3545 = vcmp.lt.f32.partialorder %v3542, 0.0
        %v3546 = vsel %vm3543, -1.0, 1.0
        %v3547 = vsel %vm3544, -1.0, 1.0
        %v3548 = vsel %vm3545, -1.0, 1.0
        %v3549 = vand.u32 2147483647, %v3540
        %v3550 = vand.u32 2147483647, %v3541
        %v3551 = vand.u32 2147483647, %v3542
        %vm3552 = vcmp.gt.f32.partialorder %v3549, 2.4142137
        %vm3553 = vcmp.gt.f32.partialorder %v3550, 2.4142137
        %vm3554 = vcmp.gt.f32.partialorder %v3551, 2.4142137
        %vm3555 = vcmp.gt.f32.partialorder %v3549, 0.41421357
        %vm3556 = vcmp.gt.f32.partialorder %v3550, 0.41421357
        %vm3557 = vcmp.gt.f32.partialorder %v3551, 0.41421357
        %v3558 = vsel %vm3555, 0.7853982, 0.0
        %v3559 = vsel %vm3556, 0.7853982, 0.0
        %v3560 = vsel %vm3557, 0.7853982, 0.0
        %v3561 = vsel %vm3552, 1.5707964, %v3558
        %v3562 = vsel %vm3553, 1.5707964, %v3559
        %v3563 = vsel %vm3554, 1.5707964, %v3560
        %v3564 = vmax.f32 %v3549, 1e-30
        %v3565 = vmax.f32 %v3550, 1e-30
        %v3566 = vmax.f32 %v3551, 1e-30
        %v3567 = vrcp.pop %v3564
        %v3568 = vrcp.pop %v3565
        %v3569 = vrcp.pop %v3566
        %v3570 = vmul.f32 %v3564, %v3567
        %v3571 = vmul.f32 %v3565, %v3568
        %v3572 = vmul.f32 %v3566, %v3569
        %v3573 = vsub.f32 1.0, %v3570
        %v3574 = vsub.f32 1.0, %v3571
        %v3575 = vsub.f32 1.0, %v3572
        %v3576 = vmul.f32 %v3567, %v3573
        %v3577 = vmul.f32 %v3568, %v3574
        %v3578 = vmul.f32 %v3569, %v3575
        %v3579 = vadd.f32 %v3567, %v3576
        %v3580 = vadd.f32 %v3568, %v3577
        %v3581 = vadd.f32 %v3569, %v3578
        %v3582 = vadd.f32 %v3549, 1.0
        %v3583 = vadd.f32 %v3550, 1.0
        %v3584 = vadd.f32 %v3551, 1.0
        %v3585 = vrcp.pop %v3582
        %v3586 = vrcp.pop %v3583
        %v3587 = vrcp.pop %v3584
        %v3588 = vmul.f32 %v3582, %v3585
        %v3589 = vmul.f32 %v3583, %v3586
        %v3590 = vmul.f32 %v3584, %v3587
        %v3591 = vsub.f32 1.0, %v3588
        %v3592 = vsub.f32 1.0, %v3589
        %v3593 = vsub.f32 1.0, %v3590
        %v3594 = vmul.f32 %v3585, %v3591
        %v3595 = vmul.f32 %v3586, %v3592
        %v3596 = vmul.f32 %v3587, %v3593
        %v3597 = vadd.f32 %v3585, %v3594
        %v3598 = vadd.f32 %v3586, %v3595
        %v3599 = vadd.f32 %v3587, %v3596
        %v3600 = vsub.f32 0.0, %v3579
        %v3601 = vsub.f32 0.0, %v3580
        %v3602 = vsub.f32 0.0, %v3581
        %v3603 = vsub.f32 %v3549, 1.0
        %v3604 = vsub.f32 %v3550, 1.0
        %v3605 = vsub.f32 %v3551, 1.0
        %v3606 = vmul.f32 %v3603, %v3597
        %v3607 = vmul.f32 %v3604, %v3598
        %v3608 = vmul.f32 %v3605, %v3599
        %v3609 = vsel %vm3555, %v3606, %v3549
        %v3610 = vsel %vm3556, %v3607, %v3550
        %v3611 = vsel %vm3557, %v3608, %v3551
        %v3612 = vsel %vm3552, %v3600, %v3609
        %v3613 = vsel %vm3553, %v3601, %v3610
        %v3614 = vsel %vm3554, %v3602, %v3611
        %v3615 = vmul.f32 %v3612, %v3612
        %v3616 = vmul.f32 %v3613, %v3613
        %v3617 = vmul.f32 %v3614, %v3614
        %v3618 = vmul.f32 %v3615, 0.080537446
        %v3619 = vmul.f32 %v3616, 0.080537446
        %v3620 = vmul.f32 %v3617, 0.080537446
        %v3621 = vsub.f32 %v3618, 0.13877685
        %v3622 = vsub.f32 %v3619, 0.13877685
        %v3623 = vsub.f32 %v3620, 0.13877685
        %v3624 = vmul.f32 %v3621, %v3615
        %v3625 = vmul.f32 %v3622, %v3616
        %v3626 = vmul.f32 %v3623, %v3617
        %v3627 = vadd.f32 %v3624, 0.19977711
        %v3628 = vadd.f32 %v3625, 0.19977711
        %v3629 = vadd.f32 %v3626, 0.19977711
        %v3630 = vmul.f32 %v3627, %v3615
        %v3631 = vmul.f32 %v3628, %v3616
        %v3632 = vmul.f32 %v3629, %v3617
        %v3633 = vsub.f32 %v3630, 0.3333295
        %v3634 = vsub.f32 %v3631, 0.3333295
        %v3635 = vsub.f32 %v3632, 0.3333295
        %v3636 = vmul.f32 %v3633, %v3615
        %v3637 = vmul.f32 %v3634, %v3616
        %v3638 = vmul.f32 %v3635, %v3617
        %v3639 = vmul.f32 %v3636, %v3612
        %v3640 = vmul.f32 %v3637, %v3613
        %v3641 = vmul.f32 %v3638, %v3614
        %v3642 = vadd.f32 %v3561, %v3639
        %v3643 = vadd.f32 %v3562, %v3640
        %v3644 = vadd.f32 %v3563, %v3641
        %v3645 = vadd.f32 %v3642, %v3612
        %v3646 = vadd.f32 %v3643, %v3613
        %v3647 = vadd.f32 %v3644, %v3614
        %v3648 = vmul.f32 %v3546, %v3645
        %v3649 = vmul.f32 %v3547, %v3646
        %v3650 = vmul.f32 %v3548, %v3647
        %v3651 = vmul.f32 %v3648, 1.272
        %v3652 = vmul.f32 %v3649, 1.272
        %v3653 = vmul.f32 %v3650, 1.272
        %vm3654 = vcmp.lt.s32.totalorder %v3539, 4
        %v3655 = vsel %vm3654, %v3651, %v3376
        %v3656 = vsel %vm3654, %v3652, %v3456
        %v3657 = vsel %vm3654, %v3653, %v3536
        %v3658 = vmul.f32 %v3655, %v1904
        %v3659 = vmul.f32 %v3656, %v1905
        %v3660 = vmul.f32 %v3657, %v1906
        %3661 = vst [vmem:[%s259] sm:$0xff] %v3658
        %3662 = vst [vmem:[%s259 + $0x8] sm:$0xff] %v3659
        %3663 = vst [vmem:[%s259 + $0x10] sm:$0xff] %v3660
        %s3664 = sand.u32 %s120, 1
        %s3665 = scalar_lea.sflag [#allocation7], %s3664
        %s3666 = sand.u32 %s120, 1
        %s3667 = smul.addr %s3666, 24
        %s3668 = scalar_lea.vmem [#allocation13], %s3667
        // Predicated region
        $region53: #{tpu_custom_call.1} parent=35 // pred_check
          %p3669 = pneg %p130
        $region54: #{tpu_custom_call.1} parent=35 // pred_check_branch
          %3671 = sbr.rel (%p3669) target = $region56
        $region55: #{tpu_custom_call.1} parent=35 // pred_region
          %3673 = vsyncadd %s3665, 0
          %s3674 = smul.addr %s23, 3
          %s3675 = smul.addr %s3674, 8
          %s3676 = scalar_lea.hbm %s4, %s3675
          %s3678 = sshll.u32 %s3668, 4
          %s3679 = int_to_ptr.vmem [resolvable:$true] %s3678
          %s3680 = sshll.u32 %s3676, 4
          %s3681 = int_to_ptr.hbm [resolvable:$true] %s3680
          %3683 = dma.vmem_to_hbm [thread:$0]  %s3679, 384, %s3681, %s3665
        $region56: #{tpu_custom_call.1} parent=35 // pred_fallthru
          _
      $region36: #{tpu_custom_call.1} parent=5 // pred_fallthru
        _
      %p3684 = scmp.le.s32.totalorder 2, %s18
      // Predicated region
      $region57: #{tpu_custom_call.1} parent=5 // pred_check
        %p3685 = pneg %p3684
      $region58: #{tpu_custom_call.1} parent=5 // pred_check_branch
        %3687 = sbr.rel (%p3685) target = $region60
      $region59: #{tpu_custom_call.1} parent=5 // pred_region
        %s3688 = ssub.s32 %s18, 2
        // Predicated region
        $region61: #{tpu_custom_call.1} parent=59 // pred_check
          %p3689 = pneg %p136
        $region62: #{tpu_custom_call.1} parent=59 // pred_check_branch
          %3691 = sbr.rel (%p3689) target = $region64
        $region63: #{tpu_custom_call.1} parent=59 // pred_region
          %s3692 = sand.u32 %s121, 1
          %s3693 = scalar_lea.sflag [#allocation7], %s3692
          %s3694 = sand.u32 %s121, 1
          %s3695 = smul.addr %s3694, 24
          %s3696 = scalar_lea.vmem [#allocation13], %s3695
          %3698 = dma.done %s3693, 384
        $region64: #{tpu_custom_call.1} parent=59 // pred_fallthru
          _
      $region60: #{tpu_custom_call.1} parent=5 // pred_fallthru
        _
    $region6: #{tpu_custom_call.1} parent=1 // loop_footer
      %s22 = sadd.s32 1, %s18
    $region7: #{tpu_custom_call.1} parent=1 // loop_footer_branch
      %17 = sbr.rel target = $region3
    $region8: #{tpu_custom_call.1} parent=1 // loop_exit
      _
    %3699 = vsyncpa [#allocation6], 1
    %s3700 = scalar_lea.sflag [#allocation6], 1
    %3701 = vsyncpa %s3700, 1
    %3702 = vsyncpa [#allocation9], 1
    %3703 = vsyncpa [#allocation12], 1
    %3704 = vsyncpa [#allocation7], 1
    %s3705 = scalar_lea.sflag [#allocation7], 1
    %3706 = vsyncpa %s3705, 1

</llo_original>
